<compile_context>
chip_gen: v7x
topology: tpu7x:2x2x1
jax: 0.10.0
libtpu: 0.0.40
codegen_flags: <defaults>
</compile_context>

<pallas_src>
import jax
import jax.numpy as jnp
from jax.experimental import pallas as pl
from jax.experimental.pallas import tpu as pltpu


# ------------------------- helpers -------------------------

def _round_up(x, m):
    return (x + m - 1) // m * m


def _pick_tile(dim, requested, granule):
    """Tile size: whole (granule-padded) dim if it fits the request, else the request."""
    padded = _round_up(dim, granule)
    return padded if padded <= requested else requested


# ------------------------- tiled matmul + bias kernel -------------------------

def _matmul_bias_kernel(a_ref, w_ref, b_ref, o_ref, acc_ref):
    k = pl.program_id(2)

    @pl.when(k == 0)
    def _():
        acc_ref[...] = jnp.zeros_like(acc_ref)

    acc_ref[...] += jnp.dot(a_ref[...], w_ref[...],
                            preferred_element_type=jnp.float32)

    @pl.when(k == pl.num_programs(2) - 1)
    def _():
        # Bias added exactly once, on the f32 accumulator, as the MXU drains.
        o_ref[...] = (acc_ref[...] + b_ref[...]).astype(o_ref.dtype)


def matmul_bias(a, w, b, *, tm=256, tn=256, tk=512, out_dtype=jnp.bfloat16):
    """a: (M, K), w: (K, N), b: (N,) -> (M, N) in out_dtype.

    Operands are cast to bf16 and zero-padded so M is a multiple of 16 and K/N are
    multiples of 128 (lane-dense blocks); accumulation is f32 in VMEM scratch.
    """
    M, K = a.shape
    Kw, N = w.shape
    assert Kw == K, (a.shape, w.shape)

    tm = _pick_tile(M, tm, 16)
    tk = _pick_tile(K, tk, 128)
    tn = _pick_tile(N, tn, 128)
    Mp, Kp, Np = _round_up(M, tm), _round_up(K, tk), _round_up(N, tn)

    a_p = jnp.pad(a.astype(jnp.bfloat16), ((0, Mp - M), (0, Kp - K)))
    w_p = jnp.pad(w.astype(jnp.bfloat16), ((0, Kp - K), (0, Np - N)))
    b_p = jnp.pad(b.astype(jnp.float32), (0, Np - N)).reshape(1, Np)

    grid = (Mp // tm, Np // tn, Kp // tk)

    out = pl.pallas_call(
        _matmul_bias_kernel,
        out_shape=jax.ShapeDtypeStruct((Mp, Np), out_dtype),
        grid_spec=pltpu.PrefetchScalarGridSpec(
            num_scalar_prefetch=0,
            grid=grid,
            in_specs=[
                pl.BlockSpec((tm, tk), lambda i, j, k: (i, k)),
                pl.BlockSpec((tk, tn), lambda i, j, k: (k, j)),
                pl.BlockSpec((1, tn), lambda i, j, k: (0, j)),
            ],
            out_specs=pl.BlockSpec((tm, tn), lambda i, j, k: (i, j)),
            scratch_shapes=[pltpu.VMEM((tm, tn), jnp.float32)],
        ),
        compiler_params=pltpu.CompilerParams(
            dimension_semantics=("parallel", "parallel", "arbitrary")),
    )(a_p, w_p, b_p)
    return out[:M, :N]


# ------------------------- 2x2 max-pool kernel (lane-dense VPU max) -------------------------

def _max4_kernel(a_ref, b_ref, c_ref, d_ref, o_ref):
    o_ref[...] = jnp.maximum(jnp.maximum(a_ref[...], b_ref[...]),
                             jnp.maximum(c_ref[...], d_ref[...]))


def maxpool2x2_nhwc(x):
    """x: (B, H, W, C) NHWC, even H/W -> (B, H//2, W//2, C). MaxPool2d(2, 2)."""
    B, H, W, C = x.shape
    Hp, Wp = H // 2, W // 2
    N = B * Hp * Wp
    slabs = [x[:, dh::2, dw::2, :].reshape(N, C)
             for dh in (0, 1) for dw in (0, 1)]

    tm = _pick_tile(N, 512, 16)
    Npad = _round_up(N, tm)
    Cp = _round_up(C, 128)
    slabs = [jnp.pad(s, ((0, Npad - N), (0, Cp - C))) for s in slabs]

    out = pl.pallas_call(
        _max4_kernel,
        out_shape=jax.ShapeDtypeStruct((Npad, Cp), x.dtype),
        grid=(Npad // tm,),
        in_specs=[pl.BlockSpec((tm, Cp), lambda i: (i, 0)) for _ in range(4)],
        out_specs=pl.BlockSpec((tm, Cp), lambda i: (i, 0)),
        compiler_params=pltpu.CompilerParams(
            dimension_semantics=("parallel",)),
    )(*slabs)
    return out[:N, :C].reshape(B, Hp, Wp, C)


# ------------------------- conv via NHWC im2col + tiled matmul -------------------------

def conv2d_nhwc(x, w, b, *, stride, pad, tm=256, tn=256, tk=512):
    """x: (B, H, W, Cin) NHWC, w: (Cout, Cin, k, k) PyTorch layout, b: (Cout,)
    -> (B, Ho, Wo, Cout) NHWC (no NCHW round-trips)."""
    B, H, W, Cin = x.shape
    Cout, _, k, _ = w.shape
    Ho = (H + 2 * pad - k) // stride + 1
    Wo = (W + 2 * pad - k) // stride + 1
    xp = jnp.pad(x, ((0, 0), (pad, pad), (pad, pad), (0, 0)))

    # TODO(synk): fuse the im2col into the matmul kernel (index_map / manual DMA over
    # shifted row slabs) so the k*k-expanded matrix never hits HBM at the real
    # 10812x10812 input size.
    patches = [xp[:, kh:kh + stride * Ho:stride, kw:kw + stride * Wo:stride, :]
               for kh in range(k) for kw in range(k)]
    col = jnp.concatenate(patches, axis=-1).reshape(B * Ho * Wo, k * k * Cin)

    # Weight in (kh, kw, cin)-major order to match the NHWC patch layout.
    wmat = w.transpose(2, 3, 1, 0).reshape(k * k * Cin, Cout)

    out = matmul_bias(col, wmat, b, tm=tm, tn=tn, tk=tk, out_dtype=jnp.bfloat16)
    return out.reshape(B, Ho, Wo, Cout)


# ------------------------- full forward (matches ElevationConvNet.forward) -------------------------

def elevation_convnet_forward(x, params):
    """x: (B, H, W) -> (B, 120, 120). Mirrors pool1(conv3(conv2(conv1(x)))), fc1, fc2.
    (The reference forward applies no ReLU, so none is applied here.)"""
    B = x.shape[0]
    x = x[..., None].astype(jnp.bfloat16)                           # unsqueeze(1) -> NHWC (B,H,W,1)
    x = conv2d_nhwc(x, params["w1"], params["b1"], stride=4, pad=1)            # conv1
    x = conv2d_nhwc(x, params["w2"], params["b2"], stride=4, pad=1)            # conv2
    x = conv2d_nhwc(x, params["w3"], params["b3"], stride=2, pad=1, tk=640)    # conv3 (K=576 -> 640)
    x = maxpool2x2_nhwc(x)                                          # pool1 -> (B, Hp, Wp, 128)
    # Flatten in PyTorch NCHW order (tiny tensor at this point).
    x = x.transpose(0, 3, 1, 2).reshape(B, -1)
    x = matmul_bias(x, params["fc1_w"], params["fc1_b"], out_dtype=jnp.bfloat16)        # fc1
    x = matmul_bias(x, params["fc2_w"], params["fc2_b"], tn=512, out_dtype=jnp.float32)  # fc2 (N-tiled)
    return x.reshape(B, 120, 120)


# ------------------------- deterministic parameter init -------------------------

def calc_flattened_size(H, W):
    """Same arithmetic as ElevationConvNet._calculate_flattened_size (conv1, conv2, pool, conv3)."""
    def conv(d, k, s, p):
        return (d + 2 * p - k) // s + 1
    h, w = conv(H, 3, 4, 1), conv(W, 3, 4, 1)     # conv1
    h, w = conv(h, 3, 4, 1), conv(w, 3, 4, 1)     # conv2
    h, w = h // 2, w // 2                         # pool1
    h, w = conv(h, 3, 2, 1), conv(w, 3, 2, 1)     # conv3
    return 128 * h * w


def init_params(key, flattened_size):
    keys = jax.random.split(key, 10)

    def u(k, shape, fan_in):
        bound = 1.0 / (fan_in ** 0.5)
        return jax.random.uniform(k, shape, jnp.float32, -bound, bound)

    return {
        "w1": u(keys[0], (32, 1, 3, 3), 1 * 9),
        "b1": u(keys[1], (32,), 1 * 9),
        "w2": u(keys[2], (64, 32, 3, 3), 32 * 9),
        "b2": u(keys[3], (64,), 32 * 9),
        "w3": u(keys[4], (128, 64, 3, 3), 64 * 9),
        "b3": u(keys[5], (128,), 64 * 9),
        # fc weights stored as (in, out) = PyTorch Linear weight transposed.
        "fc1_w": u(keys[6], (flattened_size, 256), flattened_size),
        "fc1_b": u(keys[7], (256,), flattened_size),
        "fc2_w": u(keys[8], (256, 120 * 120), 256),
        "fc2_b": u(keys[9], (120 * 120,), 256),
    }


if __name__ == "__main__":
    key = jax.random.PRNGKey(0)
    k_x, k_p = jax.random.split(key)

    B, H, W = 2, 64, 64                  # small stand-in for the 10812x10812 elevation map
    flattened_size = calc_flattened_size(H, W)   # = 128 for 64x64

    params = init_params(k_p, flattened_size)
    x = jax.random.normal(k_x, (B, H, W), dtype=jnp.float32)

    fwd = jax.jit(elevation_convnet_forward)
    out = jax.block_until_ready(fwd(x, params))

    assert out.shape == (B, 120, 120), out.shape
    assert out.dtype == jnp.float32
    print("KERNEL_OK")
</pallas_src>

<mosaic_0001>
module attributes {stable_mosaic.version = 11 : i64} {
  func.func @_matmul_bias_kernel(%arg0: i32, %arg1: i32, %arg2: i32, %arg3: memref<256x128xbf16, #tpu.memory_space<vmem>>, %arg4: memref<128x128xbf16, #tpu.memory_space<vmem>>, %arg5: memref<1x128xf32, #tpu.memory_space<vmem>>, %arg6: memref<256x128xbf16, #tpu.memory_space<vmem>>, %arg7: memref<256x128xf32, #tpu.memory_space<vmem>>) attributes {dimension_semantics = [#tpu.dimension_semantics<parallel>, #tpu.dimension_semantics<parallel>, #tpu.dimension_semantics<arbitrary>], iteration_bounds = array<i64: 2, 1, 1>, scalar_prefetch = 0 : i64, scratch_operands = 1 : i64, tpu.core_type = #tpu.core_type<tc>, window_params = [{transform_indices = @transform_0, window_bounds = array<i64: 256, 128>}, {transform_indices = @transform_1, window_bounds = array<i64: 128, 128>}, {transform_indices = @transform_2, window_bounds = array<i64: 1, 128>}, {transform_indices = @transform_3, window_bounds = array<i64: 256, 128>}]} {
    %c0_i32 = arith.constant 0 : i32
    %0 = arith.cmpi eq, %arg2, %c0_i32 : i32
    %1 = arith.extui %0 : i1 to i32
    %c0_i32_0 = arith.constant 0 : i32
    %2 = arith.cmpi ne, %1, %c0_i32_0 : i32
    scf.if %2 {
      %cst_10 = arith.constant 0.000000e+00 : f32
      %12 = vector.broadcast %cst_10 : f32 to vector<256x128xf32>
      %c0_11 = arith.constant 0 : index
      %c0_12 = arith.constant 0 : index
      %13 = vector.load %arg7[%c0_11, %c0_12] : memref<256x128xf32, #tpu.memory_space<vmem>>, vector<256x128xf32>
      tpu.vector_store %arg7[%c0_11, %c0_12], %12 {strides = array<i32>} : memref<256x128xf32, #tpu.memory_space<vmem>>, vector<256x128xf32>,
    } else {
    }
    %c0 = arith.constant 0 : index
    %c0_1 = arith.constant 0 : index
    %3 = vector.load %arg7[%c0, %c0_1] : memref<256x128xf32, #tpu.memory_space<vmem>>, vector<256x128xf32>
    %c0_2 = arith.constant 0 : index
    %c0_3 = arith.constant 0 : index
    %4 = vector.load %arg3[%c0_2, %c0_3] : memref<256x128xbf16, #tpu.memory_space<vmem>>, vector<256x128xbf16>
    %c0_4 = arith.constant 0 : index
    %c0_5 = arith.constant 0 : index
    %5 = vector.load %arg4[%c0_4, %c0_5] : memref<128x128xbf16, #tpu.memory_space<vmem>>, vector<128x128xbf16>
    %cst = arith.constant dense<0.000000e+00> : vector<256x128xf32>
    %6 = tpu.matmul %4, %5, %cst {dimension_numbers = #tpu.dot_dimension_numbers<[1], [0], [0], [1], [0, 0, 1, 1], [], []>} : vector<256x128xbf16>, vector<128x128xbf16>, vector<256x128xf32> -> vector<256x128xf32>
    %7 = arith.addf %3, %6 : vector<256x128xf32>
    %c0_6 = arith.constant 0 : index
    %c0_7 = arith.constant 0 : index
    %8 = vector.load %arg7[%c0_6, %c0_7] : memref<256x128xf32, #tpu.memory_space<vmem>>, vector<256x128xf32>
    tpu.vector_store %arg7[%c0_6, %c0_7], %7 {strides = array<i32>} : memref<256x128xf32, #tpu.memory_space<vmem>>, vector<256x128xf32>,
    %c0_i32_8 = arith.constant 0 : i32
    %9 = arith.cmpi eq, %arg2, %c0_i32_8 : i32
    %10 = arith.extui %9 : i1 to i32
    %c0_i32_9 = arith.constant 0 : i32
    %11 = arith.cmpi ne, %10, %c0_i32_9 : i32
    scf.if %11 {
      %c0_10 = arith.constant 0 : index
      %c0_11 = arith.constant 0 : index
      %12 = vector.load %arg7[%c0_10, %c0_11] : memref<256x128xf32, #tpu.memory_space<vmem>>, vector<256x128xf32>
      %c0_12 = arith.constant 0 : index
      %c0_13 = arith.constant 0 : index
      %13 = vector.load %arg5[%c0_12, %c0_13] : memref<1x128xf32, #tpu.memory_space<vmem>>, vector<1x128xf32>
      %14 = vector.broadcast %13 : vector<1x128xf32> to vector<256x128xf32>
      %15 = arith.addf %12, %14 : vector<256x128xf32>
      %16 = arith.truncf %15 : vector<256x128xf32> to vector<256x128xbf16>
      %c0_14 = arith.constant 0 : index
      %c0_15 = arith.constant 0 : index
      %17 = vector.load %arg6[%c0_14, %c0_15] : memref<256x128xbf16, #tpu.memory_space<vmem>>, vector<256x128xbf16>
      tpu.vector_store %arg6[%c0_14, %c0_15], %16 {strides = array<i32>} : memref<256x128xbf16, #tpu.memory_space<vmem>>, vector<256x128xbf16>,
    } else {
    }
    return
  }
  func.func @transform_0(%arg0: i32, %arg1: i32, %arg2: i32) -> (i32, i32) {
    %c0_i32 = arith.constant 0 : i32
    return %arg0, %arg2 : i32, i32
  }
  func.func @transform_1(%arg0: i32, %arg1: i32, %arg2: i32) -> (i32, i32) {
    %c0_i32 = arith.constant 0 : i32
    return %arg2, %arg1 : i32, i32
  }
  func.func @transform_2(%arg0: i32, %arg1: i32, %arg2: i32) -> (i32, i32) {
    %c0_i32 = arith.constant 0 : i32
    %c0_i32_0 = arith.constant 0 : i32
    return %c0_i32, %arg1 : i32, i32
  }
  func.func @transform_3(%arg0: i32, %arg1: i32, %arg2: i32) -> (i32, i32) {
    %c0_i32 = arith.constant 0 : i32
    return %arg0, %arg1 : i32, i32
  }
}

module attributes {stable_mosaic.version = 11 : i64} {
  func.func @_matmul_bias_kernel(%arg0: i32, %arg1: i32, %arg2: i32, %arg3: memref<32x384xbf16, #tpu.memory_space<vmem>>, %arg4: memref<384x128xbf16, #tpu.memory_space<vmem>>, %arg5: memref<1x128xf32, #tpu.memory_space<vmem>>, %arg6: memref<32x128xbf16, #tpu.memory_space<vmem>>, %arg7: memref<32x128xf32, #tpu.memory_space<vmem>>) attributes {dimension_semantics = [#tpu.dimension_semantics<parallel>, #tpu.dimension_semantics<parallel>, #tpu.dimension_semantics<arbitrary>], iteration_bounds = array<i64: 1, 1, 1>, scalar_prefetch = 0 : i64, scratch_operands = 1 : i64, tpu.core_type = #tpu.core_type<tc>, window_params = [{transform_indices = @transform_0, window_bounds = array<i64: 32, 384>}, {transform_indices = @transform_1, window_bounds = array<i64: 384, 128>}, {transform_indices = @transform_2, window_bounds = array<i64: 1, 128>}, {transform_indices = @transform_3, window_bounds = array<i64: 32, 128>}]} {
    %c0_i32 = arith.constant 0 : i32
    %0 = arith.cmpi eq, %arg2, %c0_i32 : i32
    %1 = arith.extui %0 : i1 to i32
    %c0_i32_0 = arith.constant 0 : i32
    %2 = arith.cmpi ne, %1, %c0_i32_0 : i32
    scf.if %2 {
      %cst_10 = arith.constant 0.000000e+00 : f32
      %12 = vector.broadcast %cst_10 : f32 to vector<32x128xf32>
      %c0_11 = arith.constant 0 : index
      %c0_12 = arith.constant 0 : index
      %13 = vector.load %arg7[%c0_11, %c0_12] : memref<32x128xf32, #tpu.memory_space<vmem>>, vector<32x128xf32>
      tpu.vector_store %arg7[%c0_11, %c0_12], %12 {strides = array<i32>} : memref<32x128xf32, #tpu.memory_space<vmem>>, vector<32x128xf32>,
    } else {
    }
    %c0 = arith.constant 0 : index
    %c0_1 = arith.constant 0 : index
    %3 = vector.load %arg7[%c0, %c0_1] : memref<32x128xf32, #tpu.memory_space<vmem>>, vector<32x128xf32>
    %c0_2 = arith.constant 0 : index
    %c0_3 = arith.constant 0 : index
    %4 = vector.load %arg3[%c0_2, %c0_3] : memref<32x384xbf16, #tpu.memory_space<vmem>>, vector<32x384xbf16>
    %c0_4 = arith.constant 0 : index
    %c0_5 = arith.constant 0 : index
    %5 = vector.load %arg4[%c0_4, %c0_5] : memref<384x128xbf16, #tpu.memory_space<vmem>>, vector<384x128xbf16>
    %cst = arith.constant dense<0.000000e+00> : vector<32x128xf32>
    %6 = tpu.matmul %4, %5, %cst {dimension_numbers = #tpu.dot_dimension_numbers<[1], [0], [0], [1], [0, 0, 1, 1], [], []>} : vector<32x384xbf16>, vector<384x128xbf16>, vector<32x128xf32> -> vector<32x128xf32>
    %7 = arith.addf %3, %6 : vector<32x128xf32>
    %c0_6 = arith.constant 0 : index
    %c0_7 = arith.constant 0 : index
    %8 = vector.load %arg7[%c0_6, %c0_7] : memref<32x128xf32, #tpu.memory_space<vmem>>, vector<32x128xf32>
    tpu.vector_store %arg7[%c0_6, %c0_7], %7 {strides = array<i32>} : memref<32x128xf32, #tpu.memory_space<vmem>>, vector<32x128xf32>,
    %c0_i32_8 = arith.constant 0 : i32
    %9 = arith.cmpi eq, %arg2, %c0_i32_8 : i32
    %10 = arith.extui %9 : i1 to i32
    %c0_i32_9 = arith.constant 0 : i32
    %11 = arith.cmpi ne, %10, %c0_i32_9 : i32
    scf.if %11 {
      %c0_10 = arith.constant 0 : index
      %c0_11 = arith.constant 0 : index
      %12 = vector.load %arg7[%c0_10, %c0_11] : memref<32x128xf32, #tpu.memory_space<vmem>>, vector<32x128xf32>
      %c0_12 = arith.constant 0 : index
      %c0_13 = arith.constant 0 : index
      %13 = vector.load %arg5[%c0_12, %c0_13] : memref<1x128xf32, #tpu.memory_space<vmem>>, vector<1x128xf32>
      %14 = vector.broadcast %13 : vector<1x128xf32> to vector<32x128xf32>
      %15 = arith.addf %12, %14 : vector<32x128xf32>
      %16 = arith.truncf %15 : vector<32x128xf32> to vector<32x128xbf16>
      %c0_14 = arith.constant 0 : index
      %c0_15 = arith.constant 0 : index
      %17 = vector.load %arg6[%c0_14, %c0_15] : memref<32x128xbf16, #tpu.memory_space<vmem>>, vector<32x128xbf16>
      tpu.vector_store %arg6[%c0_14, %c0_15], %16 {strides = array<i32>} : memref<32x128xbf16, #tpu.memory_space<vmem>>, vector<32x128xbf16>,
    } else {
    }
    return
  }
  func.func @transform_0(%arg0: i32, %arg1: i32, %arg2: i32) -> (i32, i32) {
    %c0_i32 = arith.constant 0 : i32
    return %arg0, %arg2 : i32, i32
  }
  func.func @transform_1(%arg0: i32, %arg1: i32, %arg2: i32) -> (i32, i32) {
    %c0_i32 = arith.constant 0 : i32
    return %arg2, %arg1 : i32, i32
  }
  func.func @transform_2(%arg0: i32, %arg1: i32, %arg2: i32) -> (i32, i32) {
    %c0_i32 = arith.constant 0 : i32
    %c0_i32_0 = arith.constant 0 : i32
    return %c0_i32, %arg1 : i32, i32
  }
  func.func @transform_3(%arg0: i32, %arg1: i32, %arg2: i32) -> (i32, i32) {
    %c0_i32 = arith.constant 0 : i32
    return %arg0, %arg1 : i32, i32
  }
}

module attributes {stable_mosaic.version = 11 : i64} {
  func.func @_matmul_bias_kernel(%arg0: i32, %arg1: i32, %arg2: i32, %arg3: memref<16x640xbf16, #tpu.memory_space<vmem>>, %arg4: memref<640x128xbf16, #tpu.memory_space<vmem>>, %arg5: memref<1x128xf32, #tpu.memory_space<vmem>>, %arg6: memref<16x128xbf16, #tpu.memory_space<vmem>>, %arg7: memref<16x128xf32, #tpu.memory_space<vmem>>) attributes {dimension_semantics = [#tpu.dimension_semantics<parallel>, #tpu.dimension_semantics<parallel>, #tpu.dimension_semantics<arbitrary>], iteration_bounds = array<i64: 1, 1, 1>, scalar_prefetch = 0 : i64, scratch_operands = 1 : i64, tpu.core_type = #tpu.core_type<tc>, window_params = [{transform_indices = @transform_0, window_bounds = array<i64: 16, 640>}, {transform_indices = @transform_1, window_bounds = array<i64: 640, 128>}, {transform_indices = @transform_2, window_bounds = array<i64: 1, 128>}, {transform_indices = @transform_3, window_bounds = array<i64: 16, 128>}]} {
    %c0_i32 = arith.constant 0 : i32
    %0 = arith.cmpi eq, %arg2, %c0_i32 : i32
    %1 = arith.extui %0 : i1 to i32
    %c0_i32_0 = arith.constant 0 : i32
    %2 = arith.cmpi ne, %1, %c0_i32_0 : i32
    scf.if %2 {
      %cst_10 = arith.constant 0.000000e+00 : f32
      %12 = vector.broadcast %cst_10 : f32 to vector<16x128xf32>
      %c0_11 = arith.constant 0 : index
      %c0_12 = arith.constant 0 : index
      %13 = vector.load %arg7[%c0_11, %c0_12] : memref<16x128xf32, #tpu.memory_space<vmem>>, vector<16x128xf32>
      tpu.vector_store %arg7[%c0_11, %c0_12], %12 {strides = array<i32>} : memref<16x128xf32, #tpu.memory_space<vmem>>, vector<16x128xf32>,
    } else {
    }
    %c0 = arith.constant 0 : index
    %c0_1 = arith.constant 0 : index
    %3 = vector.load %arg7[%c0, %c0_1] : memref<16x128xf32, #tpu.memory_space<vmem>>, vector<16x128xf32>
    %c0_2 = arith.constant 0 : index
    %c0_3 = arith.constant 0 : index
    %4 = vector.load %arg3[%c0_2, %c0_3] : memref<16x640xbf16, #tpu.memory_space<vmem>>, vector<16x640xbf16>
    %c0_4 = arith.constant 0 : index
    %c0_5 = arith.constant 0 : index
    %5 = vector.load %arg4[%c0_4, %c0_5] : memref<640x128xbf16, #tpu.memory_space<vmem>>, vector<640x128xbf16>
    %cst = arith.constant dense<0.000000e+00> : vector<16x128xf32>
    %6 = tpu.matmul %4, %5, %cst {dimension_numbers = #tpu.dot_dimension_numbers<[1], [0], [0], [1], [0, 0, 1, 1], [], []>} : vector<16x640xbf16>, vector<640x128xbf16>, vector<16x128xf32> -> vector<16x128xf32>
    %7 = arith.addf %3, %6 : vector<16x128xf32>
    %c0_6 = arith.constant 0 : index
    %c0_7 = arith.constant 0 : index
    %8 = vector.load %arg7[%c0_6, %c0_7] : memref<16x128xf32, #tpu.memory_space<vmem>>, vector<16x128xf32>
    tpu.vector_store %arg7[%c0_6, %c0_7], %7 {strides = array<i32>} : memref<16x128xf32, #tpu.memory_space<vmem>>, vector<16x128xf32>,
    %c0_i32_8 = arith.constant 0 : i32
    %9 = arith.cmpi eq, %arg2, %c0_i32_8 : i32
    %10 = arith.extui %9 : i1 to i32
    %c0_i32_9 = arith.constant 0 : i32
    %11 = arith.cmpi ne, %10, %c0_i32_9 : i32
    scf.if %11 {
      %c0_10 = arith.constant 0 : index
      %c0_11 = arith.constant 0 : index
      %12 = vector.load %arg7[%c0_10, %c0_11] : memref<16x128xf32, #tpu.memory_space<vmem>>, vector<16x128xf32>
      %c0_12 = arith.constant 0 : index
      %c0_13 = arith.constant 0 : index
      %13 = vector.load %arg5[%c0_12, %c0_13] : memref<1x128xf32, #tpu.memory_space<vmem>>, vector<1x128xf32>
      %14 = vector.broadcast %13 : vector<1x128xf32> to vector<16x128xf32>
      %15 = arith.addf %12, %14 : vector<16x128xf32>
      %16 = arith.truncf %15 : vector<16x128xf32> to vector<16x128xbf16>
      %c0_14 = arith.constant 0 : index
      %c0_15 = arith.constant 0 : index
      %17 = vector.load %arg6[%c0_14, %c0_15] : memref<16x128xbf16, #tpu.memory_space<vmem>>, vector<16x128xbf16>
      tpu.vector_store %arg6[%c0_14, %c0_15], %16 {strides = array<i32>} : memref<16x128xbf16, #tpu.memory_space<vmem>>, vector<16x128xbf16>,
    } else {
    }
    return
  }
  func.func @transform_0(%arg0: i32, %arg1: i32, %arg2: i32) -> (i32, i32) {
    %c0_i32 = arith.constant 0 : i32
    return %arg0, %arg2 : i32, i32
  }
  func.func @transform_1(%arg0: i32, %arg1: i32, %arg2: i32) -> (i32, i32) {
    %c0_i32 = arith.constant 0 : i32
    return %arg2, %arg1 : i32, i32
  }
  func.func @transform_2(%arg0: i32, %arg1: i32, %arg2: i32) -> (i32, i32) {
    %c0_i32 = arith.constant 0 : i32
    %c0_i32_0 = arith.constant 0 : i32
    return %c0_i32, %arg1 : i32, i32
  }
  func.func @transform_3(%arg0: i32, %arg1: i32, %arg2: i32) -> (i32, i32) {
    %c0_i32 = arith.constant 0 : i32
    return %arg0, %arg1 : i32, i32
  }
}

module attributes {stable_mosaic.version = 11 : i64} {
  func.func @_max4_kernel(%arg0: i32, %arg1: memref<16x128xbf16, #tpu.memory_space<vmem>>, %arg2: memref<16x128xbf16, #tpu.memory_space<vmem>>, %arg3: memref<16x128xbf16, #tpu.memory_space<vmem>>, %arg4: memref<16x128xbf16, #tpu.memory_space<vmem>>, %arg5: memref<16x128xbf16, #tpu.memory_space<vmem>>) attributes {dimension_semantics = [#tpu.dimension_semantics<parallel>], iteration_bounds = array<i64: 1>, scalar_prefetch = 0 : i64, scratch_operands = 0 : i64, tpu.core_type = #tpu.core_type<tc>, window_params = [{transform_indices = @transform_0, window_bounds = array<i64: 16, 128>}, {transform_indices = @transform_1, window_bounds = array<i64: 16, 128>}, {transform_indices = @transform_2, window_bounds = array<i64: 16, 128>}, {transform_indices = @transform_3, window_bounds = array<i64: 16, 128>}, {transform_indices = @transform_4, window_bounds = array<i64: 16, 128>}]} {
    %c0 = arith.constant 0 : index
    %c0_0 = arith.constant 0 : index
    %0 = vector.load %arg1[%c0, %c0_0] : memref<16x128xbf16, #tpu.memory_space<vmem>>, vector<16x128xbf16>
    %c0_1 = arith.constant 0 : index
    %c0_2 = arith.constant 0 : index
    %1 = vector.load %arg2[%c0_1, %c0_2] : memref<16x128xbf16, #tpu.memory_space<vmem>>, vector<16x128xbf16>
    %2 = arith.maximumf %0, %1 : vector<16x128xbf16>
    %c0_3 = arith.constant 0 : index
    %c0_4 = arith.constant 0 : index
    %3 = vector.load %arg3[%c0_3, %c0_4] : memref<16x128xbf16, #tpu.memory_space<vmem>>, vector<16x128xbf16>
    %c0_5 = arith.constant 0 : index
    %c0_6 = arith.constant 0 : index
    %4 = vector.load %arg4[%c0_5, %c0_6] : memref<16x128xbf16, #tpu.memory_space<vmem>>, vector<16x128xbf16>
    %5 = arith.maximumf %3, %4 : vector<16x128xbf16>
    %6 = arith.maximumf %2, %5 : vector<16x128xbf16>
    %c0_7 = arith.constant 0 : index
    %c0_8 = arith.constant 0 : index
    %7 = vector.load %arg5[%c0_7, %c0_8] : memref<16x128xbf16, #tpu.memory_space<vmem>>, vector<16x128xbf16>
    tpu.vector_store %arg5[%c0_7, %c0_8], %6 {strides = array<i32>} : memref<16x128xbf16, #tpu.memory_space<vmem>>, vector<16x128xbf16>,
    return
  }
  func.func @transform_0(%arg0: i32) -> (i32, i32) {
    %c0_i32 = arith.constant 0 : i32
    %c0_i32_0 = arith.constant 0 : i32
    return %arg0, %c0_i32 : i32, i32
  }
  func.func @transform_1(%arg0: i32) -> (i32, i32) {
    %c0_i32 = arith.constant 0 : i32
    %c0_i32_0 = arith.constant 0 : i32
    return %arg0, %c0_i32 : i32, i32
  }
  func.func @transform_2(%arg0: i32) -> (i32, i32) {
    %c0_i32 = arith.constant 0 : i32
    %c0_i32_0 = arith.constant 0 : i32
    return %arg0, %c0_i32 : i32, i32
  }
  func.func @transform_3(%arg0: i32) -> (i32, i32) {
    %c0_i32 = arith.constant 0 : i32
    %c0_i32_0 = arith.constant 0 : i32
    return %arg0, %c0_i32 : i32, i32
  }
  func.func @transform_4(%arg0: i32) -> (i32, i32) {
    %c0_i32 = arith.constant 0 : i32
    %c0_i32_0 = arith.constant 0 : i32
    return %arg0, %c0_i32 : i32, i32
  }
}

module attributes {stable_mosaic.version = 11 : i64} {
  func.func @_matmul_bias_kernel(%arg0: i32, %arg1: i32, %arg2: i32, %arg3: memref<16x128xbf16, #tpu.memory_space<vmem>>, %arg4: memref<128x256xbf16, #tpu.memory_space<vmem>>, %arg5: memref<1x256xf32, #tpu.memory_space<vmem>>, %arg6: memref<16x256xbf16, #tpu.memory_space<vmem>>, %arg7: memref<16x256xf32, #tpu.memory_space<vmem>>) attributes {dimension_semantics = [#tpu.dimension_semantics<parallel>, #tpu.dimension_semantics<parallel>, #tpu.dimension_semantics<arbitrary>], iteration_bounds = array<i64: 1, 1, 1>, scalar_prefetch = 0 : i64, scratch_operands = 1 : i64, tpu.core_type = #tpu.core_type<tc>, window_params = [{transform_indices = @transform_0, window_bounds = array<i64: 16, 128>}, {transform_indices = @transform_1, window_bounds = array<i64: 128, 256>}, {transform_indices = @transform_2, window_bounds = array<i64: 1, 256>}, {transform_indices = @transform_3, window_bounds = array<i64: 16, 256>}]} {
    %c0_i32 = arith.constant 0 : i32
    %0 = arith.cmpi eq, %arg2, %c0_i32 : i32
    %1 = arith.extui %0 : i1 to i32
    %c0_i32_0 = arith.constant 0 : i32
    %2 = arith.cmpi ne, %1, %c0_i32_0 : i32
    scf.if %2 {
      %cst_10 = arith.constant 0.000000e+00 : f32
      %12 = vector.broadcast %cst_10 : f32 to vector<16x256xf32>
      %c0_11 = arith.constant 0 : index
      %c0_12 = arith.constant 0 : index
      %13 = vector.load %arg7[%c0_11, %c0_12] : memref<16x256xf32, #tpu.memory_space<vmem>>, vector<16x256xf32>
      tpu.vector_store %arg7[%c0_11, %c0_12], %12 {strides = array<i32>} : memref<16x256xf32, #tpu.memory_space<vmem>>, vector<16x256xf32>,
    } else {
    }
    %c0 = arith.constant 0 : index
    %c0_1 = arith.constant 0 : index
    %3 = vector.load %arg7[%c0, %c0_1] : memref<16x256xf32, #tpu.memory_space<vmem>>, vector<16x256xf32>
    %c0_2 = arith.constant 0 : index
    %c0_3 = arith.constant 0 : index
    %4 = vector.load %arg3[%c0_2, %c0_3] : memref<16x128xbf16, #tpu.memory_space<vmem>>, vector<16x128xbf16>
    %c0_4 = arith.constant 0 : index
    %c0_5 = arith.constant 0 : index
    %5 = vector.load %arg4[%c0_4, %c0_5] : memref<128x256xbf16, #tpu.memory_space<vmem>>, vector<128x256xbf16>
    %cst = arith.constant dense<0.000000e+00> : vector<16x256xf32>
    %6 = tpu.matmul %4, %5, %cst {dimension_numbers = #tpu.dot_dimension_numbers<[1], [0], [0], [1], [0, 0, 1, 1], [], []>} : vector<16x128xbf16>, vector<128x256xbf16>, vector<16x256xf32> -> vector<16x256xf32>
    %7 = arith.addf %3, %6 : vector<16x256xf32>
    %c0_6 = arith.constant 0 : index
    %c0_7 = arith.constant 0 : index
    %8 = vector.load %arg7[%c0_6, %c0_7] : memref<16x256xf32, #tpu.memory_space<vmem>>, vector<16x256xf32>
    tpu.vector_store %arg7[%c0_6, %c0_7], %7 {strides = array<i32>} : memref<16x256xf32, #tpu.memory_space<vmem>>, vector<16x256xf32>,
    %c0_i32_8 = arith.constant 0 : i32
    %9 = arith.cmpi eq, %arg2, %c0_i32_8 : i32
    %10 = arith.extui %9 : i1 to i32
    %c0_i32_9 = arith.constant 0 : i32
    %11 = arith.cmpi ne, %10, %c0_i32_9 : i32
    scf.if %11 {
      %c0_10 = arith.constant 0 : index
      %c0_11 = arith.constant 0 : index
      %12 = vector.load %arg7[%c0_10, %c0_11] : memref<16x256xf32, #tpu.memory_space<vmem>>, vector<16x256xf32>
      %c0_12 = arith.constant 0 : index
      %c0_13 = arith.constant 0 : index
      %13 = vector.load %arg5[%c0_12, %c0_13] : memref<1x256xf32, #tpu.memory_space<vmem>>, vector<1x256xf32>
      %14 = vector.broadcast %13 : vector<1x256xf32> to vector<16x256xf32>
      %15 = arith.addf %12, %14 : vector<16x256xf32>
      %16 = arith.truncf %15 : vector<16x256xf32> to vector<16x256xbf16>
      %c0_14 = arith.constant 0 : index
      %c0_15 = arith.constant 0 : index
      %17 = vector.load %arg6[%c0_14, %c0_15] : memref<16x256xbf16, #tpu.memory_space<vmem>>, vector<16x256xbf16>
      tpu.vector_store %arg6[%c0_14, %c0_15], %16 {strides = array<i32>} : memref<16x256xbf16, #tpu.memory_space<vmem>>, vector<16x256xbf16>,
    } else {
    }
    return
  }
  func.func @transform_0(%arg0: i32, %arg1: i32, %arg2: i32) -> (i32, i32) {
    %c0_i32 = arith.constant 0 : i32
    return %arg0, %arg2 : i32, i32
  }
  func.func @transform_1(%arg0: i32, %arg1: i32, %arg2: i32) -> (i32, i32) {
    %c0_i32 = arith.constant 0 : i32
    return %arg2, %arg1 : i32, i32
  }
  func.func @transform_2(%arg0: i32, %arg1: i32, %arg2: i32) -> (i32, i32) {
    %c0_i32 = arith.constant 0 : i32
    %c0_i32_0 = arith.constant 0 : i32
    return %c0_i32, %arg1 : i32, i32
  }
  func.func @transform_3(%arg0: i32, %arg1: i32, %arg2: i32) -> (i32, i32) {
    %c0_i32 = arith.constant 0 : i32
    return %arg0, %arg1 : i32, i32
  }
}

module attributes {stable_mosaic.version = 11 : i64} {
  func.func @_matmul_bias_kernel(%arg0: i32, %arg1: i32, %arg2: i32, %arg3: memref<16x256xbf16, #tpu.memory_space<vmem>>, %arg4: memref<256x512xbf16, #tpu.memory_space<vmem>>, %arg5: memref<1x512xf32, #tpu.memory_space<vmem>>, %arg6: memref<16x512xf32, #tpu.memory_space<vmem>>, %arg7: memref<16x512xf32, #tpu.memory_space<vmem>>) attributes {dimension_semantics = [#tpu.dimension_semantics<parallel>, #tpu.dimension_semantics<parallel>, #tpu.dimension_semantics<arbitrary>], iteration_bounds = array<i64: 1, 29, 1>, scalar_prefetch = 0 : i64, scratch_operands = 1 : i64, tpu.core_type = #tpu.core_type<tc>, window_params = [{transform_indices = @transform_0, window_bounds = array<i64: 16, 256>}, {transform_indices = @transform_1, window_bounds = array<i64: 256, 512>}, {transform_indices = @transform_2, window_bounds = array<i64: 1, 512>}, {transform_indices = @transform_3, window_bounds = array<i64: 16, 512>}]} {
    %c0_i32 = arith.constant 0 : i32
    %0 = arith.cmpi eq, %arg2, %c0_i32 : i32
    %1 = arith.extui %0 : i1 to i32
    %c0_i32_0 = arith.constant 0 : i32
    %2 = arith.cmpi ne, %1, %c0_i32_0 : i32
    scf.if %2 {
      %cst_10 = arith.constant 0.000000e+00 : f32
      %12 = vector.broadcast %cst_10 : f32 to vector<16x512xf32>
      %c0_11 = arith.constant 0 : index
      %c0_12 = arith.constant 0 : index
      %13 = vector.load %arg7[%c0_11, %c0_12] : memref<16x512xf32, #tpu.memory_space<vmem>>, vector<16x512xf32>
      tpu.vector_store %arg7[%c0_11, %c0_12], %12 {strides = array<i32>} : memref<16x512xf32, #tpu.memory_space<vmem>>, vector<16x512xf32>,
    } else {
    }
    %c0 = arith.constant 0 : index
    %c0_1 = arith.constant 0 : index
    %3 = vector.load %arg7[%c0, %c0_1] : memref<16x512xf32, #tpu.memory_space<vmem>>, vector<16x512xf32>
    %c0_2 = arith.constant 0 : index
    %c0_3 = arith.constant 0 : index
    %4 = vector.load %arg3[%c0_2, %c0_3] : memref<16x256xbf16, #tpu.memory_space<vmem>>, vector<16x256xbf16>
    %c0_4 = arith.constant 0 : index
    %c0_5 = arith.constant 0 : index
    %5 = vector.load %arg4[%c0_4, %c0_5] : memref<256x512xbf16, #tpu.memory_space<vmem>>, vector<256x512xbf16>
    %cst = arith.constant dense<0.000000e+00> : vector<16x512xf32>
    %6 = tpu.matmul %4, %5, %cst {dimension_numbers = #tpu.dot_dimension_numbers<[1], [0], [0], [1], [0, 0, 1, 1], [], []>} : vector<16x256xbf16>, vector<256x512xbf16>, vector<16x512xf32> -> vector<16x512xf32>
    %7 = arith.addf %3, %6 : vector<16x512xf32>
    %c0_6 = arith.constant 0 : index
    %c0_7 = arith.constant 0 : index
    %8 = vector.load %arg7[%c0_6, %c0_7] : memref<16x512xf32, #tpu.memory_space<vmem>>, vector<16x512xf32>
    tpu.vector_store %arg7[%c0_6, %c0_7], %7 {strides = array<i32>} : memref<16x512xf32, #tpu.memory_space<vmem>>, vector<16x512xf32>,
    %c0_i32_8 = arith.constant 0 : i32
    %9 = arith.cmpi eq, %arg2, %c0_i32_8 : i32
    %10 = arith.extui %9 : i1 to i32
    %c0_i32_9 = arith.constant 0 : i32
    %11 = arith.cmpi ne, %10, %c0_i32_9 : i32
    scf.if %11 {
      %c0_10 = arith.constant 0 : index
      %c0_11 = arith.constant 0 : index
      %12 = vector.load %arg7[%c0_10, %c0_11] : memref<16x512xf32, #tpu.memory_space<vmem>>, vector<16x512xf32>
      %c0_12 = arith.constant 0 : index
      %c0_13 = arith.constant 0 : index
      %13 = vector.load %arg5[%c0_12, %c0_13] : memref<1x512xf32, #tpu.memory_space<vmem>>, vector<1x512xf32>
      %14 = vector.broadcast %13 : vector<1x512xf32> to vector<16x512xf32>
      %15 = arith.addf %12, %14 : vector<16x512xf32>
      %c0_14 = arith.constant 0 : index
      %c0_15 = arith.constant 0 : index
      %16 = vector.load %arg6[%c0_14, %c0_15] : memref<16x512xf32, #tpu.memory_space<vmem>>, vector<16x512xf32>
      tpu.vector_store %arg6[%c0_14, %c0_15], %15 {strides = array<i32>} : memref<16x512xf32, #tpu.memory_space<vmem>>, vector<16x512xf32>,
    } else {
    }
    return
  }
  func.func @transform_0(%arg0: i32, %arg1: i32, %arg2: i32) -> (i32, i32) {
    %c0_i32 = arith.constant 0 : i32
    return %arg0, %arg2 : i32, i32
  }
  func.func @transform_1(%arg0: i32, %arg1: i32, %arg2: i32) -> (i32, i32) {
    %c0_i32 = arith.constant 0 : i32
    return %arg2, %arg1 : i32, i32
  }
  func.func @transform_2(%arg0: i32, %arg1: i32, %arg2: i32) -> (i32, i32) {
    %c0_i32 = arith.constant 0 : i32
    %c0_i32_0 = arith.constant 0 : i32
    return %c0_i32, %arg1 : i32, i32
  }
  func.func @transform_3(%arg0: i32, %arg1: i32, %arg2: i32) -> (i32, i32) {
    %c0_i32 = arith.constant 0 : i32
    return %arg0, %arg1 : i32, i32
  }
}

</mosaic_0001>

<llo_original>
// kernel: elevation_convnet_forward.6
$region0: #{elevation_convnet_forward.6}
  #allocation0 [shape = 'u32[]', space=smem, size = 0x4, offset = 0x4, fixed_abs, tag = 'smem constant byte address 0x4 - core index']
  #allocation1 [shape = 'u32[144,128]{1,0:T(1,128)}', space=vmem, size = 0x12000, scoped, tag = 'internal scratch']
  #allocation2 [shape = 'f32[256,128]{1,0:T(8,128)}', space=vmem, size = 0x20000, scoped, tag = 'scratch operand']
  %s0 = inlined_call_operand.vmem [shape: bf16[512,128], index: 0, kind: input, shape index: {}]
  %s1 = inlined_call_operand.vmem [shape: bf16[128,128], index: 1, kind: input, shape index: {}]
  %s2 = inlined_call_operand.vmem [shape: f32[1,128], index: 2, kind: input, shape index: {}]
  %s3 = inlined_call_operand.vmem [shape: bf16[512,128], index: 3, kind: output, shape index: {}]
  %s4 = sld [smem:[#allocation0]]
  $region53: #{elevation_convnet_forward.6} parent=0
    _
  %s6 = ssub.s32 1, %s4
  %s7 = scalar_select 0, %s6, %s4
  loop: start=0, step=1, limit=4
  $region2: #{elevation_convnet_forward.6} parent=0 // loop_pre_header
    _
  $region3: #{elevation_convnet_forward.6} parent=0 // loop_header
    %s9 = sphi 0, %s13
    %p10 = scmp.ge.s32.totalorder %s9, 4
    %s16 = sphi 0, %s35
    %s17 = sphi 0, %s31
    %s18 = sphi 0, %s27
    %s19 = sphi 0, %s16
    %s20 = sphi 0, %s17
    %s21 = sphi 0, %s18
    %s22 = sphi 0, %s19
    %s23 = sphi 0, %s20
    %s24 = sphi 0, %s21
    %s40 = sphi 0, %s42
    %s43 = sphi 0, %s40
    %s44 = sphi 0, %s43
    %s60 = sphi 0, %s44
    %s68 = sphi 0, %s70
    %s71 = sphi 0, %s68
    %s72 = sphi 0, %s71
    %s88 = sphi 0, %s72
    %s94 = sphi 0, %s96
    %s97 = sphi 0, %s94
    %s98 = sphi 0, %s97
    %s114 = sphi 0, %s98
    %s122 = sphi 0, %s124
    %s125 = sphi 0, %s122
    %s126 = sphi 0, %s125
    %s142 = sphi 0, %s126
  $region4: #{elevation_convnet_forward.6} parent=0 // loop_header_branch
    %12 = sbr.rel (%p10) target = $region8
  $region5: #{elevation_convnet_forward.6} parent=0 // loop_body
    %s14 = ssub.s32 %s9, 1
    %s15 = ssub.s32 %s9, 2
    %s25 = sadd.s32 1, %s18
    %p26 = scmp.ge.s32.totalorder %s25, 1
    %s27 = scalar_select %p26, 0, %s25
    %s28 = sadd.s32 1, %s17
    %s29 = scalar_select %p26, %s28, %s17
    %p30 = scmp.ge.s32.totalorder %s29, 1
    %s31 = scalar_select %p30, 0, %s29
    %s32 = sadd.s32 1, %s16
    %s33 = scalar_select %p30, %s32, %s16
    %p34 = scmp.ge.s32.totalorder %s33, 2
    %s35 = scalar_select %p34, 0, %s33
    %s36 = ssub.s32 %s16, %s35
    %s37 = ssub.s32 %s18, %s27
    %s38 = sor.u32 %s36, %s37
    %p39 = scmp.eq.s32.totalorder %s38, 0
    %s41 = sadd.s32 %s40, 1
    %s42 = scalar_select %p39, %s40, %s41
    %p45 = pneg %p39
    %p46 = scmp.eq.s32.totalorder %s9, 1
    %p47 = por %p45, %p46
    %p48 = scmp.ne.s32.totalorder %s40, %s43
    %p49 = scmp.eq.s32.totalorder %s9, 0
    %p50 = por %p48, %p49
    %p51 = scmp.ne.s32.totalorder %s40, %s43
    %p52 = scmp.eq.s32.totalorder %s14, 1
    %p53 = por %p51, %p52
    %p54 = scmp.ne.s32.totalorder %s43, %s44
    %p55 = scmp.eq.s32.totalorder %s14, 0
    %p56 = por %p54, %p55
    %p57 = scmp.ne.s32.totalorder %s43, %s44
    %p58 = scmp.eq.s32.totalorder %s15, 1
    %p59 = por %p57, %p58
    %p61 = scmp.ne.s32.totalorder %s44, %s60
    %p62 = scmp.eq.s32.totalorder %s15, 0
    %p63 = por %p61, %p62
    %s64 = ssub.s32 %s18, %s27
    %s65 = ssub.s32 %s17, %s31
    %s66 = sor.u32 %s64, %s65
    %p67 = scmp.eq.s32.totalorder %s66, 0
    %s69 = sadd.s32 %s68, 1
    %s70 = scalar_select %p67, %s68, %s69
    %p73 = pneg %p67
    %p74 = scmp.eq.s32.totalorder %s9, 1
    %p75 = por %p73, %p74
    %p76 = scmp.ne.s32.totalorder %s68, %s71
    %p77 = scmp.eq.s32.totalorder %s9, 0
    %p78 = por %p76, %p77
    %p79 = scmp.ne.s32.totalorder %s68, %s71
    %p80 = scmp.eq.s32.totalorder %s14, 1
    %p81 = por %p79, %p80
    %p82 = scmp.ne.s32.totalorder %s71, %s72
    %p83 = scmp.eq.s32.totalorder %s14, 0
    %p84 = por %p82, %p83
    %p85 = scmp.ne.s32.totalorder %s71, %s72
    %p86 = scmp.eq.s32.totalorder %s15, 1
    %p87 = por %p85, %p86
    %p89 = scmp.ne.s32.totalorder %s72, %s88
    %p90 = scmp.eq.s32.totalorder %s15, 0
    %p91 = por %p89, %p90
    %s92 = ssub.s32 %s17, %s31
    %p93 = scmp.eq.s32.totalorder %s92, 0
    %s95 = sadd.s32 %s94, 1
    %s96 = scalar_select %p93, %s94, %s95
    %p99 = pneg %p93
    %p100 = scmp.eq.s32.totalorder %s9, 1
    %p101 = por %p99, %p100
    %p102 = scmp.ne.s32.totalorder %s94, %s97
    %p103 = scmp.eq.s32.totalorder %s9, 0
    %p104 = por %p102, %p103
    %p105 = scmp.ne.s32.totalorder %s94, %s97
    %p106 = scmp.eq.s32.totalorder %s14, 1
    %p107 = por %p105, %p106
    %p108 = scmp.ne.s32.totalorder %s97, %s98
    %p109 = scmp.eq.s32.totalorder %s14, 0
    %p110 = por %p108, %p109
    %p111 = scmp.ne.s32.totalorder %s97, %s98
    %p112 = scmp.eq.s32.totalorder %s15, 1
    %p113 = por %p111, %p112
    %p115 = scmp.ne.s32.totalorder %s98, %s114
    %p116 = scmp.eq.s32.totalorder %s15, 0
    %p117 = por %p115, %p116
    %s118 = ssub.s32 %s16, %s35
    %s119 = ssub.s32 %s17, %s31
    %s120 = sor.u32 %s118, %s119
    %p121 = scmp.eq.s32.totalorder %s120, 0
    %s123 = sadd.s32 %s122, 1
    %s124 = scalar_select %p121, %s122, %s123
    %p127 = pneg %p121
    %p128 = scmp.eq.s32.totalorder %s9, 1
    %p129 = por %p127, %p128
    %p130 = scmp.ne.s32.totalorder %s122, %s125
    %p131 = scmp.eq.s32.totalorder %s9, 0
    %p132 = por %p130, %p131
    %p133 = scmp.ne.s32.totalorder %s122, %s125
    %p134 = scmp.eq.s32.totalorder %s14, 1
    %p135 = por %p133, %p134
    %p136 = scmp.ne.s32.totalorder %s125, %s126
    %p137 = scmp.eq.s32.totalorder %s14, 0
    %p138 = por %p136, %p137
    %p139 = scmp.ne.s32.totalorder %s125, %s126
    %p140 = scmp.eq.s32.totalorder %s15, 1
    %p141 = por %p139, %p140
    %p143 = scmp.ne.s32.totalorder %s126, %s142
    %p144 = scmp.eq.s32.totalorder %s15, 0
    %p145 = por %p143, %p144
    %p146 = scmp.le.s32.totalorder 1, %s9
    %p147 = scmp.lt.s32.totalorder %s9, 3
    %p148 = pnand %p146, %p147
    %p149 = pneg %p148
    // Predicated region
    $region9: #{elevation_convnet_forward.6} parent=5 // pred_check
      _
    $region10: #{elevation_convnet_forward.6} parent=5 // pred_check_branch
      %151 = sbr.rel (%p148) target = $region12
    $region11: #{elevation_convnet_forward.6} parent=5 // pred_region
      %s152 = ssub.s32 %s9, 1
      // Predicated region
      $region13: #{elevation_convnet_forward.6} parent=11 // pred_check
        %p153 = pneg %p84
      $region14: #{elevation_convnet_forward.6} parent=11 // pred_check_branch
        %155 = sbr.rel (%p153) target = $region16
      $region15: #{elevation_convnet_forward.6} parent=11 // pred_region
        %s156 = smul.u32 16, %s21
        %p157 = scmp.lt.s32.totalorder %s156, 15
        %s158 = scalar_select %p157, %s156, 15
        %p159 = scmp.lt.s32.totalorder %s20, 0
        %s160 = scalar_select %p159, %s20, 0
        %s161 = sadd.s32 %s160, %s158
        %s162 = smul.addr %s161, 4
        %s163 = scalar_lea.vmem %s1, %s162
        %s164 = smul.u32 16, %s21
      $region16: #{elevation_convnet_forward.6} parent=11 // pred_fallthru
        _
      // Predicated region
      $region17: #{elevation_convnet_forward.6} parent=11 // pred_check
        %p165 = pneg %p110
      $region18: #{elevation_convnet_forward.6} parent=11 // pred_check_branch
        %167 = sbr.rel (%p165) target = $region20
      $region19: #{elevation_convnet_forward.6} parent=11 // pred_region
        %p168 = scmp.lt.s32.totalorder %s20, 0
        %s169 = scalar_select %p168, %s20, 0
        %s170 = scalar_lea.vmem %s2, %s169
      $region20: #{elevation_convnet_forward.6} parent=11 // pred_fallthru
        _
    $region12: #{elevation_convnet_forward.6} parent=5 // pred_fallthru
      _
    %p171 = scmp.lt.s32.totalorder %s9, 2
    // Predicated region
    $region21: #{elevation_convnet_forward.6} parent=5 // pred_check
      %p172 = pneg %p171
    $region22: #{elevation_convnet_forward.6} parent=5 // pred_check_branch
      %174 = sbr.rel (%p172) target = $region24
    $region23: #{elevation_convnet_forward.6} parent=5 // pred_region
      // Predicated region
      $region25: #{elevation_convnet_forward.6} parent=23 // pred_check
        %p175 = pneg %p50
      $region26: #{elevation_convnet_forward.6} parent=23 // pred_check_branch
        %177 = sbr.rel (%p175) target = $region28
      $region27: #{elevation_convnet_forward.6} parent=23 // pred_region
        %s178 = smul.u32 32, %s16
        %p179 = scmp.lt.s32.totalorder %s178, 63
        %s180 = scalar_select %p179, %s178, 63
        %p181 = scmp.lt.s32.totalorder %s18, 0
        %s182 = scalar_select %p181, %s18, 0
        %s183 = sadd.s32 %s182, %s180
        %s184 = smul.addr %s183, 4
        %s185 = scalar_lea.vmem %s0, %s184
        %s186 = smul.u32 32, %s16
      $region28: #{elevation_convnet_forward.6} parent=23 // pred_fallthru
        _
    $region24: #{elevation_convnet_forward.6} parent=5 // pred_fallthru
      _
    %p187 = scmp.le.s32.totalorder 1, %s9
    %p188 = scmp.lt.s32.totalorder %s9, 3
    %p189 = pnand %p187, %p188
    %p190 = pneg %p189
    // Predicated region
    $region29: #{elevation_convnet_forward.6} parent=5 // pred_check
      _
    $region30: #{elevation_convnet_forward.6} parent=5 // pred_check_branch
      %192 = sbr.rel (%p189) target = $region32
    $region31: #{elevation_convnet_forward.6} parent=5 // pred_region
      %s193 = ssub.s32 %s9, 1
      %s194 = smul.u32 32, %s19
      %p195 = scmp.lt.s32.totalorder %s194, 63
      %s196 = scalar_select %p195, %s194, 63
      %p197 = scmp.lt.s32.totalorder %s21, 0
      %s198 = scalar_select %p197, %s21, 0
      %s199 = sadd.s32 %s198, %s196
      %s200 = smul.addr %s199, 4
      %s201 = scalar_lea.vmem %s0, %s200
      %p202 = pneg %p56
      %p203 = pneg %p53
      %s204 = smul.u32 16, %s21
      %p205 = scmp.lt.s32.totalorder %s204, 15
      %s206 = scalar_select %p205, %s204, 15
      %p207 = scmp.lt.s32.totalorder %s20, 0
      %s208 = scalar_select %p207, %s20, 0
      %s209 = sadd.s32 %s208, %s206
      %s210 = smul.addr %s209, 4
      %s211 = scalar_lea.vmem %s1, %s210
      %p212 = pneg %p84
      %p213 = pneg %p81
      %p214 = scmp.lt.s32.totalorder %s20, 0
      %s215 = scalar_select %p214, %s20, 0
      %s216 = scalar_lea.vmem %s2, %s215
      %p217 = pneg %p110
      %p218 = pneg %p107
      %p219 = pneg %p138
      %p220 = pneg %p135
      %s221 = smul.u32 32, %s19
      %p222 = scmp.lt.s32.totalorder %s221, 63
      %s223 = scalar_select %p222, %s221, 63
      %p224 = scmp.lt.s32.totalorder %s20, 0
      %s225 = scalar_select %p224, %s20, 0
      %s226 = sadd.s32 %s225, %s223
      %s227 = smul.addr %s226, 4
      %s228 = scalar_lea.vmem %s3, %s227
      %s229 = smul.u32 32, %s19
      %p230 = scmp.lt.s32.totalorder %s229, 63
      %s231 = scalar_select %p230, %s229, 63
      %p232 = scmp.lt.s32.totalorder %s21, 0
      %s233 = scalar_select %p232, %s21, 0
      %s234 = sadd.s32 %s233, %s231
      %s235 = smul.addr %s234, 4
      %s236 = scalar_lea.vmem %s0, %s235
      %s237 = smul.u32 32, %s19
      %s238 = smul.u32 16, %s21
      %p239 = scmp.lt.s32.totalorder %s238, 15
      %s240 = scalar_select %p239, %s238, 15
      %p241 = scmp.lt.s32.totalorder %s20, 0
      %s242 = scalar_select %p241, %s20, 0
      %s243 = sadd.s32 %s242, %s240
      %s244 = smul.addr %s243, 4
      %s245 = scalar_lea.vmem %s1, %s244
      %s246 = smul.u32 16, %s21
      %p247 = scmp.lt.s32.totalorder %s20, 0
      %s248 = scalar_select %p247, %s20, 0
      %s249 = scalar_lea.vmem %s2, %s248
      %s250 = smul.u32 32, %s19
      %p251 = scmp.lt.s32.totalorder %s250, 63
      %s252 = scalar_select %p251, %s250, 63
      %p253 = scmp.lt.s32.totalorder %s20, 0
      %s254 = scalar_select %p253, %s20, 0
      %s255 = sadd.s32 %s254, %s252
      %s256 = smul.addr %s255, 4
      %s257 = scalar_lea.vmem %s3, %s256
      %s258 = smul.u32 32, %s19
      %p260 = scmp.eq.s32.totalorder %s21, 0
      // Predicated region
      $region33: #{elevation_convnet_forward.6} parent=31 // pred_check
        %p261 = pneg %p260
      $region34: #{elevation_convnet_forward.6} parent=31 // pred_check_branch
        %263 = sbr.rel (%p261) target = $region36
      $region35: #{elevation_convnet_forward.6} parent=31 // pred_region
        %264 = vst [vmem:[#allocation2] sm:$0xff] 0.0
        %265 = vst [vmem:[#allocation2 + $0x8] sm:$0xff] 0.0
        %266 = vst [vmem:[#allocation2 + $0x10] sm:$0xff] 0.0
        %267 = vst [vmem:[#allocation2 + $0x18] sm:$0xff] 0.0
        %268 = vst [vmem:[#allocation2 + $0x20] sm:$0xff] 0.0
        %269 = vst [vmem:[#allocation2 + $0x28] sm:$0xff] 0.0
        %270 = vst [vmem:[#allocation2 + $0x30] sm:$0xff] 0.0
        %271 = vst [vmem:[#allocation2 + $0x38] sm:$0xff] 0.0
        %272 = vst [vmem:[#allocation2 + $0x40] sm:$0xff] 0.0
        %273 = vst [vmem:[#allocation2 + $0x48] sm:$0xff] 0.0
        %274 = vst [vmem:[#allocation2 + $0x50] sm:$0xff] 0.0
        %275 = vst [vmem:[#allocation2 + $0x58] sm:$0xff] 0.0
        %276 = vst [vmem:[#allocation2 + $0x60] sm:$0xff] 0.0
        %277 = vst [vmem:[#allocation2 + $0x68] sm:$0xff] 0.0
        %278 = vst [vmem:[#allocation2 + $0x70] sm:$0xff] 0.0
        %279 = vst [vmem:[#allocation2 + $0x78] sm:$0xff] 0.0
        %280 = vst [vmem:[#allocation2 + $0x80] sm:$0xff] 0.0
        %281 = vst [vmem:[#allocation2 + $0x88] sm:$0xff] 0.0
        %282 = vst [vmem:[#allocation2 + $0x90] sm:$0xff] 0.0
        %283 = vst [vmem:[#allocation2 + $0x98] sm:$0xff] 0.0
        %284 = vst [vmem:[#allocation2 + $0xa0] sm:$0xff] 0.0
        %285 = vst [vmem:[#allocation2 + $0xa8] sm:$0xff] 0.0
        %286 = vst [vmem:[#allocation2 + $0xb0] sm:$0xff] 0.0
        %287 = vst [vmem:[#allocation2 + $0xb8] sm:$0xff] 0.0
        %288 = vst [vmem:[#allocation2 + $0xc0] sm:$0xff] 0.0
        %289 = vst [vmem:[#allocation2 + $0xc8] sm:$0xff] 0.0
        %290 = vst [vmem:[#allocation2 + $0xd0] sm:$0xff] 0.0
        %291 = vst [vmem:[#allocation2 + $0xd8] sm:$0xff] 0.0
        %292 = vst [vmem:[#allocation2 + $0xe0] sm:$0xff] 0.0
        %293 = vst [vmem:[#allocation2 + $0xe8] sm:$0xff] 0.0
        %294 = vst [vmem:[#allocation2 + $0xf0] sm:$0xff] 0.0
        %295 = vst [vmem:[#allocation2 + $0xf8] sm:$0xff] 0.0
      $region36: #{elevation_convnet_forward.6} parent=31 // pred_fallthru
        _
      %v296 = vld [vmem:[#allocation2] sm:$0xff]
      %v297 = vld [vmem:[#allocation2 + $0x8] sm:$0xff]
      %v298 = vld [vmem:[#allocation2 + $0x10] sm:$0xff]
      %v299 = vld [vmem:[#allocation2 + $0x18] sm:$0xff]
      %v300 = vld [vmem:[#allocation2 + $0x20] sm:$0xff]
      %v301 = vld [vmem:[#allocation2 + $0x28] sm:$0xff]
      %v302 = vld [vmem:[#allocation2 + $0x30] sm:$0xff]
      %v303 = vld [vmem:[#allocation2 + $0x38] sm:$0xff]
      %v304 = vld [vmem:[#allocation2 + $0x40] sm:$0xff]
      %v305 = vld [vmem:[#allocation2 + $0x48] sm:$0xff]
      %v306 = vld [vmem:[#allocation2 + $0x50] sm:$0xff]
      %v307 = vld [vmem:[#allocation2 + $0x58] sm:$0xff]
      %v308 = vld [vmem:[#allocation2 + $0x60] sm:$0xff]
      %v309 = vld [vmem:[#allocation2 + $0x68] sm:$0xff]
      %v310 = vld [vmem:[#allocation2 + $0x70] sm:$0xff]
      %v311 = vld [vmem:[#allocation2 + $0x78] sm:$0xff]
      %v312 = vld [vmem:[#allocation2 + $0x80] sm:$0xff]
      %v313 = vld [vmem:[#allocation2 + $0x88] sm:$0xff]
      %v314 = vld [vmem:[#allocation2 + $0x90] sm:$0xff]
      %v315 = vld [vmem:[#allocation2 + $0x98] sm:$0xff]
      %v316 = vld [vmem:[#allocation2 + $0xa0] sm:$0xff]
      %v317 = vld [vmem:[#allocation2 + $0xa8] sm:$0xff]
      %v318 = vld [vmem:[#allocation2 + $0xb0] sm:$0xff]
      %v319 = vld [vmem:[#allocation2 + $0xb8] sm:$0xff]
      %v320 = vld [vmem:[#allocation2 + $0xc0] sm:$0xff]
      %v321 = vld [vmem:[#allocation2 + $0xc8] sm:$0xff]
      %v322 = vld [vmem:[#allocation2 + $0xd0] sm:$0xff]
      %v323 = vld [vmem:[#allocation2 + $0xd8] sm:$0xff]
      %v324 = vld [vmem:[#allocation2 + $0xe0] sm:$0xff]
      %v325 = vld [vmem:[#allocation2 + $0xe8] sm:$0xff]
      %v326 = vld [vmem:[#allocation2 + $0xf0] sm:$0xff]
      %v327 = vld [vmem:[#allocation2 + $0xf8] sm:$0xff]
      %v328 = vld [vmem:[%s236] sm:$0xf]
      %v329 = vld [vmem:[%s236 + $0x4] sm:$0xf]
      %v330 = vld [vmem:[%s236 + $0x8] sm:$0xf]
      %v331 = vld [vmem:[%s236 + $0xc] sm:$0xf]
      %v332 = vld [vmem:[%s236 + $0x10] sm:$0xf]
      %v333 = vld [vmem:[%s236 + $0x14] sm:$0xf]
      %v334 = vld [vmem:[%s236 + $0x18] sm:$0xf]
      %v335 = vld [vmem:[%s236 + $0x1c] sm:$0xf]
      %v336 = vld [vmem:[%s236 + $0x20] sm:$0xf]
      %v337 = vld [vmem:[%s236 + $0x24] sm:$0xf]
      %v338 = vld [vmem:[%s236 + $0x28] sm:$0xf]
      %v339 = vld [vmem:[%s236 + $0x2c] sm:$0xf]
      %v340 = vld [vmem:[%s236 + $0x30] sm:$0xf]
      %v341 = vld [vmem:[%s236 + $0x34] sm:$0xf]
      %v342 = vld [vmem:[%s236 + $0x38] sm:$0xf]
      %v343 = vld [vmem:[%s236 + $0x3c] sm:$0xf]
      %v344 = vld [vmem:[%s236 + $0x40] sm:$0xf]
      %v345 = vld [vmem:[%s236 + $0x44] sm:$0xf]
      %v346 = vld [vmem:[%s236 + $0x48] sm:$0xf]
      %v347 = vld [vmem:[%s236 + $0x4c] sm:$0xf]
      %v348 = vld [vmem:[%s236 + $0x50] sm:$0xf]
      %v349 = vld [vmem:[%s236 + $0x54] sm:$0xf]
      %v350 = vld [vmem:[%s236 + $0x58] sm:$0xf]
      %v351 = vld [vmem:[%s236 + $0x5c] sm:$0xf]
      %v352 = vld [vmem:[%s236 + $0x60] sm:$0xf]
      %v353 = vld [vmem:[%s236 + $0x64] sm:$0xf]
      %v354 = vld [vmem:[%s236 + $0x68] sm:$0xf]
      %v355 = vld [vmem:[%s236 + $0x6c] sm:$0xf]
      %v356 = vld [vmem:[%s236 + $0x70] sm:$0xf]
      %v357 = vld [vmem:[%s236 + $0x74] sm:$0xf]
      %v358 = vld [vmem:[%s236 + $0x78] sm:$0xf]
      %v359 = vld [vmem:[%s236 + $0x7c] sm:$0xf]
      %v360 = vld [vmem:[%s245] sm:$0xf]
      %v361 = vld [vmem:[%s245 + $0x4] sm:$0xf]
      %v362 = vld [vmem:[%s245 + $0x8] sm:$0xf]
      %v363 = vld [vmem:[%s245 + $0xc] sm:$0xf]
      %v364 = vld [vmem:[%s245 + $0x10] sm:$0xf]
      %v365 = vld [vmem:[%s245 + $0x14] sm:$0xf]
      %v366 = vld [vmem:[%s245 + $0x18] sm:$0xf]
      %v367 = vld [vmem:[%s245 + $0x1c] sm:$0xf]
      %v368 = vld [vmem:[%s245 + $0x20] sm:$0xf]
      %v369 = vld [vmem:[%s245 + $0x24] sm:$0xf]
      %v370 = vld [vmem:[%s245 + $0x28] sm:$0xf]
      %v371 = vld [vmem:[%s245 + $0x2c] sm:$0xf]
      %v372 = vld [vmem:[%s245 + $0x30] sm:$0xf]
      %v373 = vld [vmem:[%s245 + $0x34] sm:$0xf]
      %v374 = vld [vmem:[%s245 + $0x38] sm:$0xf]
      %v375 = vld [vmem:[%s245 + $0x3c] sm:$0xf]
      %v408 = vunpack.c.l.b16 %v328
      %v409 = vunpack.c.l.b16 %v329
      %v410 = vunpack.c.l.b16 %v330
      %v411 = vunpack.c.l.b16 %v331
      %v412 = vunpack.c.l.b16 %v332
      %v413 = vunpack.c.l.b16 %v333
      %v414 = vunpack.c.l.b16 %v334
      %v415 = vunpack.c.l.b16 %v335
      %v416 = vunpack.c.l.b16 %v336
      %v417 = vunpack.c.l.b16 %v337
      %v418 = vunpack.c.l.b16 %v338
      %v419 = vunpack.c.l.b16 %v339
      %v420 = vunpack.c.l.b16 %v340
      %v421 = vunpack.c.l.b16 %v341
      %v422 = vunpack.c.l.b16 %v342
      %v423 = vunpack.c.l.b16 %v343
      %v424 = vunpack.c.l.b16 %v344
      %v425 = vunpack.c.l.b16 %v345
      %v426 = vunpack.c.l.b16 %v346
      %v427 = vunpack.c.l.b16 %v347
      %v428 = vunpack.c.l.b16 %v348
      %v429 = vunpack.c.l.b16 %v349
      %v430 = vunpack.c.l.b16 %v350
      %v431 = vunpack.c.l.b16 %v351
      %v432 = vunpack.c.l.b16 %v352
      %v433 = vunpack.c.l.b16 %v353
      %v434 = vunpack.c.l.b16 %v354
      %v435 = vunpack.c.l.b16 %v355
      %v436 = vunpack.c.l.b16 %v356
      %v437 = vunpack.c.l.b16 %v357
      %v438 = vunpack.c.l.b16 %v358
      %v439 = vunpack.c.l.b16 %v359
      %v440 = vpack.c.b16 %v409, %v408
      %v441 = vpack.c.b16 %v411, %v410
      %v442 = vpack.c.b16 %v413, %v412
      %v443 = vpack.c.b16 %v415, %v414
      %v444 = vpack.c.b16 %v417, %v416
      %v445 = vpack.c.b16 %v419, %v418
      %v446 = vpack.c.b16 %v421, %v420
      %v447 = vpack.c.b16 %v423, %v422
      %v448 = vpack.c.b16 %v425, %v424
      %v449 = vpack.c.b16 %v427, %v426
      %v450 = vpack.c.b16 %v429, %v428
      %v451 = vpack.c.b16 %v431, %v430
      %v452 = vpack.c.b16 %v433, %v432
      %v453 = vpack.c.b16 %v435, %v434
      %v454 = vpack.c.b16 %v437, %v436
      %v455 = vpack.c.b16 %v439, %v438
      %v488 = vunpack.c.l.b16 %v360
      %v489 = vunpack.c.l.b16 %v361
      %v490 = vunpack.c.l.b16 %v362
      %v491 = vunpack.c.l.b16 %v363
      %v492 = vunpack.c.l.b16 %v364
      %v493 = vunpack.c.l.b16 %v365
      %v494 = vunpack.c.l.b16 %v366
      %v495 = vunpack.c.l.b16 %v367
      %v496 = vunpack.c.l.b16 %v368
      %v497 = vunpack.c.l.b16 %v369
      %v498 = vunpack.c.l.b16 %v370
      %v499 = vunpack.c.l.b16 %v371
      %v500 = vunpack.c.l.b16 %v372
      %v501 = vunpack.c.l.b16 %v373
      %v502 = vunpack.c.l.b16 %v374
      %v503 = vunpack.c.l.b16 %v375
      %v504 = vpack.c.b16 %v489, %v488
      %v505 = vpack.c.b16 %v491, %v490
      %v506 = vpack.c.b16 %v493, %v492
      %v507 = vpack.c.b16 %v495, %v494
      %v508 = vpack.c.b16 %v497, %v496
      %v509 = vpack.c.b16 %v499, %v498
      %v510 = vpack.c.b16 %v501, %v500
      %v511 = vpack.c.b16 %v503, %v502
      %520 = vmatprep.subr.bf16.mxu0 0
      %521 = vmatpush1.bf16.msra.mxu0 %v504
      %522 = vmatprep.subr.bf16.mxu0 0
      %523 = vmatpush1.bf16.msra.mxu0 %v505
      %524 = vmatprep.subr.bf16.mxu0 0
      %525 = vmatpush1.bf16.msra.mxu0 %v506
      %526 = vmatprep.subr.bf16.mxu0 0
      %527 = vmatpush1.bf16.msra.mxu0 %v507
      %528 = vmatprep.subr.bf16.mxu0 0
      %529 = vmatpush1.bf16.msra.mxu0 %v508
      %530 = vmatprep.subr.bf16.mxu0 0
      %531 = vmatpush1.bf16.msra.mxu0 %v509
      %532 = vmatprep.subr.bf16.mxu0 0
      %533 = vmatpush1.bf16.msra.mxu0 %v510
      %534 = vmatprep.subr.bf16.mxu0 0
      %535 = vmatpush1.bf16.msra.mxu0 %v511
      %536 = vmatprep.subr.bf16.mxu0 0
      %537 = vmatpush1.bf16.msra.mxu0 0
      %538 = vmatprep.subr.bf16.mxu0 0
      %539 = vmatpush1.bf16.msra.mxu0 0
      %540 = vmatprep.subr.bf16.mxu0 0
      %541 = vmatpush1.bf16.msra.mxu0 0
      %542 = vmatprep.subr.bf16.mxu0 0
      %543 = vmatpush1.bf16.msra.mxu0 0
      %544 = vmatprep.subr.bf16.mxu0 0
      %545 = vmatpush1.bf16.msra.mxu0 0
      %546 = vmatprep.subr.bf16.mxu0 0
      %547 = vmatpush1.bf16.msra.mxu0 0
      %548 = vmatprep.subr.bf16.mxu0 0
      %549 = vmatpush1.bf16.msra.mxu0 0
      %550 = vmatprep.subr.bf16.mxu0 0
      %551 = vmatpush1.bf16.msra.mxu0 0
      %552 = vmatprep.mubr.bf16.mxu0 0
      %553 = vmatmul.mubr.bf16.gmra.mrb[0].mxu0 %v440
      %v554 = vpop.f32.mrb[0].mxu0
      %v555 = vadd.f32 0.0, %v554
      %v556 = vpop.f32.mrb[0].mxu0
      %v557 = vpop.f32.mrb[0].mxu0
      %v558 = vadd.f32 0.0, %v557
      %v559 = vpop.f32.mrb[0].mxu0
      %560 = vmatprep.mubr.bf16.mxu0 0
      %561 = vmatmul.mubr.bf16.gmra.mrb[0].mxu0 %v441
      %v562 = vpop.f32.mrb[0].mxu0
      %v563 = vadd.f32 0.0, %v562
      %v564 = vpop.f32.mrb[0].mxu0
      %v565 = vpop.f32.mrb[0].mxu0
      %v566 = vadd.f32 0.0, %v565
      %v567 = vpop.f32.mrb[0].mxu0
      %568 = vmatprep.mubr.bf16.mxu0 0
      %569 = vmatmul.mubr.bf16.gmra.mrb[0].mxu0 %v442
      %v570 = vpop.f32.mrb[0].mxu0
      %v571 = vadd.f32 0.0, %v570
      %v572 = vpop.f32.mrb[0].mxu0
      %v573 = vpop.f32.mrb[0].mxu0
      %v574 = vadd.f32 0.0, %v573
      %v575 = vpop.f32.mrb[0].mxu0
      %576 = vmatprep.mubr.bf16.mxu0 0
      %577 = vmatmul.mubr.bf16.gmra.mrb[0].mxu0 %v443
      %v578 = vpop.f32.mrb[0].mxu0
      %v579 = vadd.f32 0.0, %v578
      %v580 = vpop.f32.mrb[0].mxu0
      %v581 = vpop.f32.mrb[0].mxu0
      %v582 = vadd.f32 0.0, %v581
      %v583 = vpop.f32.mrb[0].mxu0
      %584 = vmatprep.mubr.bf16.mxu0 0
      %585 = vmatmul.mubr.bf16.gmra.mrb[0].mxu0 %v444
      %v586 = vpop.f32.mrb[0].mxu0
      %v587 = vadd.f32 0.0, %v586
      %v588 = vpop.f32.mrb[0].mxu0
      %v589 = vpop.f32.mrb[0].mxu0
      %v590 = vadd.f32 0.0, %v589
      %v591 = vpop.f32.mrb[0].mxu0
      %592 = vmatprep.mubr.bf16.mxu0 0
      %593 = vmatmul.mubr.bf16.gmra.mrb[0].mxu0 %v445
      %v594 = vpop.f32.mrb[0].mxu0
      %v595 = vadd.f32 0.0, %v594
      %v596 = vpop.f32.mrb[0].mxu0
      %v597 = vpop.f32.mrb[0].mxu0
      %v598 = vadd.f32 0.0, %v597
      %v599 = vpop.f32.mrb[0].mxu0
      %600 = vmatprep.mubr.bf16.mxu0 0
      %601 = vmatmul.mubr.bf16.gmra.mrb[0].mxu0 %v446
      %v602 = vpop.f32.mrb[0].mxu0
      %v603 = vadd.f32 0.0, %v602
      %v604 = vpop.f32.mrb[0].mxu0
      %v605 = vpop.f32.mrb[0].mxu0
      %v606 = vadd.f32 0.0, %v605
      %v607 = vpop.f32.mrb[0].mxu0
      %608 = vmatprep.mubr.bf16.mxu0 0
      %609 = vmatmul.mubr.bf16.gmra.mrb[0].mxu0 %v447
      %v610 = vpop.f32.mrb[0].mxu0
      %v611 = vadd.f32 0.0, %v610
      %v612 = vpop.f32.mrb[0].mxu0
      %v613 = vpop.f32.mrb[0].mxu0
      %v614 = vadd.f32 0.0, %v613
      %v615 = vpop.f32.mrb[0].mxu0
      %616 = vmatprep.mubr.bf16.mxu0 0
      %617 = vmatmul.mubr.bf16.gmra.mrb[0].mxu0 %v448
      %v618 = vpop.f32.mrb[0].mxu0
      %v619 = vadd.f32 0.0, %v618
      %v620 = vpop.f32.mrb[0].mxu0
      %v621 = vpop.f32.mrb[0].mxu0
      %v622 = vadd.f32 0.0, %v621
      %v623 = vpop.f32.mrb[0].mxu0
      %624 = vmatprep.mubr.bf16.mxu0 0
      %625 = vmatmul.mubr.bf16.gmra.mrb[0].mxu0 %v449
      %v626 = vpop.f32.mrb[0].mxu0
      %v627 = vadd.f32 0.0, %v626
      %v628 = vpop.f32.mrb[0].mxu0
      %v629 = vpop.f32.mrb[0].mxu0
      %v630 = vadd.f32 0.0, %v629
      %v631 = vpop.f32.mrb[0].mxu0
      %632 = vmatprep.mubr.bf16.mxu0 0
      %633 = vmatmul.mubr.bf16.gmra.mrb[0].mxu0 %v450
      %v634 = vpop.f32.mrb[0].mxu0
      %v635 = vadd.f32 0.0, %v634
      %v636 = vpop.f32.mrb[0].mxu0
      %v637 = vpop.f32.mrb[0].mxu0
      %v638 = vadd.f32 0.0, %v637
      %v639 = vpop.f32.mrb[0].mxu0
      %640 = vmatprep.mubr.bf16.mxu0 0
      %641 = vmatmul.mubr.bf16.gmra.mrb[0].mxu0 %v451
      %v642 = vpop.f32.mrb[0].mxu0
      %v643 = vadd.f32 0.0, %v642
      %v644 = vpop.f32.mrb[0].mxu0
      %v645 = vpop.f32.mrb[0].mxu0
      %v646 = vadd.f32 0.0, %v645
      %v647 = vpop.f32.mrb[0].mxu0
      %648 = vmatprep.mubr.bf16.mxu0 0
      %649 = vmatmul.mubr.bf16.gmra.mrb[0].mxu0 %v452
      %v650 = vpop.f32.mrb[0].mxu0
      %v651 = vadd.f32 0.0, %v650
      %v652 = vpop.f32.mrb[0].mxu0
      %v653 = vpop.f32.mrb[0].mxu0
      %v654 = vadd.f32 0.0, %v653
      %v655 = vpop.f32.mrb[0].mxu0
      %656 = vmatprep.mubr.bf16.mxu0 0
      %657 = vmatmul.mubr.bf16.gmra.mrb[0].mxu0 %v453
      %v658 = vpop.f32.mrb[0].mxu0
      %v659 = vadd.f32 0.0, %v658
      %v660 = vpop.f32.mrb[0].mxu0
      %v661 = vpop.f32.mrb[0].mxu0
      %v662 = vadd.f32 0.0, %v661
      %v663 = vpop.f32.mrb[0].mxu0
      %664 = vmatprep.mubr.bf16.mxu0 0
      %665 = vmatmul.mubr.bf16.gmra.mrb[0].mxu0 %v454
      %v666 = vpop.f32.mrb[0].mxu0
      %v667 = vadd.f32 0.0, %v666
      %v668 = vpop.f32.mrb[0].mxu0
      %v669 = vpop.f32.mrb[0].mxu0
      %v670 = vadd.f32 0.0, %v669
      %v671 = vpop.f32.mrb[0].mxu0
      %672 = vmatprep.mubr.bf16.mxu0 0
      %673 = vmatmul.mubr.bf16.gmra.mrb[0].mxu0 %v455
      %v674 = vpop.f32.mrb[0].mxu0
      %v675 = vadd.f32 0.0, %v674
      %v676 = vpop.f32.mrb[0].mxu0
      %v677 = vpop.f32.mrb[0].mxu0
      %v678 = vadd.f32 0.0, %v677
      %v679 = vpop.f32.mrb[0].mxu0
      %680 = vdwg.mxu0
      %v681 = vadd.f32 %v296, %v555
      %v682 = vadd.f32 %v297, %v558
      %v683 = vadd.f32 %v298, %v563
      %v684 = vadd.f32 %v299, %v566
      %v685 = vadd.f32 %v300, %v571
      %v686 = vadd.f32 %v301, %v574
      %v687 = vadd.f32 %v302, %v579
      %v688 = vadd.f32 %v303, %v582
      %v689 = vadd.f32 %v304, %v587
      %v690 = vadd.f32 %v305, %v590
      %v691 = vadd.f32 %v306, %v595
      %v692 = vadd.f32 %v307, %v598
      %v693 = vadd.f32 %v308, %v603
      %v694 = vadd.f32 %v309, %v606
      %v695 = vadd.f32 %v310, %v611
      %v696 = vadd.f32 %v311, %v614
      %v697 = vadd.f32 %v312, %v619
      %v698 = vadd.f32 %v313, %v622
      %v699 = vadd.f32 %v314, %v627
      %v700 = vadd.f32 %v315, %v630
      %v701 = vadd.f32 %v316, %v635
      %v702 = vadd.f32 %v317, %v638
      %v703 = vadd.f32 %v318, %v643
      %v704 = vadd.f32 %v319, %v646
      %v705 = vadd.f32 %v320, %v651
      %v706 = vadd.f32 %v321, %v654
      %v707 = vadd.f32 %v322, %v659
      %v708 = vadd.f32 %v323, %v662
      %v709 = vadd.f32 %v324, %v667
      %v710 = vadd.f32 %v325, %v670
      %v711 = vadd.f32 %v326, %v675
      %v712 = vadd.f32 %v327, %v678
      %713 = vst [vmem:[#allocation2] sm:$0xff] %v681
      %714 = vst [vmem:[#allocation2 + $0x8] sm:$0xff] %v682
      %715 = vst [vmem:[#allocation2 + $0x10] sm:$0xff] %v683
      %716 = vst [vmem:[#allocation2 + $0x18] sm:$0xff] %v684
      %717 = vst [vmem:[#allocation2 + $0x20] sm:$0xff] %v685
      %718 = vst [vmem:[#allocation2 + $0x28] sm:$0xff] %v686
      %719 = vst [vmem:[#allocation2 + $0x30] sm:$0xff] %v687
      %720 = vst [vmem:[#allocation2 + $0x38] sm:$0xff] %v688
      %721 = vst [vmem:[#allocation2 + $0x40] sm:$0xff] %v689
      %722 = vst [vmem:[#allocation2 + $0x48] sm:$0xff] %v690
      %723 = vst [vmem:[#allocation2 + $0x50] sm:$0xff] %v691
      %724 = vst [vmem:[#allocation2 + $0x58] sm:$0xff] %v692
      %725 = vst [vmem:[#allocation2 + $0x60] sm:$0xff] %v693
      %726 = vst [vmem:[#allocation2 + $0x68] sm:$0xff] %v694
      %727 = vst [vmem:[#allocation2 + $0x70] sm:$0xff] %v695
      %728 = vst [vmem:[#allocation2 + $0x78] sm:$0xff] %v696
      %729 = vst [vmem:[#allocation2 + $0x80] sm:$0xff] %v697
      %730 = vst [vmem:[#allocation2 + $0x88] sm:$0xff] %v698
      %731 = vst [vmem:[#allocation2 + $0x90] sm:$0xff] %v699
      %732 = vst [vmem:[#allocation2 + $0x98] sm:$0xff] %v700
      %733 = vst [vmem:[#allocation2 + $0xa0] sm:$0xff] %v701
      %734 = vst [vmem:[#allocation2 + $0xa8] sm:$0xff] %v702
      %735 = vst [vmem:[#allocation2 + $0xb0] sm:$0xff] %v703
      %736 = vst [vmem:[#allocation2 + $0xb8] sm:$0xff] %v704
      %737 = vst [vmem:[#allocation2 + $0xc0] sm:$0xff] %v705
      %738 = vst [vmem:[#allocation2 + $0xc8] sm:$0xff] %v706
      %739 = vst [vmem:[#allocation2 + $0xd0] sm:$0xff] %v707
      %740 = vst [vmem:[#allocation2 + $0xd8] sm:$0xff] %v708
      %741 = vst [vmem:[#allocation2 + $0xe0] sm:$0xff] %v709
      %742 = vst [vmem:[#allocation2 + $0xe8] sm:$0xff] %v710
      %743 = vst [vmem:[#allocation2 + $0xf0] sm:$0xff] %v711
      %744 = vst [vmem:[#allocation2 + $0xf8] sm:$0xff] %v712
      // Predicated region
      $region37: #{elevation_convnet_forward.6} parent=31 // pred_check
        %p745 = pneg %p260
      $region38: #{elevation_convnet_forward.6} parent=31 // pred_check_branch
        %747 = sbr.rel (%p745) target = $region40
      $region39: #{elevation_convnet_forward.6} parent=31 // pred_region
        %v748 = vld [vmem:[#allocation2] sm:$0xff]
        %v749 = vld [vmem:[#allocation2 + $0x8] sm:$0xff]
        %v750 = vld [vmem:[#allocation2 + $0x10] sm:$0xff]
        %v751 = vld [vmem:[#allocation2 + $0x18] sm:$0xff]
        %v752 = vld [vmem:[#allocation2 + $0x20] sm:$0xff]
        %v753 = vld [vmem:[#allocation2 + $0x28] sm:$0xff]
        %v754 = vld [vmem:[#allocation2 + $0x30] sm:$0xff]
        %v755 = vld [vmem:[#allocation2 + $0x38] sm:$0xff]
        %v756 = vld [vmem:[#allocation2 + $0x40] sm:$0xff]
        %v757 = vld [vmem:[#allocation2 + $0x48] sm:$0xff]
        %v758 = vld [vmem:[#allocation2 + $0x50] sm:$0xff]
        %v759 = vld [vmem:[#allocation2 + $0x58] sm:$0xff]
        %v760 = vld [vmem:[#allocation2 + $0x60] sm:$0xff]
        %v761 = vld [vmem:[#allocation2 + $0x68] sm:$0xff]
        %v762 = vld [vmem:[#allocation2 + $0x70] sm:$0xff]
        %v763 = vld [vmem:[#allocation2 + $0x78] sm:$0xff]
        %v764 = vld [vmem:[#allocation2 + $0x80] sm:$0xff]
        %v765 = vld [vmem:[#allocation2 + $0x88] sm:$0xff]
        %v766 = vld [vmem:[#allocation2 + $0x90] sm:$0xff]
        %v767 = vld [vmem:[#allocation2 + $0x98] sm:$0xff]
        %v768 = vld [vmem:[#allocation2 + $0xa0] sm:$0xff]
        %v769 = vld [vmem:[#allocation2 + $0xa8] sm:$0xff]
        %v770 = vld [vmem:[#allocation2 + $0xb0] sm:$0xff]
        %v771 = vld [vmem:[#allocation2 + $0xb8] sm:$0xff]
        %v772 = vld [vmem:[#allocation2 + $0xc0] sm:$0xff]
        %v773 = vld [vmem:[#allocation2 + $0xc8] sm:$0xff]
        %v774 = vld [vmem:[#allocation2 + $0xd0] sm:$0xff]
        %v775 = vld [vmem:[#allocation2 + $0xd8] sm:$0xff]
        %v776 = vld [vmem:[#allocation2 + $0xe0] sm:$0xff]
        %v777 = vld [vmem:[#allocation2 + $0xe8] sm:$0xff]
        %v778 = vld [vmem:[#allocation2 + $0xf0] sm:$0xff]
        %v779 = vld [vmem:[#allocation2 + $0xf8] sm:$0xff]
        %v780 = vld [vmem:[%s249] sm:$0x1]
        %v782 = vlaneseq
        %v783 = vshrl.u32 %v782, 7
        %v784 = vsub.s32 0, %v783
        %v785 = vrot.slane %v780, %v784
        %v787 = vadd.f32 %v748, %v785
        %v788 = vadd.f32 %v749, %v785
        %v789 = vadd.f32 %v750, %v785
        %v790 = vadd.f32 %v751, %v785
        %v791 = vadd.f32 %v752, %v785
        %v792 = vadd.f32 %v753, %v785
        %v793 = vadd.f32 %v754, %v785
        %v794 = vadd.f32 %v755, %v785
        %v795 = vadd.f32 %v756, %v785
        %v796 = vadd.f32 %v757, %v785
        %v797 = vadd.f32 %v758, %v785
        %v798 = vadd.f32 %v759, %v785
        %v799 = vadd.f32 %v760, %v785
        %v800 = vadd.f32 %v761, %v785
        %v801 = vadd.f32 %v762, %v785
        %v802 = vadd.f32 %v763, %v785
        %v803 = vadd.f32 %v764, %v785
        %v804 = vadd.f32 %v765, %v785
        %v805 = vadd.f32 %v766, %v785
        %v806 = vadd.f32 %v767, %v785
        %v807 = vadd.f32 %v768, %v785
        %v808 = vadd.f32 %v769, %v785
        %v809 = vadd.f32 %v770, %v785
        %v810 = vadd.f32 %v771, %v785
        %v811 = vadd.f32 %v772, %v785
        %v812 = vadd.f32 %v773, %v785
        %v813 = vadd.f32 %v774, %v785
        %v814 = vadd.f32 %v775, %v785
        %v815 = vadd.f32 %v776, %v785
        %v816 = vadd.f32 %v777, %v785
        %v817 = vadd.f32 %v778, %v785
        %v818 = vadd.f32 %v779, %v785
        %v819 = vpack.c.bf16 %v788, %v787
        %v820 = vpack.c.bf16 %v790, %v789
        %v821 = vpack.c.bf16 %v792, %v791
        %v822 = vpack.c.bf16 %v794, %v793
        %v823 = vpack.c.bf16 %v796, %v795
        %v824 = vpack.c.bf16 %v798, %v797
        %v825 = vpack.c.bf16 %v800, %v799
        %v826 = vpack.c.bf16 %v802, %v801
        %v827 = vpack.c.bf16 %v804, %v803
        %v828 = vpack.c.bf16 %v806, %v805
        %v829 = vpack.c.bf16 %v808, %v807
        %v830 = vpack.c.bf16 %v810, %v809
        %v831 = vpack.c.bf16 %v812, %v811
        %v832 = vpack.c.bf16 %v814, %v813
        %v833 = vpack.c.bf16 %v816, %v815
        %v834 = vpack.c.bf16 %v818, %v817
        %v851 = vunpack.c.l.b16 %v819
        %v852 = vunpack.c.h.b16 %v819
        %v853 = vunpack.c.l.b16 %v820
        %v854 = vunpack.c.h.b16 %v820
        %v855 = vunpack.c.l.b16 %v821
        %v856 = vunpack.c.h.b16 %v821
        %v857 = vunpack.c.l.b16 %v822
        %v858 = vunpack.c.h.b16 %v822
        %v859 = vunpack.c.l.b16 %v823
        %v860 = vunpack.c.h.b16 %v823
        %v861 = vunpack.c.l.b16 %v824
        %v862 = vunpack.c.h.b16 %v824
        %v863 = vunpack.c.l.b16 %v825
        %v864 = vunpack.c.h.b16 %v825
        %v865 = vunpack.c.l.b16 %v826
        %v866 = vunpack.c.h.b16 %v826
        %v867 = vunpack.c.l.b16 %v827
        %v868 = vunpack.c.h.b16 %v827
        %v869 = vunpack.c.l.b16 %v828
        %v870 = vunpack.c.h.b16 %v828
        %v871 = vunpack.c.l.b16 %v829
        %v872 = vunpack.c.h.b16 %v829
        %v873 = vunpack.c.l.b16 %v830
        %v874 = vunpack.c.h.b16 %v830
        %v875 = vunpack.c.l.b16 %v831
        %v876 = vunpack.c.h.b16 %v831
        %v877 = vunpack.c.l.b16 %v832
        %v878 = vunpack.c.h.b16 %v832
        %v879 = vunpack.c.l.b16 %v833
        %v880 = vunpack.c.h.b16 %v833
        %v881 = vunpack.c.l.b16 %v834
        %v882 = vunpack.c.h.b16 %v834
        %v883 = vpack.c.b16 %v851, %v851
        %v884 = vpack.c.b16 %v852, %v852
        %v885 = vpack.c.b16 %v853, %v853
        %v886 = vpack.c.b16 %v854, %v854
        %v887 = vpack.c.b16 %v855, %v855
        %v888 = vpack.c.b16 %v856, %v856
        %v889 = vpack.c.b16 %v857, %v857
        %v890 = vpack.c.b16 %v858, %v858
        %v891 = vpack.c.b16 %v859, %v859
        %v892 = vpack.c.b16 %v860, %v860
        %v893 = vpack.c.b16 %v861, %v861
        %v894 = vpack.c.b16 %v862, %v862
        %v895 = vpack.c.b16 %v863, %v863
        %v896 = vpack.c.b16 %v864, %v864
        %v897 = vpack.c.b16 %v865, %v865
        %v898 = vpack.c.b16 %v866, %v866
        %v899 = vpack.c.b16 %v867, %v867
        %v900 = vpack.c.b16 %v868, %v868
        %v901 = vpack.c.b16 %v869, %v869
        %v902 = vpack.c.b16 %v870, %v870
        %v903 = vpack.c.b16 %v871, %v871
        %v904 = vpack.c.b16 %v872, %v872
        %v905 = vpack.c.b16 %v873, %v873
        %v906 = vpack.c.b16 %v874, %v874
        %v907 = vpack.c.b16 %v875, %v875
        %v908 = vpack.c.b16 %v876, %v876
        %v909 = vpack.c.b16 %v877, %v877
        %v910 = vpack.c.b16 %v878, %v878
        %v911 = vpack.c.b16 %v879, %v879
        %v912 = vpack.c.b16 %v880, %v880
        %v913 = vpack.c.b16 %v881, %v881
        %v914 = vpack.c.b16 %v882, %v882
        %947 = vst [vmem:[%s257] sm:$0xf] %v883
        %948 = vst [vmem:[%s257 + $0x4] sm:$0xf] %v884
        %949 = vst [vmem:[%s257 + $0x8] sm:$0xf] %v885
        %950 = vst [vmem:[%s257 + $0xc] sm:$0xf] %v886
        %951 = vst [vmem:[%s257 + $0x10] sm:$0xf] %v887
        %952 = vst [vmem:[%s257 + $0x14] sm:$0xf] %v888
        %953 = vst [vmem:[%s257 + $0x18] sm:$0xf] %v889
        %954 = vst [vmem:[%s257 + $0x1c] sm:$0xf] %v890
        %955 = vst [vmem:[%s257 + $0x20] sm:$0xf] %v891
        %956 = vst [vmem:[%s257 + $0x24] sm:$0xf] %v892
        %957 = vst [vmem:[%s257 + $0x28] sm:$0xf] %v893
        %958 = vst [vmem:[%s257 + $0x2c] sm:$0xf] %v894
        %959 = vst [vmem:[%s257 + $0x30] sm:$0xf] %v895
        %960 = vst [vmem:[%s257 + $0x34] sm:$0xf] %v896
        %961 = vst [vmem:[%s257 + $0x38] sm:$0xf] %v897
        %962 = vst [vmem:[%s257 + $0x3c] sm:$0xf] %v898
        %963 = vst [vmem:[%s257 + $0x40] sm:$0xf] %v899
        %964 = vst [vmem:[%s257 + $0x44] sm:$0xf] %v900
        %965 = vst [vmem:[%s257 + $0x48] sm:$0xf] %v901
        %966 = vst [vmem:[%s257 + $0x4c] sm:$0xf] %v902
        %967 = vst [vmem:[%s257 + $0x50] sm:$0xf] %v903
        %968 = vst [vmem:[%s257 + $0x54] sm:$0xf] %v904
        %969 = vst [vmem:[%s257 + $0x58] sm:$0xf] %v905
        %970 = vst [vmem:[%s257 + $0x5c] sm:$0xf] %v906
        %971 = vst [vmem:[%s257 + $0x60] sm:$0xf] %v907
        %972 = vst [vmem:[%s257 + $0x64] sm:$0xf] %v908
        %973 = vst [vmem:[%s257 + $0x68] sm:$0xf] %v909
        %974 = vst [vmem:[%s257 + $0x6c] sm:$0xf] %v910
        %975 = vst [vmem:[%s257 + $0x70] sm:$0xf] %v911
        %976 = vst [vmem:[%s257 + $0x74] sm:$0xf] %v912
        %977 = vst [vmem:[%s257 + $0x78] sm:$0xf] %v913
        %978 = vst [vmem:[%s257 + $0x7c] sm:$0xf] %v914
      $region40: #{elevation_convnet_forward.6} parent=31 // pred_fallthru
        _
      %s979 = smul.u32 32, %s19
      %p980 = scmp.lt.s32.totalorder %s979, 63
      %s981 = scalar_select %p980, %s979, 63
      %p982 = scmp.lt.s32.totalorder %s20, 0
      %s983 = scalar_select %p982, %s20, 0
      %s984 = sadd.s32 %s983, %s981
      %s985 = smul.addr %s984, 4
      %s986 = scalar_lea.vmem %s3, %s985
      // Predicated region
      $region41: #{elevation_convnet_forward.6} parent=31 // pred_check
        %p987 = pneg %p135
      $region42: #{elevation_convnet_forward.6} parent=31 // pred_check_branch
        %989 = sbr.rel (%p987) target = $region44
      $region43: #{elevation_convnet_forward.6} parent=31 // pred_region
        %s990 = smul.u32 32, %s19
      $region44: #{elevation_convnet_forward.6} parent=31 // pred_fallthru
        _
    $region32: #{elevation_convnet_forward.6} parent=5 // pred_fallthru
      _
    %p991 = scmp.le.s32.totalorder 2, %s9
    // Predicated region
    $region45: #{elevation_convnet_forward.6} parent=5 // pred_check
      %p992 = pneg %p991
    $region46: #{elevation_convnet_forward.6} parent=5 // pred_check_branch
      %994 = sbr.rel (%p992) target = $region48
    $region47: #{elevation_convnet_forward.6} parent=5 // pred_region
      %s995 = ssub.s32 %s9, 2
      // Predicated region
      $region49: #{elevation_convnet_forward.6} parent=47 // pred_check
        %p996 = pneg %p141
      $region50: #{elevation_convnet_forward.6} parent=47 // pred_check_branch
        %998 = sbr.rel (%p996) target = $region52
      $region51: #{elevation_convnet_forward.6} parent=47 // pred_region
        %s999 = smul.u32 32, %s22
        %p1000 = scmp.lt.s32.totalorder %s999, 63
        %s1001 = scalar_select %p1000, %s999, 63
        %p1002 = scmp.lt.s32.totalorder %s23, 0
        %s1003 = scalar_select %p1002, %s23, 0
        %s1004 = sadd.s32 %s1003, %s1001
        %s1005 = smul.addr %s1004, 4
        %s1006 = scalar_lea.vmem %s3, %s1005
      $region52: #{elevation_convnet_forward.6} parent=47 // pred_fallthru
        _
    $region48: #{elevation_convnet_forward.6} parent=5 // pred_fallthru
      _
  $region6: #{elevation_convnet_forward.6} parent=0 // loop_footer
    %s13 = sadd.s32 1, %s9
  $region7: #{elevation_convnet_forward.6} parent=0 // loop_footer_branch
    %8 = sbr.rel target = $region3
  $region8: #{elevation_convnet_forward.6} parent=0 // loop_exit
    _

// kernel: elevation_convnet_forward.7
$region0: #{elevation_convnet_forward.7}
  #allocation0 [shape = 'u32[]', space=smem, size = 0x4, offset = 0x4, fixed_abs, tag = 'smem constant byte address 0x4 - core index']
  #allocation1 [shape = 'u32[144,128]{1,0:T(1,128)}', space=vmem, size = 0x12000, scoped, tag = 'internal scratch']
  #allocation2 [shape = 'f32[32,128]{1,0:T(8,128)}', space=vmem, size = 0x4000, scoped, tag = 'scratch operand']
  %s0 = inlined_call_operand.vmem [shape: bf16[32,384], index: 0, kind: input, shape index: {}]
  %s1 = inlined_call_operand.vmem [shape: bf16[384,128], index: 1, kind: input, shape index: {}]
  %s2 = inlined_call_operand.vmem [shape: f32[1,128], index: 2, kind: input, shape index: {}]
  %s3 = inlined_call_operand.vmem [shape: bf16[32,128], index: 3, kind: output, shape index: {}]
  %s4 = sld [smem:[#allocation0]]
  $region30: #{elevation_convnet_forward.7} parent=0
    _
  %s6 = ssub.s32 1, %s4
  %s7 = scalar_select 0, %s6, %s4
  // Predicated region
  $region2: #{elevation_convnet_forward.7} parent=0 // pred_check
    _
  $region3: #{elevation_convnet_forward.7} parent=0 // pred_check_branch
    %9 = sbr.rel (0) target = $region5
  $region4: #{elevation_convnet_forward.7} parent=0 // pred_region
    _
  $region5: #{elevation_convnet_forward.7} parent=0 // pred_fallthru
    _
  // Predicated region
  $region6: #{elevation_convnet_forward.7} parent=0 // pred_check
    _
  $region7: #{elevation_convnet_forward.7} parent=0 // pred_check_branch
    %11 = sbr.rel (0) target = $region9
  $region8: #{elevation_convnet_forward.7} parent=0 // pred_region
    _
  $region9: #{elevation_convnet_forward.7} parent=0 // pred_fallthru
    _
  // Predicated region
  $region10: #{elevation_convnet_forward.7} parent=0 // pred_check
    _
  $region11: #{elevation_convnet_forward.7} parent=0 // pred_check_branch
    %13 = sbr.rel (0) target = $region13
  $region12: #{elevation_convnet_forward.7} parent=0 // pred_region
    _
  $region13: #{elevation_convnet_forward.7} parent=0 // pred_fallthru
    _
  %p15 = scmp.eq.s32.totalorder 0, 0
  // Predicated region
  $region14: #{elevation_convnet_forward.7} parent=0 // pred_check
    %p16 = pneg %p15
  $region15: #{elevation_convnet_forward.7} parent=0 // pred_check_branch
    %18 = sbr.rel (%p16) target = $region17
  $region16: #{elevation_convnet_forward.7} parent=0 // pred_region
    %19 = vst [vmem:[#allocation2] sm:$0xff] 0.0
    %20 = vst [vmem:[#allocation2 + $0x8] sm:$0xff] 0.0
    %21 = vst [vmem:[#allocation2 + $0x10] sm:$0xff] 0.0
    %22 = vst [vmem:[#allocation2 + $0x18] sm:$0xff] 0.0
  $region17: #{elevation_convnet_forward.7} parent=0 // pred_fallthru
    _
  %v23 = vld [vmem:[#allocation2] sm:$0xff]
  %v24 = vld [vmem:[#allocation2 + $0x8] sm:$0xff]
  %v25 = vld [vmem:[#allocation2 + $0x10] sm:$0xff]
  %v26 = vld [vmem:[#allocation2 + $0x18] sm:$0xff]
  %v27 = vld [vmem:[%s0] sm:$0xff]
  %v28 = vld [vmem:[%s0 + $0x8] sm:$0xf]
  %v29 = vld [vmem:[%s0 + $0xc] sm:$0xff]
  %v30 = vld [vmem:[%s0 + $0x14] sm:$0xf]
  %v31 = vld [vmem:[%s0 + $0x18] sm:$0xff]
  %v32 = vld [vmem:[%s0 + $0x20] sm:$0xf]
  %v33 = vld [vmem:[%s0 + $0x24] sm:$0xff]
  %v34 = vld [vmem:[%s0 + $0x2c] sm:$0xf]
  %v35 = vld [vmem:[%s1] sm:$0xf]
  %v36 = vld [vmem:[%s1 + $0x4] sm:$0xf]
  %v37 = vld [vmem:[%s1 + $0x8] sm:$0xf]
  %v38 = vld [vmem:[%s1 + $0xc] sm:$0xf]
  %v39 = vld [vmem:[%s1 + $0x10] sm:$0xf]
  %v40 = vld [vmem:[%s1 + $0x14] sm:$0xf]
  %v41 = vld [vmem:[%s1 + $0x18] sm:$0xf]
  %v42 = vld [vmem:[%s1 + $0x1c] sm:$0xf]
  %v43 = vld [vmem:[%s1 + $0x20] sm:$0xf]
  %v44 = vld [vmem:[%s1 + $0x24] sm:$0xf]
  %v45 = vld [vmem:[%s1 + $0x28] sm:$0xf]
  %v46 = vld [vmem:[%s1 + $0x2c] sm:$0xf]
  %v47 = vld [vmem:[%s1 + $0x30] sm:$0xf]
  %v48 = vld [vmem:[%s1 + $0x34] sm:$0xf]
  %v49 = vld [vmem:[%s1 + $0x38] sm:$0xf]
  %v50 = vld [vmem:[%s1 + $0x3c] sm:$0xf]
  %v51 = vld [vmem:[%s1 + $0x40] sm:$0xf]
  %v52 = vld [vmem:[%s1 + $0x44] sm:$0xf]
  %v53 = vld [vmem:[%s1 + $0x48] sm:$0xf]
  %v54 = vld [vmem:[%s1 + $0x4c] sm:$0xf]
  %v55 = vld [vmem:[%s1 + $0x50] sm:$0xf]
  %v56 = vld [vmem:[%s1 + $0x54] sm:$0xf]
  %v57 = vld [vmem:[%s1 + $0x58] sm:$0xf]
  %v58 = vld [vmem:[%s1 + $0x5c] sm:$0xf]
  %v59 = vld [vmem:[%s1 + $0x60] sm:$0xf]
  %v60 = vld [vmem:[%s1 + $0x64] sm:$0xf]
  %v61 = vld [vmem:[%s1 + $0x68] sm:$0xf]
  %v62 = vld [vmem:[%s1 + $0x6c] sm:$0xf]
  %v63 = vld [vmem:[%s1 + $0x70] sm:$0xf]
  %v64 = vld [vmem:[%s1 + $0x74] sm:$0xf]
  %v65 = vld [vmem:[%s1 + $0x78] sm:$0xf]
  %v66 = vld [vmem:[%s1 + $0x7c] sm:$0xf]
  %v67 = vld [vmem:[%s1 + $0x80] sm:$0xf]
  %v68 = vld [vmem:[%s1 + $0x84] sm:$0xf]
  %v69 = vld [vmem:[%s1 + $0x88] sm:$0xf]
  %v70 = vld [vmem:[%s1 + $0x8c] sm:$0xf]
  %v71 = vld [vmem:[%s1 + $0x90] sm:$0xf]
  %v72 = vld [vmem:[%s1 + $0x94] sm:$0xf]
  %v73 = vld [vmem:[%s1 + $0x98] sm:$0xf]
  %v74 = vld [vmem:[%s1 + $0x9c] sm:$0xf]
  %v75 = vld [vmem:[%s1 + $0xa0] sm:$0xf]
  %v76 = vld [vmem:[%s1 + $0xa4] sm:$0xf]
  %v77 = vld [vmem:[%s1 + $0xa8] sm:$0xf]
  %v78 = vld [vmem:[%s1 + $0xac] sm:$0xf]
  %v79 = vld [vmem:[%s1 + $0xb0] sm:$0xf]
  %v80 = vld [vmem:[%s1 + $0xb4] sm:$0xf]
  %v81 = vld [vmem:[%s1 + $0xb8] sm:$0xf]
  %v82 = vld [vmem:[%s1 + $0xbc] sm:$0xf]
  %v91 = vunpack.c.l.b16 %v27
  %v92 = vunpack.c.h.b16 %v27
  %v93 = vunpack.c.l.b16 %v28
  %v94 = vunpack.c.l.b16 %v29
  %v95 = vunpack.c.h.b16 %v29
  %v96 = vunpack.c.l.b16 %v30
  %v97 = vunpack.c.l.b16 %v31
  %v98 = vunpack.c.h.b16 %v31
  %v99 = vunpack.c.l.b16 %v32
  %v100 = vunpack.c.l.b16 %v33
  %v101 = vunpack.c.h.b16 %v33
  %v102 = vunpack.c.l.b16 %v34
  %v103 = vpack.c.b16 %v94, %v91
  %v104 = vpack.c.b16 %v95, %v92
  %v105 = vpack.c.b16 %v96, %v93
  %v106 = vpack.c.b16 %v100, %v97
  %v107 = vpack.c.b16 %v101, %v98
  %v108 = vpack.c.b16 %v102, %v99
  %v163 = vunpack.c.l.b16 %v35
  %v164 = vunpack.c.l.b16 %v36
  %v165 = vunpack.c.l.b16 %v37
  %v166 = vunpack.c.l.b16 %v38
  %v167 = vunpack.c.l.b16 %v39
  %v168 = vunpack.c.l.b16 %v40
  %v169 = vunpack.c.l.b16 %v41
  %v170 = vunpack.c.l.b16 %v42
  %v171 = vunpack.c.l.b16 %v43
  %v172 = vunpack.c.l.b16 %v44
  %v173 = vunpack.c.l.b16 %v45
  %v174 = vunpack.c.l.b16 %v46
  %v175 = vunpack.c.l.b16 %v47
  %v176 = vunpack.c.l.b16 %v48
  %v177 = vunpack.c.l.b16 %v49
  %v178 = vunpack.c.l.b16 %v50
  %v179 = vunpack.c.l.b16 %v51
  %v180 = vunpack.c.l.b16 %v52
  %v181 = vunpack.c.l.b16 %v53
  %v182 = vunpack.c.l.b16 %v54
  %v183 = vunpack.c.l.b16 %v55
  %v184 = vunpack.c.l.b16 %v56
  %v185 = vunpack.c.l.b16 %v57
  %v186 = vunpack.c.l.b16 %v58
  %v187 = vunpack.c.l.b16 %v59
  %v188 = vunpack.c.l.b16 %v60
  %v189 = vunpack.c.l.b16 %v61
  %v190 = vunpack.c.l.b16 %v62
  %v191 = vunpack.c.l.b16 %v63
  %v192 = vunpack.c.l.b16 %v64
  %v193 = vunpack.c.l.b16 %v65
  %v194 = vunpack.c.l.b16 %v66
  %v195 = vunpack.c.l.b16 %v67
  %v196 = vunpack.c.l.b16 %v68
  %v197 = vunpack.c.l.b16 %v69
  %v198 = vunpack.c.l.b16 %v70
  %v199 = vunpack.c.l.b16 %v71
  %v200 = vunpack.c.l.b16 %v72
  %v201 = vunpack.c.l.b16 %v73
  %v202 = vunpack.c.l.b16 %v74
  %v203 = vunpack.c.l.b16 %v75
  %v204 = vunpack.c.l.b16 %v76
  %v205 = vunpack.c.l.b16 %v77
  %v206 = vunpack.c.l.b16 %v78
  %v207 = vunpack.c.l.b16 %v79
  %v208 = vunpack.c.l.b16 %v80
  %v209 = vunpack.c.l.b16 %v81
  %v210 = vunpack.c.l.b16 %v82
  %v211 = vpack.c.b16 %v164, %v163
  %v212 = vpack.c.b16 %v166, %v165
  %v213 = vpack.c.b16 %v168, %v167
  %v214 = vpack.c.b16 %v170, %v169
  %v215 = vpack.c.b16 %v172, %v171
  %v216 = vpack.c.b16 %v174, %v173
  %v217 = vpack.c.b16 %v176, %v175
  %v218 = vpack.c.b16 %v178, %v177
  %v219 = vpack.c.b16 %v180, %v179
  %v220 = vpack.c.b16 %v182, %v181
  %v221 = vpack.c.b16 %v184, %v183
  %v222 = vpack.c.b16 %v186, %v185
  %v223 = vpack.c.b16 %v188, %v187
  %v224 = vpack.c.b16 %v190, %v189
  %v225 = vpack.c.b16 %v192, %v191
  %v226 = vpack.c.b16 %v194, %v193
  %v227 = vpack.c.b16 %v196, %v195
  %v228 = vpack.c.b16 %v198, %v197
  %v229 = vpack.c.b16 %v200, %v199
  %v230 = vpack.c.b16 %v202, %v201
  %v231 = vpack.c.b16 %v204, %v203
  %v232 = vpack.c.b16 %v206, %v205
  %v233 = vpack.c.b16 %v208, %v207
  %v234 = vpack.c.b16 %v210, %v209
  %259 = vmatprep.subr.bf16.mxu0 0
  %260 = vmatpush1.bf16.msra.mxu0 %v211
  %261 = vmatprep.subr.bf16.mxu0 0
  %262 = vmatpush1.bf16.msra.mxu0 %v212
  %263 = vmatprep.subr.bf16.mxu0 0
  %264 = vmatpush1.bf16.msra.mxu0 %v213
  %265 = vmatprep.subr.bf16.mxu0 0
  %266 = vmatpush1.bf16.msra.mxu0 %v214
  %267 = vmatprep.subr.bf16.mxu0 0
  %268 = vmatpush1.bf16.msra.mxu0 %v215
  %269 = vmatprep.subr.bf16.mxu0 0
  %270 = vmatpush1.bf16.msra.mxu0 %v216
  %271 = vmatprep.subr.bf16.mxu0 0
  %272 = vmatpush1.bf16.msra.mxu0 %v217
  %273 = vmatprep.subr.bf16.mxu0 0
  %274 = vmatpush1.bf16.msra.mxu0 %v218
  %275 = vmatprep.subr.bf16.mxu0 0
  %276 = vmatpush1.bf16.msra.mxu0 %v219
  %277 = vmatprep.subr.bf16.mxu0 0
  %278 = vmatpush1.bf16.msra.mxu0 %v220
  %279 = vmatprep.subr.bf16.mxu0 0
  %280 = vmatpush1.bf16.msra.mxu0 %v221
  %281 = vmatprep.subr.bf16.mxu0 0
  %282 = vmatpush1.bf16.msra.mxu0 %v222
  %283 = vmatprep.subr.bf16.mxu0 0
  %284 = vmatpush1.bf16.msra.mxu0 %v223
  %285 = vmatprep.subr.bf16.mxu0 0
  %286 = vmatpush1.bf16.msra.mxu0 %v224
  %287 = vmatprep.subr.bf16.mxu0 0
  %288 = vmatpush1.bf16.msra.mxu0 %v225
  %289 = vmatprep.subr.bf16.mxu0 0
  %290 = vmatpush1.bf16.msra.mxu0 %v226
  %291 = vmatprep.mubr.bf16.mxu0 %v104
  %292 = vmatmul.mubr.bf16.gmra.mrb[0].mxu0 %v103
  %v293 = vpop.f32.mrb[0].mxu0
  %v294 = vadd.f32 0.0, %v293
  %v295 = vpop.f32.mrb[0].mxu0
  %v296 = vpop.f32.mrb[0].mxu0
  %v297 = vadd.f32 0.0, %v296
  %v298 = vpop.f32.mrb[0].mxu0
  %299 = vmatprep.mubr.bf16.mxu0 %v107
  %300 = vmatmul.mubr.bf16.gmra.mrb[0].mxu0 %v106
  %v301 = vpop.f32.mrb[0].mxu0
  %v302 = vadd.f32 0.0, %v301
  %v303 = vpop.f32.mrb[0].mxu0
  %v304 = vpop.f32.mrb[0].mxu0
  %v305 = vadd.f32 0.0, %v304
  %v306 = vpop.f32.mrb[0].mxu0
  %307 = vdwg.mxu0
  %308 = vmatprep.subr.bf16.mxu0 0
  %309 = vmatpush1.bf16.msra.mxu0 %v227
  %310 = vmatprep.subr.bf16.mxu0 0
  %311 = vmatpush1.bf16.msra.mxu0 %v228
  %312 = vmatprep.subr.bf16.mxu0 0
  %313 = vmatpush1.bf16.msra.mxu0 %v229
  %314 = vmatprep.subr.bf16.mxu0 0
  %315 = vmatpush1.bf16.msra.mxu0 %v230
  %316 = vmatprep.subr.bf16.mxu0 0
  %317 = vmatpush1.bf16.msra.mxu0 %v231
  %318 = vmatprep.subr.bf16.mxu0 0
  %319 = vmatpush1.bf16.msra.mxu0 %v232
  %320 = vmatprep.subr.bf16.mxu0 0
  %321 = vmatpush1.bf16.msra.mxu0 %v233
  %322 = vmatprep.subr.bf16.mxu0 0
  %323 = vmatpush1.bf16.msra.mxu0 %v234
  %324 = vmatprep.subr.bf16.mxu0 0
  %325 = vmatpush1.bf16.msra.mxu0 0
  %326 = vmatprep.subr.bf16.mxu0 0
  %327 = vmatpush1.bf16.msra.mxu0 0
  %328 = vmatprep.subr.bf16.mxu0 0
  %329 = vmatpush1.bf16.msra.mxu0 0
  %330 = vmatprep.subr.bf16.mxu0 0
  %331 = vmatpush1.bf16.msra.mxu0 0
  %332 = vmatprep.subr.bf16.mxu0 0
  %333 = vmatpush1.bf16.msra.mxu0 0
  %334 = vmatprep.subr.bf16.mxu0 0
  %335 = vmatpush1.bf16.msra.mxu0 0
  %336 = vmatprep.subr.bf16.mxu0 0
  %337 = vmatpush1.bf16.msra.mxu0 0
  %338 = vmatprep.subr.bf16.mxu0 0
  %339 = vmatpush1.bf16.msra.mxu0 0
  %340 = vmatprep.mubr.bf16.mxu0 0
  %341 = vmatmul.mubr.bf16.gmra.mrb[0].mxu0 %v105
  %v342 = vpop.f32.mrb[0].mxu0
  %v343 = vadd.f32 %v294, %v342
  %v344 = vpop.f32.mrb[0].mxu0
  %v345 = vpop.f32.mrb[0].mxu0
  %v346 = vadd.f32 %v297, %v345
  %v347 = vpop.f32.mrb[0].mxu0
  %348 = vmatprep.mubr.bf16.mxu0 0
  %349 = vmatmul.mubr.bf16.gmra.mrb[0].mxu0 %v108
  %v350 = vpop.f32.mrb[0].mxu0
  %v351 = vadd.f32 %v302, %v350
  %v352 = vpop.f32.mrb[0].mxu0
  %v353 = vpop.f32.mrb[0].mxu0
  %v354 = vadd.f32 %v305, %v353
  %v355 = vpop.f32.mrb[0].mxu0
  %356 = vdwg.mxu0
  %v357 = vadd.f32 %v23, %v343
  %v358 = vadd.f32 %v24, %v346
  %v359 = vadd.f32 %v25, %v351
  %v360 = vadd.f32 %v26, %v354
  %361 = vst [vmem:[#allocation2] sm:$0xff] %v357
  %362 = vst [vmem:[#allocation2 + $0x8] sm:$0xff] %v358
  %363 = vst [vmem:[#allocation2 + $0x10] sm:$0xff] %v359
  %364 = vst [vmem:[#allocation2 + $0x18] sm:$0xff] %v360
  // Predicated region
  $region18: #{elevation_convnet_forward.7} parent=0 // pred_check
    %p365 = pneg %p15
  $region19: #{elevation_convnet_forward.7} parent=0 // pred_check_branch
    %367 = sbr.rel (%p365) target = $region21
  $region20: #{elevation_convnet_forward.7} parent=0 // pred_region
    %v368 = vld [vmem:[#allocation2] sm:$0xff]
    %v369 = vld [vmem:[#allocation2 + $0x8] sm:$0xff]
    %v370 = vld [vmem:[#allocation2 + $0x10] sm:$0xff]
    %v371 = vld [vmem:[#allocation2 + $0x18] sm:$0xff]
    %v372 = vld [vmem:[%s2] sm:$0x1]
    %v374 = vlaneseq
    %v375 = vshrl.u32 %v374, 7
    %v376 = vsub.s32 0, %v375
    %v377 = vrot.slane %v372, %v376
    %v379 = vadd.f32 %v368, %v377
    %v380 = vadd.f32 %v369, %v377
    %v381 = vadd.f32 %v370, %v377
    %v382 = vadd.f32 %v371, %v377
    %v383 = vpack.c.bf16 %v380, %v379
    %v384 = vpack.c.bf16 %v382, %v381
    %v387 = vunpack.c.l.b16 %v383
    %v388 = vunpack.c.h.b16 %v383
    %v389 = vunpack.c.l.b16 %v384
    %v390 = vunpack.c.h.b16 %v384
    %v391 = vpack.c.b16 %v387, %v387
    %v392 = vpack.c.b16 %v388, %v388
    %v393 = vpack.c.b16 %v389, %v389
    %v394 = vpack.c.b16 %v390, %v390
    %399 = vst [vmem:[%s3] sm:$0xf] %v391
    %400 = vst [vmem:[%s3 + $0x4] sm:$0xf] %v392
    %401 = vst [vmem:[%s3 + $0x8] sm:$0xf] %v393
    %402 = vst [vmem:[%s3 + $0xc] sm:$0xf] %v394
  $region21: #{elevation_convnet_forward.7} parent=0 // pred_fallthru
    _
  // Predicated region
  $region22: #{elevation_convnet_forward.7} parent=0 // pred_check
    _
  $region23: #{elevation_convnet_forward.7} parent=0 // pred_check_branch
    %404 = sbr.rel (0) target = $region25
  $region24: #{elevation_convnet_forward.7} parent=0 // pred_region
    _
  $region25: #{elevation_convnet_forward.7} parent=0 // pred_fallthru
    _
  // Predicated region
  $region26: #{elevation_convnet_forward.7} parent=0 // pred_check
    _
  $region27: #{elevation_convnet_forward.7} parent=0 // pred_check_branch
    %406 = sbr.rel (0) target = $region29
  $region28: #{elevation_convnet_forward.7} parent=0 // pred_region
    _
  $region29: #{elevation_convnet_forward.7} parent=0 // pred_fallthru
    _

// kernel: elevation_convnet_forward.9
$region0: #{elevation_convnet_forward.9}
  #allocation0 [shape = 'u32[]', space=smem, size = 0x4, offset = 0x4, fixed_abs, tag = 'smem constant byte address 0x4 - core index']
  #allocation1 [shape = 'u32[144,128]{1,0:T(1,128)}', space=vmem, size = 0x12000, scoped, tag = 'internal scratch']
  %s0 = inlined_call_operand.vmem [shape: bf16[16,128], index: 0, kind: input, shape index: {}]
  %s1 = inlined_call_operand.vmem [shape: bf16[16,128], index: 1, kind: input, shape index: {}]
  %s2 = inlined_call_operand.vmem [shape: bf16[16,128], index: 2, kind: input, shape index: {}]
  %s3 = inlined_call_operand.vmem [shape: bf16[16,128], index: 3, kind: input, shape index: {}]
  %s4 = inlined_call_operand.vmem [shape: bf16[16,128], index: 4, kind: output, shape index: {}]
  %s5 = sld [smem:[#allocation0]]
  $region26: #{elevation_convnet_forward.9} parent=0
    _
  %s7 = ssub.s32 1, %s5
  %s8 = scalar_select 0, %s7, %s5
  // Predicated region
  $region2: #{elevation_convnet_forward.9} parent=0 // pred_check
    _
  $region3: #{elevation_convnet_forward.9} parent=0 // pred_check_branch
    %10 = sbr.rel (0) target = $region5
  $region4: #{elevation_convnet_forward.9} parent=0 // pred_region
    _
  $region5: #{elevation_convnet_forward.9} parent=0 // pred_fallthru
    _
  // Predicated region
  $region6: #{elevation_convnet_forward.9} parent=0 // pred_check
    _
  $region7: #{elevation_convnet_forward.9} parent=0 // pred_check_branch
    %12 = sbr.rel (0) target = $region9
  $region8: #{elevation_convnet_forward.9} parent=0 // pred_region
    _
  $region9: #{elevation_convnet_forward.9} parent=0 // pred_fallthru
    _
  // Predicated region
  $region10: #{elevation_convnet_forward.9} parent=0 // pred_check
    _
  $region11: #{elevation_convnet_forward.9} parent=0 // pred_check_branch
    %14 = sbr.rel (0) target = $region13
  $region12: #{elevation_convnet_forward.9} parent=0 // pred_region
    _
  $region13: #{elevation_convnet_forward.9} parent=0 // pred_fallthru
    _
  // Predicated region
  $region14: #{elevation_convnet_forward.9} parent=0 // pred_check
    _
  $region15: #{elevation_convnet_forward.9} parent=0 // pred_check_branch
    %16 = sbr.rel (0) target = $region17
  $region16: #{elevation_convnet_forward.9} parent=0 // pred_region
    _
  $region17: #{elevation_convnet_forward.9} parent=0 // pred_fallthru
    _
  %v17 = vld [vmem:[%s0] sm:$0xf]
  %v18 = vld [vmem:[%s0 + $0x4] sm:$0xf]
  %v19 = vld [vmem:[%s1] sm:$0xf]
  %v20 = vld [vmem:[%s1 + $0x4] sm:$0xf]
  %v21 = vmax.bf16 %v17, %v19
  %v22 = vmax.bf16 %v18, %v20
  %v23 = vld [vmem:[%s2] sm:$0xf]
  %v24 = vld [vmem:[%s2 + $0x4] sm:$0xf]
  %v25 = vld [vmem:[%s3] sm:$0xf]
  %v26 = vld [vmem:[%s3 + $0x4] sm:$0xf]
  %v27 = vmax.bf16 %v23, %v25
  %v28 = vmax.bf16 %v24, %v26
  %v29 = vmax.bf16 %v21, %v27
  %v30 = vmax.bf16 %v22, %v28
  %31 = vst [vmem:[%s4] sm:$0xf] %v29
  %32 = vst [vmem:[%s4 + $0x4] sm:$0xf] %v30
  // Predicated region
  $region18: #{elevation_convnet_forward.9} parent=0 // pred_check
    _
  $region19: #{elevation_convnet_forward.9} parent=0 // pred_check_branch
    %34 = sbr.rel (0) target = $region21
  $region20: #{elevation_convnet_forward.9} parent=0 // pred_region
    _
  $region21: #{elevation_convnet_forward.9} parent=0 // pred_fallthru
    _
  // Predicated region
  $region22: #{elevation_convnet_forward.9} parent=0 // pred_check
    _
  $region23: #{elevation_convnet_forward.9} parent=0 // pred_check_branch
    %36 = sbr.rel (0) target = $region25
  $region24: #{elevation_convnet_forward.9} parent=0 // pred_region
    _
  $region25: #{elevation_convnet_forward.9} parent=0 // pred_fallthru
    _

// kernel: elevation_convnet_forward.8
$region0: #{elevation_convnet_forward.8}
  #allocation0 [shape = 'u32[]', space=smem, size = 0x4, offset = 0x4, fixed_abs, tag = 'smem constant byte address 0x4 - core index']
  #allocation1 [shape = 'u32[144,128]{1,0:T(1,128)}', space=vmem, size = 0x12000, scoped, tag = 'internal scratch']
  #allocation2 [shape = 'f32[16,128]{1,0:T(8,128)}', space=vmem, size = 0x2000, scoped, tag = 'scratch operand']
  %s0 = inlined_call_operand.vmem [shape: bf16[16,640], index: 0, kind: input, shape index: {}]
  %s1 = inlined_call_operand.vmem [shape: bf16[640,128], index: 1, kind: input, shape index: {}]
  %s2 = inlined_call_operand.hbm [shape: f32[1,128], index: 2, kind: input, shape index: {}]
  %s3 = inlined_call_operand.vmem [shape: bf16[16,128], index: 3, kind: output, shape index: {}]
  %s4 = sld [smem:[#allocation0]]
  $region34: #{elevation_convnet_forward.8} parent=0
    _
  %s6 = ssub.s32 1, %s4
  %s7 = scalar_select 0, %s6, %s4
  $region1: #{elevation_convnet_forward.8} parent=0
    #allocation3 [shape = 'u8[512]{0}', space=vmem, size = 0x400, scoped, tag = 'input window, operand 2, single buffered']
    #allocation4 [shape = 's32[1]{0}', space=sflag, size = 0x4, scoped, tag = 'scoped memory for elevation_convnet_forward.8']
    %8 = vsyncpa [#allocation4], 0
    // Predicated region
    $region2: #{elevation_convnet_forward.8} parent=1 // pred_check
      _
    $region3: #{elevation_convnet_forward.8} parent=1 // pred_check_branch
      %10 = sbr.rel (0) target = $region5
    $region4: #{elevation_convnet_forward.8} parent=1 // pred_region
      _
    $region5: #{elevation_convnet_forward.8} parent=1 // pred_fallthru
      _
    // Predicated region
    $region6: #{elevation_convnet_forward.8} parent=1 // pred_check
      _
    $region7: #{elevation_convnet_forward.8} parent=1 // pred_check_branch
      %12 = sbr.rel (0) target = $region9
    $region8: #{elevation_convnet_forward.8} parent=1 // pred_region
      _
    $region9: #{elevation_convnet_forward.8} parent=1 // pred_fallthru
      _
    // Predicated region
    $region10: #{elevation_convnet_forward.8} parent=1 // pred_check
      _
    $region11: #{elevation_convnet_forward.8} parent=1 // pred_check_branch
      %14 = sbr.rel (0) target = $region13
    $region12: #{elevation_convnet_forward.8} parent=1 // pred_region
      %s16 = ssub.s32 16, 16
      %17 = vsyncadd [#allocation4], %s16
      %s19 = sshll.u32 [#allocation3], 4
      %s20 = int_to_ptr.vmem [resolvable:$true] %s19
      %22 = dma.hbm_to_vmem [thread:$0]  %s2, 16, %s20, [#allocation4]
    $region13: #{elevation_convnet_forward.8} parent=1 // pred_fallthru
      _
    // Predicated region
    $region14: #{elevation_convnet_forward.8} parent=1 // pred_check
      _
    $region15: #{elevation_convnet_forward.8} parent=1 // pred_check_branch
      %24 = sbr.rel (0) target = $region17
    $region16: #{elevation_convnet_forward.8} parent=1 // pred_region
      %25 = dma.done [#allocation4], 16
    $region17: #{elevation_convnet_forward.8} parent=1 // pred_fallthru
      _
    %p27 = scmp.eq.s32.totalorder 0, 0
    // Predicated region
    $region18: #{elevation_convnet_forward.8} parent=1 // pred_check
      %p28 = pneg %p27
    $region19: #{elevation_convnet_forward.8} parent=1 // pred_check_branch
      %30 = sbr.rel (%p28) target = $region21
    $region20: #{elevation_convnet_forward.8} parent=1 // pred_region
      %31 = vst [vmem:[#allocation2] sm:$0xff] 0.0
      %32 = vst [vmem:[#allocation2 + $0x8] sm:$0xff] 0.0
    $region21: #{elevation_convnet_forward.8} parent=1 // pred_fallthru
      _
    %v33 = vld [vmem:[#allocation2] sm:$0xff]
    %v34 = vld [vmem:[#allocation2 + $0x8] sm:$0xff]
    %v35 = vld [vmem:[%s0] sm:$0xff]
    %v36 = vld [vmem:[%s0 + $0x8] sm:$0xff]
    %v37 = vld [vmem:[%s0 + $0x10] sm:$0xf]
    %v38 = vld [vmem:[%s0 + $0x14] sm:$0xff]
    %v39 = vld [vmem:[%s0 + $0x1c] sm:$0xff]
    %v40 = vld [vmem:[%s0 + $0x24] sm:$0xf]
    %v41 = vld [vmem:[%s1] sm:$0xf]
    %v42 = vld [vmem:[%s1 + $0x4] sm:$0xf]
    %v43 = vld [vmem:[%s1 + $0x8] sm:$0xf]
    %v44 = vld [vmem:[%s1 + $0xc] sm:$0xf]
    %v45 = vld [vmem:[%s1 + $0x10] sm:$0xf]
    %v46 = vld [vmem:[%s1 + $0x14] sm:$0xf]
    %v47 = vld [vmem:[%s1 + $0x18] sm:$0xf]
    %v48 = vld [vmem:[%s1 + $0x1c] sm:$0xf]
    %v49 = vld [vmem:[%s1 + $0x20] sm:$0xf]
    %v50 = vld [vmem:[%s1 + $0x24] sm:$0xf]
    %v51 = vld [vmem:[%s1 + $0x28] sm:$0xf]
    %v52 = vld [vmem:[%s1 + $0x2c] sm:$0xf]
    %v53 = vld [vmem:[%s1 + $0x30] sm:$0xf]
    %v54 = vld [vmem:[%s1 + $0x34] sm:$0xf]
    %v55 = vld [vmem:[%s1 + $0x38] sm:$0xf]
    %v56 = vld [vmem:[%s1 + $0x3c] sm:$0xf]
    %v57 = vld [vmem:[%s1 + $0x40] sm:$0xf]
    %v58 = vld [vmem:[%s1 + $0x44] sm:$0xf]
    %v59 = vld [vmem:[%s1 + $0x48] sm:$0xf]
    %v60 = vld [vmem:[%s1 + $0x4c] sm:$0xf]
    %v61 = vld [vmem:[%s1 + $0x50] sm:$0xf]
    %v62 = vld [vmem:[%s1 + $0x54] sm:$0xf]
    %v63 = vld [vmem:[%s1 + $0x58] sm:$0xf]
    %v64 = vld [vmem:[%s1 + $0x5c] sm:$0xf]
    %v65 = vld [vmem:[%s1 + $0x60] sm:$0xf]
    %v66 = vld [vmem:[%s1 + $0x64] sm:$0xf]
    %v67 = vld [vmem:[%s1 + $0x68] sm:$0xf]
    %v68 = vld [vmem:[%s1 + $0x6c] sm:$0xf]
    %v69 = vld [vmem:[%s1 + $0x70] sm:$0xf]
    %v70 = vld [vmem:[%s1 + $0x74] sm:$0xf]
    %v71 = vld [vmem:[%s1 + $0x78] sm:$0xf]
    %v72 = vld [vmem:[%s1 + $0x7c] sm:$0xf]
    %v73 = vld [vmem:[%s1 + $0x80] sm:$0xf]
    %v74 = vld [vmem:[%s1 + $0x84] sm:$0xf]
    %v75 = vld [vmem:[%s1 + $0x88] sm:$0xf]
    %v76 = vld [vmem:[%s1 + $0x8c] sm:$0xf]
    %v77 = vld [vmem:[%s1 + $0x90] sm:$0xf]
    %v78 = vld [vmem:[%s1 + $0x94] sm:$0xf]
    %v79 = vld [vmem:[%s1 + $0x98] sm:$0xf]
    %v80 = vld [vmem:[%s1 + $0x9c] sm:$0xf]
    %v81 = vld [vmem:[%s1 + $0xa0] sm:$0xf]
    %v82 = vld [vmem:[%s1 + $0xa4] sm:$0xf]
    %v83 = vld [vmem:[%s1 + $0xa8] sm:$0xf]
    %v84 = vld [vmem:[%s1 + $0xac] sm:$0xf]
    %v85 = vld [vmem:[%s1 + $0xb0] sm:$0xf]
    %v86 = vld [vmem:[%s1 + $0xb4] sm:$0xf]
    %v87 = vld [vmem:[%s1 + $0xb8] sm:$0xf]
    %v88 = vld [vmem:[%s1 + $0xbc] sm:$0xf]
    %v89 = vld [vmem:[%s1 + $0xc0] sm:$0xf]
    %v90 = vld [vmem:[%s1 + $0xc4] sm:$0xf]
    %v91 = vld [vmem:[%s1 + $0xc8] sm:$0xf]
    %v92 = vld [vmem:[%s1 + $0xcc] sm:$0xf]
    %v93 = vld [vmem:[%s1 + $0xd0] sm:$0xf]
    %v94 = vld [vmem:[%s1 + $0xd4] sm:$0xf]
    %v95 = vld [vmem:[%s1 + $0xd8] sm:$0xf]
    %v96 = vld [vmem:[%s1 + $0xdc] sm:$0xf]
    %v97 = vld [vmem:[%s1 + $0xe0] sm:$0xf]
    %v98 = vld [vmem:[%s1 + $0xe4] sm:$0xf]
    %v99 = vld [vmem:[%s1 + $0xe8] sm:$0xf]
    %v100 = vld [vmem:[%s1 + $0xec] sm:$0xf]
    %v101 = vld [vmem:[%s1 + $0xf0] sm:$0xf]
    %v102 = vld [vmem:[%s1 + $0xf4] sm:$0xf]
    %v103 = vld [vmem:[%s1 + $0xf8] sm:$0xf]
    %v104 = vld [vmem:[%s1 + $0xfc] sm:$0xf]
    %v105 = vld [vmem:[%s1 + $0x100] sm:$0xf]
    %v106 = vld [vmem:[%s1 + $0x104] sm:$0xf]
    %v107 = vld [vmem:[%s1 + $0x108] sm:$0xf]
    %v108 = vld [vmem:[%s1 + $0x10c] sm:$0xf]
    %v109 = vld [vmem:[%s1 + $0x110] sm:$0xf]
    %v110 = vld [vmem:[%s1 + $0x114] sm:$0xf]
    %v111 = vld [vmem:[%s1 + $0x118] sm:$0xf]
    %v112 = vld [vmem:[%s1 + $0x11c] sm:$0xf]
    %v113 = vld [vmem:[%s1 + $0x120] sm:$0xf]
    %v114 = vld [vmem:[%s1 + $0x124] sm:$0xf]
    %v115 = vld [vmem:[%s1 + $0x128] sm:$0xf]
    %v116 = vld [vmem:[%s1 + $0x12c] sm:$0xf]
    %v117 = vld [vmem:[%s1 + $0x130] sm:$0xf]
    %v118 = vld [vmem:[%s1 + $0x134] sm:$0xf]
    %v119 = vld [vmem:[%s1 + $0x138] sm:$0xf]
    %v120 = vld [vmem:[%s1 + $0x13c] sm:$0xf]
    %v127 = vunpack.c.l.b16 %v35
    %v128 = vunpack.c.h.b16 %v35
    %v129 = vunpack.c.l.b16 %v36
    %v130 = vunpack.c.h.b16 %v36
    %v131 = vunpack.c.l.b16 %v37
    %v132 = vunpack.c.l.b16 %v38
    %v133 = vunpack.c.h.b16 %v38
    %v134 = vunpack.c.l.b16 %v39
    %v135 = vunpack.c.h.b16 %v39
    %v136 = vunpack.c.l.b16 %v40
    %v137 = vpack.c.b16 %v132, %v127
    %v138 = vpack.c.b16 %v133, %v128
    %v139 = vpack.c.b16 %v134, %v129
    %v140 = vpack.c.b16 %v135, %v130
    %v141 = vpack.c.b16 %v136, %v131
    %v227 = vunpack.c.l.b16 %v41
    %v228 = vunpack.c.l.b16 %v42
    %v229 = vunpack.c.l.b16 %v43
    %v230 = vunpack.c.l.b16 %v44
    %v231 = vunpack.c.l.b16 %v45
    %v232 = vunpack.c.l.b16 %v46
    %v233 = vunpack.c.l.b16 %v47
    %v234 = vunpack.c.l.b16 %v48
    %v235 = vunpack.c.l.b16 %v49
    %v236 = vunpack.c.l.b16 %v50
    %v237 = vunpack.c.l.b16 %v51
    %v238 = vunpack.c.l.b16 %v52
    %v239 = vunpack.c.l.b16 %v53
    %v240 = vunpack.c.l.b16 %v54
    %v241 = vunpack.c.l.b16 %v55
    %v242 = vunpack.c.l.b16 %v56
    %v243 = vunpack.c.l.b16 %v57
    %v244 = vunpack.c.l.b16 %v58
    %v245 = vunpack.c.l.b16 %v59
    %v246 = vunpack.c.l.b16 %v60
    %v247 = vunpack.c.l.b16 %v61
    %v248 = vunpack.c.l.b16 %v62
    %v249 = vunpack.c.l.b16 %v63
    %v250 = vunpack.c.l.b16 %v64
    %v251 = vunpack.c.l.b16 %v65
    %v252 = vunpack.c.l.b16 %v66
    %v253 = vunpack.c.l.b16 %v67
    %v254 = vunpack.c.l.b16 %v68
    %v255 = vunpack.c.l.b16 %v69
    %v256 = vunpack.c.l.b16 %v70
    %v257 = vunpack.c.l.b16 %v71
    %v258 = vunpack.c.l.b16 %v72
    %v259 = vunpack.c.l.b16 %v73
    %v260 = vunpack.c.l.b16 %v74
    %v261 = vunpack.c.l.b16 %v75
    %v262 = vunpack.c.l.b16 %v76
    %v263 = vunpack.c.l.b16 %v77
    %v264 = vunpack.c.l.b16 %v78
    %v265 = vunpack.c.l.b16 %v79
    %v266 = vunpack.c.l.b16 %v80
    %v267 = vunpack.c.l.b16 %v81
    %v268 = vunpack.c.l.b16 %v82
    %v269 = vunpack.c.l.b16 %v83
    %v270 = vunpack.c.l.b16 %v84
    %v271 = vunpack.c.l.b16 %v85
    %v272 = vunpack.c.l.b16 %v86
    %v273 = vunpack.c.l.b16 %v87
    %v274 = vunpack.c.l.b16 %v88
    %v275 = vunpack.c.l.b16 %v89
    %v276 = vunpack.c.l.b16 %v90
    %v277 = vunpack.c.l.b16 %v91
    %v278 = vunpack.c.l.b16 %v92
    %v279 = vunpack.c.l.b16 %v93
    %v280 = vunpack.c.l.b16 %v94
    %v281 = vunpack.c.l.b16 %v95
    %v282 = vunpack.c.l.b16 %v96
    %v283 = vunpack.c.l.b16 %v97
    %v284 = vunpack.c.l.b16 %v98
    %v285 = vunpack.c.l.b16 %v99
    %v286 = vunpack.c.l.b16 %v100
    %v287 = vunpack.c.l.b16 %v101
    %v288 = vunpack.c.l.b16 %v102
    %v289 = vunpack.c.l.b16 %v103
    %v290 = vunpack.c.l.b16 %v104
    %v291 = vunpack.c.l.b16 %v105
    %v292 = vunpack.c.l.b16 %v106
    %v293 = vunpack.c.l.b16 %v107
    %v294 = vunpack.c.l.b16 %v108
    %v295 = vunpack.c.l.b16 %v109
    %v296 = vunpack.c.l.b16 %v110
    %v297 = vunpack.c.l.b16 %v111
    %v298 = vunpack.c.l.b16 %v112
    %v299 = vunpack.c.l.b16 %v113
    %v300 = vunpack.c.l.b16 %v114
    %v301 = vunpack.c.l.b16 %v115
    %v302 = vunpack.c.l.b16 %v116
    %v303 = vunpack.c.l.b16 %v117
    %v304 = vunpack.c.l.b16 %v118
    %v305 = vunpack.c.l.b16 %v119
    %v306 = vunpack.c.l.b16 %v120
    %v307 = vpack.c.b16 %v228, %v227
    %v308 = vpack.c.b16 %v230, %v229
    %v309 = vpack.c.b16 %v232, %v231
    %v310 = vpack.c.b16 %v234, %v233
    %v311 = vpack.c.b16 %v236, %v235
    %v312 = vpack.c.b16 %v238, %v237
    %v313 = vpack.c.b16 %v240, %v239
    %v314 = vpack.c.b16 %v242, %v241
    %v315 = vpack.c.b16 %v244, %v243
    %v316 = vpack.c.b16 %v246, %v245
    %v317 = vpack.c.b16 %v248, %v247
    %v318 = vpack.c.b16 %v250, %v249
    %v319 = vpack.c.b16 %v252, %v251
    %v320 = vpack.c.b16 %v254, %v253
    %v321 = vpack.c.b16 %v256, %v255
    %v322 = vpack.c.b16 %v258, %v257
    %v323 = vpack.c.b16 %v260, %v259
    %v324 = vpack.c.b16 %v262, %v261
    %v325 = vpack.c.b16 %v264, %v263
    %v326 = vpack.c.b16 %v266, %v265
    %v327 = vpack.c.b16 %v268, %v267
    %v328 = vpack.c.b16 %v270, %v269
    %v329 = vpack.c.b16 %v272, %v271
    %v330 = vpack.c.b16 %v274, %v273
    %v331 = vpack.c.b16 %v276, %v275
    %v332 = vpack.c.b16 %v278, %v277
    %v333 = vpack.c.b16 %v280, %v279
    %v334 = vpack.c.b16 %v282, %v281
    %v335 = vpack.c.b16 %v284, %v283
    %v336 = vpack.c.b16 %v286, %v285
    %v337 = vpack.c.b16 %v288, %v287
    %v338 = vpack.c.b16 %v290, %v289
    %v339 = vpack.c.b16 %v292, %v291
    %v340 = vpack.c.b16 %v294, %v293
    %v341 = vpack.c.b16 %v296, %v295
    %v342 = vpack.c.b16 %v298, %v297
    %v343 = vpack.c.b16 %v300, %v299
    %v344 = vpack.c.b16 %v302, %v301
    %v345 = vpack.c.b16 %v304, %v303
    %v346 = vpack.c.b16 %v306, %v305
    %387 = vmatprep.subr.bf16.mxu0 0
    %388 = vmatpush1.bf16.msra.mxu0 %v307
    %389 = vmatprep.subr.bf16.mxu0 0
    %390 = vmatpush1.bf16.msra.mxu0 %v308
    %391 = vmatprep.subr.bf16.mxu0 0
    %392 = vmatpush1.bf16.msra.mxu0 %v309
    %393 = vmatprep.subr.bf16.mxu0 0
    %394 = vmatpush1.bf16.msra.mxu0 %v310
    %395 = vmatprep.subr.bf16.mxu0 0
    %396 = vmatpush1.bf16.msra.mxu0 %v311
    %397 = vmatprep.subr.bf16.mxu0 0
    %398 = vmatpush1.bf16.msra.mxu0 %v312
    %399 = vmatprep.subr.bf16.mxu0 0
    %400 = vmatpush1.bf16.msra.mxu0 %v313
    %401 = vmatprep.subr.bf16.mxu0 0
    %402 = vmatpush1.bf16.msra.mxu0 %v314
    %403 = vmatprep.subr.bf16.mxu0 0
    %404 = vmatpush1.bf16.msra.mxu0 %v315
    %405 = vmatprep.subr.bf16.mxu0 0
    %406 = vmatpush1.bf16.msra.mxu0 %v316
    %407 = vmatprep.subr.bf16.mxu0 0
    %408 = vmatpush1.bf16.msra.mxu0 %v317
    %409 = vmatprep.subr.bf16.mxu0 0
    %410 = vmatpush1.bf16.msra.mxu0 %v318
    %411 = vmatprep.subr.bf16.mxu0 0
    %412 = vmatpush1.bf16.msra.mxu0 %v319
    %413 = vmatprep.subr.bf16.mxu0 0
    %414 = vmatpush1.bf16.msra.mxu0 %v320
    %415 = vmatprep.subr.bf16.mxu0 0
    %416 = vmatpush1.bf16.msra.mxu0 %v321
    %417 = vmatprep.subr.bf16.mxu0 0
    %418 = vmatpush1.bf16.msra.mxu0 %v322
    %419 = vmatprep.mubr.bf16.mxu0 %v138
    %420 = vmatmul.mubr.bf16.gmra.mrb[0].mxu0 %v137
    %v421 = vpop.f32.mrb[0].mxu0
    %v422 = vadd.f32 0.0, %v421
    %v423 = vpop.f32.mrb[0].mxu0
    %v424 = vpop.f32.mrb[0].mxu0
    %v425 = vadd.f32 0.0, %v424
    %v426 = vpop.f32.mrb[0].mxu0
    %427 = vdwg.mxu0
    %428 = vmatprep.subr.bf16.mxu0 0
    %429 = vmatpush1.bf16.msra.mxu0 %v323
    %430 = vmatprep.subr.bf16.mxu0 0
    %431 = vmatpush1.bf16.msra.mxu0 %v324
    %432 = vmatprep.subr.bf16.mxu0 0
    %433 = vmatpush1.bf16.msra.mxu0 %v325
    %434 = vmatprep.subr.bf16.mxu0 0
    %435 = vmatpush1.bf16.msra.mxu0 %v326
    %436 = vmatprep.subr.bf16.mxu0 0
    %437 = vmatpush1.bf16.msra.mxu0 %v327
    %438 = vmatprep.subr.bf16.mxu0 0
    %439 = vmatpush1.bf16.msra.mxu0 %v328
    %440 = vmatprep.subr.bf16.mxu0 0
    %441 = vmatpush1.bf16.msra.mxu0 %v329
    %442 = vmatprep.subr.bf16.mxu0 0
    %443 = vmatpush1.bf16.msra.mxu0 %v330
    %444 = vmatprep.subr.bf16.mxu0 0
    %445 = vmatpush1.bf16.msra.mxu0 %v331
    %446 = vmatprep.subr.bf16.mxu0 0
    %447 = vmatpush1.bf16.msra.mxu0 %v332
    %448 = vmatprep.subr.bf16.mxu0 0
    %449 = vmatpush1.bf16.msra.mxu0 %v333
    %450 = vmatprep.subr.bf16.mxu0 0
    %451 = vmatpush1.bf16.msra.mxu0 %v334
    %452 = vmatprep.subr.bf16.mxu0 0
    %453 = vmatpush1.bf16.msra.mxu0 %v335
    %454 = vmatprep.subr.bf16.mxu0 0
    %455 = vmatpush1.bf16.msra.mxu0 %v336
    %456 = vmatprep.subr.bf16.mxu0 0
    %457 = vmatpush1.bf16.msra.mxu0 %v337
    %458 = vmatprep.subr.bf16.mxu0 0
    %459 = vmatpush1.bf16.msra.mxu0 %v338
    %460 = vmatprep.mubr.bf16.mxu0 %v140
    %461 = vmatmul.mubr.bf16.gmra.mrb[0].mxu0 %v139
    %v462 = vpop.f32.mrb[0].mxu0
    %v463 = vadd.f32 %v422, %v462
    %v464 = vpop.f32.mrb[0].mxu0
    %v465 = vpop.f32.mrb[0].mxu0
    %v466 = vadd.f32 %v425, %v465
    %v467 = vpop.f32.mrb[0].mxu0
    %468 = vdwg.mxu0
    %469 = vmatprep.subr.bf16.mxu0 0
    %470 = vmatpush1.bf16.msra.mxu0 %v339
    %471 = vmatprep.subr.bf16.mxu0 0
    %472 = vmatpush1.bf16.msra.mxu0 %v340
    %473 = vmatprep.subr.bf16.mxu0 0
    %474 = vmatpush1.bf16.msra.mxu0 %v341
    %475 = vmatprep.subr.bf16.mxu0 0
    %476 = vmatpush1.bf16.msra.mxu0 %v342
    %477 = vmatprep.subr.bf16.mxu0 0
    %478 = vmatpush1.bf16.msra.mxu0 %v343
    %479 = vmatprep.subr.bf16.mxu0 0
    %480 = vmatpush1.bf16.msra.mxu0 %v344
    %481 = vmatprep.subr.bf16.mxu0 0
    %482 = vmatpush1.bf16.msra.mxu0 %v345
    %483 = vmatprep.subr.bf16.mxu0 0
    %484 = vmatpush1.bf16.msra.mxu0 %v346
    %485 = vmatprep.subr.bf16.mxu0 0
    %486 = vmatpush1.bf16.msra.mxu0 0
    %487 = vmatprep.subr.bf16.mxu0 0
    %488 = vmatpush1.bf16.msra.mxu0 0
    %489 = vmatprep.subr.bf16.mxu0 0
    %490 = vmatpush1.bf16.msra.mxu0 0
    %491 = vmatprep.subr.bf16.mxu0 0
    %492 = vmatpush1.bf16.msra.mxu0 0
    %493 = vmatprep.subr.bf16.mxu0 0
    %494 = vmatpush1.bf16.msra.mxu0 0
    %495 = vmatprep.subr.bf16.mxu0 0
    %496 = vmatpush1.bf16.msra.mxu0 0
    %497 = vmatprep.subr.bf16.mxu0 0
    %498 = vmatpush1.bf16.msra.mxu0 0
    %499 = vmatprep.subr.bf16.mxu0 0
    %500 = vmatpush1.bf16.msra.mxu0 0
    %501 = vmatprep.mubr.bf16.mxu0 0
    %502 = vmatmul.mubr.bf16.gmra.mrb[0].mxu0 %v141
    %v503 = vpop.f32.mrb[0].mxu0
    %v504 = vadd.f32 %v463, %v503
    %v505 = vpop.f32.mrb[0].mxu0
    %v506 = vpop.f32.mrb[0].mxu0
    %v507 = vadd.f32 %v466, %v506
    %v508 = vpop.f32.mrb[0].mxu0
    %509 = vdwg.mxu0
    %v510 = vadd.f32 %v33, %v504
    %v511 = vadd.f32 %v34, %v507
    %512 = vst [vmem:[#allocation2] sm:$0xff] %v510
    %513 = vst [vmem:[#allocation2 + $0x8] sm:$0xff] %v511
    // Predicated region
    $region22: #{elevation_convnet_forward.8} parent=1 // pred_check
      %p514 = pneg %p27
    $region23: #{elevation_convnet_forward.8} parent=1 // pred_check_branch
      %516 = sbr.rel (%p514) target = $region25
    $region24: #{elevation_convnet_forward.8} parent=1 // pred_region
      %v517 = vld [vmem:[#allocation2] sm:$0xff]
      %v518 = vld [vmem:[#allocation2 + $0x8] sm:$0xff]
      %v519 = vld [vmem:[#allocation3] sm:$0x1]
      %v521 = vlaneseq
      %v522 = vshrl.u32 %v521, 7
      %v523 = vsub.s32 0, %v522
      %v524 = vrot.slane %v519, %v523
      %v526 = vadd.f32 %v517, %v524
      %v527 = vadd.f32 %v518, %v524
      %v528 = vpack.c.bf16 %v527, %v526
      %v530 = vunpack.c.l.b16 %v528
      %v531 = vunpack.c.h.b16 %v528
      %v532 = vpack.c.b16 %v530, %v530
      %v533 = vpack.c.b16 %v531, %v531
      %536 = vst [vmem:[%s3] sm:$0xf] %v532
      %537 = vst [vmem:[%s3 + $0x4] sm:$0xf] %v533
    $region25: #{elevation_convnet_forward.8} parent=1 // pred_fallthru
      _
    // Predicated region
    $region26: #{elevation_convnet_forward.8} parent=1 // pred_check
      _
    $region27: #{elevation_convnet_forward.8} parent=1 // pred_check_branch
      %539 = sbr.rel (0) target = $region29
    $region28: #{elevation_convnet_forward.8} parent=1 // pred_region
      _
    $region29: #{elevation_convnet_forward.8} parent=1 // pred_fallthru
      _
    // Predicated region
    $region30: #{elevation_convnet_forward.8} parent=1 // pred_check
      _
    $region31: #{elevation_convnet_forward.8} parent=1 // pred_check_branch
      %541 = sbr.rel (0) target = $region33
    $region32: #{elevation_convnet_forward.8} parent=1 // pred_region
      _
    $region33: #{elevation_convnet_forward.8} parent=1 // pred_fallthru
      _
    %542 = vsyncpa [#allocation4], 1

// kernel: elevation_convnet_forward.10
$region0: #{elevation_convnet_forward.10}
  #allocation0 [shape = 'u32[]', space=smem, size = 0x4, offset = 0x4, fixed_abs, tag = 'smem constant byte address 0x4 - core index']
  #allocation1 [shape = 'u32[144,128]{1,0:T(1,128)}', space=vmem, size = 0x12000, scoped, tag = 'internal scratch']
  #allocation2 [shape = 'f32[16,256]{1,0:T(8,128)}', space=vmem, size = 0x4000, scoped, tag = 'scratch operand']
  %s0 = inlined_call_operand.vmem [shape: bf16[16,128], index: 0, kind: input, shape index: {}]
  %s1 = inlined_call_operand.vmem [shape: bf16[128,256], index: 1, kind: input, shape index: {}]
  %s2 = inlined_call_operand.hbm [shape: f32[1,256], index: 2, kind: input, shape index: {}]
  %s3 = inlined_call_operand.vmem [shape: bf16[16,256], index: 3, kind: output, shape index: {}]
  %s4 = sld [smem:[#allocation0]]
  $region34: #{elevation_convnet_forward.10} parent=0
    _
  %s6 = ssub.s32 1, %s4
  %s7 = scalar_select 0, %s6, %s4
  $region1: #{elevation_convnet_forward.10} parent=0
    #allocation3 [shape = 'u8[1024]{0}', space=vmem, size = 0x400, scoped, tag = 'input window, operand 2, single buffered']
    #allocation4 [shape = 's32[1]{0}', space=sflag, size = 0x4, scoped, tag = 'scoped memory for elevation_convnet_forward.10']
    %8 = vsyncpa [#allocation4], 0
    // Predicated region
    $region2: #{elevation_convnet_forward.10} parent=1 // pred_check
      _
    $region3: #{elevation_convnet_forward.10} parent=1 // pred_check_branch
      %10 = sbr.rel (0) target = $region5
    $region4: #{elevation_convnet_forward.10} parent=1 // pred_region
      _
    $region5: #{elevation_convnet_forward.10} parent=1 // pred_fallthru
      _
    // Predicated region
    $region6: #{elevation_convnet_forward.10} parent=1 // pred_check
      _
    $region7: #{elevation_convnet_forward.10} parent=1 // pred_check_branch
      %12 = sbr.rel (0) target = $region9
    $region8: #{elevation_convnet_forward.10} parent=1 // pred_region
      _
    $region9: #{elevation_convnet_forward.10} parent=1 // pred_fallthru
      _
    // Predicated region
    $region10: #{elevation_convnet_forward.10} parent=1 // pred_check
      _
    $region11: #{elevation_convnet_forward.10} parent=1 // pred_check_branch
      %14 = sbr.rel (0) target = $region13
    $region12: #{elevation_convnet_forward.10} parent=1 // pred_region
      %s16 = ssub.s32 32, 32
      %17 = vsyncadd [#allocation4], %s16
      %s19 = sshll.u32 [#allocation3], 4
      %s20 = int_to_ptr.vmem [resolvable:$true] %s19
      %22 = dma.hbm_to_vmem [thread:$0]  %s2, 32, %s20, [#allocation4]
    $region13: #{elevation_convnet_forward.10} parent=1 // pred_fallthru
      _
    // Predicated region
    $region14: #{elevation_convnet_forward.10} parent=1 // pred_check
      _
    $region15: #{elevation_convnet_forward.10} parent=1 // pred_check_branch
      %24 = sbr.rel (0) target = $region17
    $region16: #{elevation_convnet_forward.10} parent=1 // pred_region
      %25 = dma.done [#allocation4], 32
    $region17: #{elevation_convnet_forward.10} parent=1 // pred_fallthru
      _
    %p27 = scmp.eq.s32.totalorder 0, 0
    // Predicated region
    $region18: #{elevation_convnet_forward.10} parent=1 // pred_check
      %p28 = pneg %p27
    $region19: #{elevation_convnet_forward.10} parent=1 // pred_check_branch
      %30 = sbr.rel (%p28) target = $region21
    $region20: #{elevation_convnet_forward.10} parent=1 // pred_region
      %31 = vst [vmem:[#allocation2] sm:$0xff] 0.0
      %32 = vst [vmem:[#allocation2 + $0x8] sm:$0xff] 0.0
      %33 = vst [vmem:[#allocation2 + $0x10] sm:$0xff] 0.0
      %34 = vst [vmem:[#allocation2 + $0x18] sm:$0xff] 0.0
    $region21: #{elevation_convnet_forward.10} parent=1 // pred_fallthru
      _
    %v35 = vld [vmem:[#allocation2] sm:$0xff]
    %v36 = vld [vmem:[#allocation2 + $0x8] sm:$0xff]
    %v37 = vld [vmem:[#allocation2 + $0x10] sm:$0xff]
    %v38 = vld [vmem:[#allocation2 + $0x18] sm:$0xff]
    %v39 = vld [vmem:[%s0] sm:$0xf]
    %v40 = vld [vmem:[%s0 + $0x4] sm:$0xf]
    %v41 = vld [vmem:[%s1] sm:$0xff]
    %v42 = vld [vmem:[%s1 + $0x8] sm:$0xff]
    %v43 = vld [vmem:[%s1 + $0x10] sm:$0xff]
    %v44 = vld [vmem:[%s1 + $0x18] sm:$0xff]
    %v45 = vld [vmem:[%s1 + $0x20] sm:$0xff]
    %v46 = vld [vmem:[%s1 + $0x28] sm:$0xff]
    %v47 = vld [vmem:[%s1 + $0x30] sm:$0xff]
    %v48 = vld [vmem:[%s1 + $0x38] sm:$0xff]
    %v49 = vld [vmem:[%s1 + $0x40] sm:$0xff]
    %v50 = vld [vmem:[%s1 + $0x48] sm:$0xff]
    %v51 = vld [vmem:[%s1 + $0x50] sm:$0xff]
    %v52 = vld [vmem:[%s1 + $0x58] sm:$0xff]
    %v53 = vld [vmem:[%s1 + $0x60] sm:$0xff]
    %v54 = vld [vmem:[%s1 + $0x68] sm:$0xff]
    %v55 = vld [vmem:[%s1 + $0x70] sm:$0xff]
    %v56 = vld [vmem:[%s1 + $0x78] sm:$0xff]
    %v59 = vunpack.c.l.b16 %v39
    %v60 = vunpack.c.l.b16 %v40
    %v61 = vpack.c.b16 %v60, %v59
    %v79 = vunpack.c.l.b16 %v41
    %v80 = vunpack.c.h.b16 %v41
    %v81 = vunpack.c.l.b16 %v42
    %v82 = vunpack.c.h.b16 %v42
    %v83 = vunpack.c.l.b16 %v43
    %v84 = vunpack.c.h.b16 %v43
    %v85 = vunpack.c.l.b16 %v44
    %v86 = vunpack.c.h.b16 %v44
    %v87 = vunpack.c.l.b16 %v45
    %v88 = vunpack.c.h.b16 %v45
    %v89 = vunpack.c.l.b16 %v46
    %v90 = vunpack.c.h.b16 %v46
    %v91 = vunpack.c.l.b16 %v47
    %v92 = vunpack.c.h.b16 %v47
    %v93 = vunpack.c.l.b16 %v48
    %v94 = vunpack.c.h.b16 %v48
    %v95 = vunpack.c.l.b16 %v49
    %v96 = vunpack.c.h.b16 %v49
    %v97 = vunpack.c.l.b16 %v50
    %v98 = vunpack.c.h.b16 %v50
    %v99 = vunpack.c.l.b16 %v51
    %v100 = vunpack.c.h.b16 %v51
    %v101 = vunpack.c.l.b16 %v52
    %v102 = vunpack.c.h.b16 %v52
    %v103 = vunpack.c.l.b16 %v53
    %v104 = vunpack.c.h.b16 %v53
    %v105 = vunpack.c.l.b16 %v54
    %v106 = vunpack.c.h.b16 %v54
    %v107 = vunpack.c.l.b16 %v55
    %v108 = vunpack.c.h.b16 %v55
    %v109 = vunpack.c.l.b16 %v56
    %v110 = vunpack.c.h.b16 %v56
    %v111 = vpack.c.b16 %v81, %v79
    %v112 = vpack.c.b16 %v82, %v80
    %v113 = vpack.c.b16 %v85, %v83
    %v114 = vpack.c.b16 %v86, %v84
    %v115 = vpack.c.b16 %v89, %v87
    %v116 = vpack.c.b16 %v90, %v88
    %v117 = vpack.c.b16 %v93, %v91
    %v118 = vpack.c.b16 %v94, %v92
    %v119 = vpack.c.b16 %v97, %v95
    %v120 = vpack.c.b16 %v98, %v96
    %v121 = vpack.c.b16 %v101, %v99
    %v122 = vpack.c.b16 %v102, %v100
    %v123 = vpack.c.b16 %v105, %v103
    %v124 = vpack.c.b16 %v106, %v104
    %v125 = vpack.c.b16 %v109, %v107
    %v126 = vpack.c.b16 %v110, %v108
    %143 = vmatprep.subr.bf16.mxu0 %v112
    %144 = vmatpush1.bf16.msra.mxu0 %v111
    %145 = vmatprep.subr.bf16.mxu0 %v114
    %146 = vmatpush1.bf16.msra.mxu0 %v113
    %147 = vmatprep.subr.bf16.mxu0 %v116
    %148 = vmatpush1.bf16.msra.mxu0 %v115
    %149 = vmatprep.subr.bf16.mxu0 %v118
    %150 = vmatpush1.bf16.msra.mxu0 %v117
    %151 = vmatprep.subr.bf16.mxu0 %v120
    %152 = vmatpush1.bf16.msra.mxu0 %v119
    %153 = vmatprep.subr.bf16.mxu0 %v122
    %154 = vmatpush1.bf16.msra.mxu0 %v121
    %155 = vmatprep.subr.bf16.mxu0 %v124
    %156 = vmatpush1.bf16.msra.mxu0 %v123
    %157 = vmatprep.subr.bf16.mxu0 %v126
    %158 = vmatpush1.bf16.msra.mxu0 %v125
    %159 = vmatprep.subr.bf16.mxu0 0
    %160 = vmatpush1.bf16.msra.mxu0 0
    %161 = vmatprep.subr.bf16.mxu0 0
    %162 = vmatpush1.bf16.msra.mxu0 0
    %163 = vmatprep.subr.bf16.mxu0 0
    %164 = vmatpush1.bf16.msra.mxu0 0
    %165 = vmatprep.subr.bf16.mxu0 0
    %166 = vmatpush1.bf16.msra.mxu0 0
    %167 = vmatprep.subr.bf16.mxu0 0
    %168 = vmatpush1.bf16.msra.mxu0 0
    %169 = vmatprep.subr.bf16.mxu0 0
    %170 = vmatpush1.bf16.msra.mxu0 0
    %171 = vmatprep.subr.bf16.mxu0 0
    %172 = vmatpush1.bf16.msra.mxu0 0
    %173 = vmatprep.subr.bf16.mxu0 0
    %174 = vmatpush1.bf16.msra.mxu0 0
    %175 = vmatprep.mubr.bf16.mxu0 0
    %176 = vmatmul.mubr.bf16.gmra.mrb[0].mxu0 %v61
    %v177 = vpop.f32.mrb[0].mxu0
    %v178 = vadd.f32 0.0, %v177
    %v179 = vpop.f32.mrb[0].mxu0
    %v180 = vadd.f32 0.0, %v179
    %v181 = vpop.f32.mrb[0].mxu0
    %v182 = vadd.f32 0.0, %v181
    %v183 = vpop.f32.mrb[0].mxu0
    %v184 = vadd.f32 0.0, %v183
    %185 = vdwg.mxu0
    %v186 = vadd.f32 %v35, %v178
    %v187 = vadd.f32 %v36, %v180
    %v188 = vadd.f32 %v37, %v182
    %v189 = vadd.f32 %v38, %v184
    %190 = vst [vmem:[#allocation2] sm:$0xff] %v186
    %191 = vst [vmem:[#allocation2 + $0x8] sm:$0xff] %v187
    %192 = vst [vmem:[#allocation2 + $0x10] sm:$0xff] %v188
    %193 = vst [vmem:[#allocation2 + $0x18] sm:$0xff] %v189
    // Predicated region
    $region22: #{elevation_convnet_forward.10} parent=1 // pred_check
      %p194 = pneg %p27
    $region23: #{elevation_convnet_forward.10} parent=1 // pred_check_branch
      %196 = sbr.rel (%p194) target = $region25
    $region24: #{elevation_convnet_forward.10} parent=1 // pred_region
      %v197 = vld [vmem:[#allocation2] sm:$0xff]
      %v198 = vld [vmem:[#allocation2 + $0x8] sm:$0xff]
      %v199 = vld [vmem:[#allocation2 + $0x10] sm:$0xff]
      %v200 = vld [vmem:[#allocation2 + $0x18] sm:$0xff]
      %v201 = vld [vmem:[#allocation3] sm:$0x3]
      %v203 = vlaneseq
      %v204 = vshrl.u32 %v203, 7
      %v205 = vsub.s32 0, %v204
      %v206 = vrot.slane %v201, %v205
      %v207 = vlaneseq
      %v208 = vshrl.u32 %v207, 7
      %v209 = vsub.s32 1, %v208
      %v210 = vrot.slane %v201, %v209
      %v213 = vadd.f32 %v197, %v206
      %v214 = vadd.f32 %v198, %v210
      %v215 = vadd.f32 %v199, %v206
      %v216 = vadd.f32 %v200, %v210
      %v217 = vpack.c.bf16 %v215, %v213
      %v218 = vpack.c.bf16 %v216, %v214
      %v221 = vunpack.c.l.b16 %v217
      %v222 = vunpack.c.l.b16 %v218
      %v223 = vunpack.c.h.b16 %v217
      %v224 = vunpack.c.h.b16 %v218
      %v225 = vpack.c.b16 %v222, %v221
      %v226 = vpack.c.b16 %v224, %v223
      %229 = vst [vmem:[%s3] sm:$0xff] %v225
      %230 = vst [vmem:[%s3 + $0x8] sm:$0xff] %v226
    $region25: #{elevation_convnet_forward.10} parent=1 // pred_fallthru
      _
    // Predicated region
    $region26: #{elevation_convnet_forward.10} parent=1 // pred_check
      _
    $region27: #{elevation_convnet_forward.10} parent=1 // pred_check_branch
      %232 = sbr.rel (0) target = $region29
    $region28: #{elevation_convnet_forward.10} parent=1 // pred_region
      _
    $region29: #{elevation_convnet_forward.10} parent=1 // pred_fallthru
      _
    // Predicated region
    $region30: #{elevation_convnet_forward.10} parent=1 // pred_check
      _
    $region31: #{elevation_convnet_forward.10} parent=1 // pred_check_branch
      %234 = sbr.rel (0) target = $region33
    $region32: #{elevation_convnet_forward.10} parent=1 // pred_region
      _
    $region33: #{elevation_convnet_forward.10} parent=1 // pred_fallthru
      _
    %235 = vsyncpa [#allocation4], 1

// kernel: elevation_convnet_forward.11
$region0: #{elevation_convnet_forward.11}
  #allocation0 [shape = 'u32[]', space=smem, size = 0x4, offset = 0x4, fixed_abs, tag = 'smem constant byte address 0x4 - core index']
  #allocation1 [shape = 'u32[144,128]{1,0:T(1,128)}', space=vmem, size = 0x12000, scoped, tag = 'internal scratch']
  #allocation2 [shape = 'f32[16,512]{1,0:T(8,128)}', space=vmem, size = 0x8000, scoped, tag = 'scratch operand']
  %s0 = inlined_call_operand.vmem [shape: bf16[16,256], index: 0, kind: input, shape index: {}]
  %s1 = inlined_call_operand.vmem [shape: bf16[256,14848], index: 1, kind: input, shape index: {}]
  %s2 = inlined_call_operand.vmem [shape: f32[1,14848], index: 2, kind: input, shape index: {}]
  %s3 = inlined_call_operand.vmem [shape: f32[16,14848], index: 3, kind: output, shape index: {}]
  %s4 = sld [smem:[#allocation0]]
  $region95: #{elevation_convnet_forward.11} parent=0
    _
  %s6 = ssub.s32 1, %s4
  %s7 = scalar_select 0, %s6, %s4
  $region1: #{elevation_convnet_forward.11} parent=0
    #allocation3 [shape = 'u8[524288]{0}', space=vmem, size = 0x80000, scoped, tag = 'input window, operand 1']
    #allocation4 [shape = 'u8[65536]{0}', space=vmem, size = 0x10000, scoped, tag = 'output window, operand 0']
    loop: start=0, step=1, limit=31
    $region2: #{elevation_convnet_forward.11} parent=1 // loop_pre_header
      _
    $region3: #{elevation_convnet_forward.11} parent=1 // loop_header
      %s9 = sphi 0, %s13
      %p10 = scmp.ge.s32.totalorder %s9, 31
      %s16 = sphi 0, %s35
      %s17 = sphi 0, %s31
      %s18 = sphi 0, %s27
      %s19 = sphi 0, %s16
      %s20 = sphi 0, %s17
      %s21 = sphi 0, %s18
      %s22 = sphi 0, %s19
      %s23 = sphi 0, %s20
      %s24 = sphi 0, %s21
      %s40 = sphi 0, %s42
      %s43 = sphi 0, %s40
      %s44 = sphi 0, %s43
      %s60 = sphi 0, %s44
      %s68 = sphi 0, %s70
      %s71 = sphi 0, %s68
      %s72 = sphi 0, %s71
      %s88 = sphi 0, %s72
      %s94 = sphi 0, %s96
      %s97 = sphi 0, %s94
      %s98 = sphi 0, %s97
      %s114 = sphi 0, %s98
      %s122 = sphi 0, %s124
      %s125 = sphi 0, %s122
      %s126 = sphi 0, %s125
      %s142 = sphi 0, %s126
    $region4: #{elevation_convnet_forward.11} parent=1 // loop_header_branch
      %12 = sbr.rel (%p10) target = $region8
    $region5: #{elevation_convnet_forward.11} parent=1 // loop_body
      %s14 = ssub.s32 %s9, 1
      %s15 = ssub.s32 %s9, 2
      %s25 = sadd.s32 1, %s18
      %p26 = scmp.ge.s32.totalorder %s25, 1
      %s27 = scalar_select %p26, 0, %s25
      %s28 = sadd.s32 1, %s17
      %s29 = scalar_select %p26, %s28, %s17
      %p30 = scmp.ge.s32.totalorder %s29, 29
      %s31 = scalar_select %p30, 0, %s29
      %s32 = sadd.s32 1, %s16
      %s33 = scalar_select %p30, %s32, %s16
      %p34 = scmp.ge.s32.totalorder %s33, 1
      %s35 = scalar_select %p34, 0, %s33
      %s36 = ssub.s32 %s16, %s35
      %s37 = ssub.s32 %s18, %s27
      %s38 = sor.u32 %s36, %s37
      %p39 = scmp.eq.s32.totalorder %s38, 0
      %s41 = sadd.s32 %s40, 1
      %s42 = scalar_select %p39, %s40, %s41
      %p45 = pneg %p39
      %p46 = scmp.eq.s32.totalorder %s9, 28
      %p47 = por %p45, %p46
      %p48 = scmp.ne.s32.totalorder %s40, %s43
      %p49 = scmp.eq.s32.totalorder %s9, 0
      %p50 = por %p48, %p49
      %p51 = scmp.ne.s32.totalorder %s40, %s43
      %p52 = scmp.eq.s32.totalorder %s14, 28
      %p53 = por %p51, %p52
      %p54 = scmp.ne.s32.totalorder %s43, %s44
      %p55 = scmp.eq.s32.totalorder %s14, 0
      %p56 = por %p54, %p55
      %p57 = scmp.ne.s32.totalorder %s43, %s44
      %p58 = scmp.eq.s32.totalorder %s15, 28
      %p59 = por %p57, %p58
      %p61 = scmp.ne.s32.totalorder %s44, %s60
      %p62 = scmp.eq.s32.totalorder %s15, 0
      %p63 = por %p61, %p62
      %s64 = ssub.s32 %s18, %s27
      %s65 = ssub.s32 %s17, %s31
      %s66 = sor.u32 %s64, %s65
      %p67 = scmp.eq.s32.totalorder %s66, 0
      %s69 = sadd.s32 %s68, 1
      %s70 = scalar_select %p67, %s68, %s69
      %p73 = pneg %p67
      %p74 = scmp.eq.s32.totalorder %s9, 28
      %p75 = por %p73, %p74
      %p76 = scmp.ne.s32.totalorder %s68, %s71
      %p77 = scmp.eq.s32.totalorder %s9, 0
      %p78 = por %p76, %p77
      %p79 = scmp.ne.s32.totalorder %s68, %s71
      %p80 = scmp.eq.s32.totalorder %s14, 28
      %p81 = por %p79, %p80
      %p82 = scmp.ne.s32.totalorder %s71, %s72
      %p83 = scmp.eq.s32.totalorder %s14, 0
      %p84 = por %p82, %p83
      %p85 = scmp.ne.s32.totalorder %s71, %s72
      %p86 = scmp.eq.s32.totalorder %s15, 28
      %p87 = por %p85, %p86
      %p89 = scmp.ne.s32.totalorder %s72, %s88
      %p90 = scmp.eq.s32.totalorder %s15, 0
      %p91 = por %p89, %p90
      %s92 = ssub.s32 %s17, %s31
      %p93 = scmp.eq.s32.totalorder %s92, 0
      %s95 = sadd.s32 %s94, 1
      %s96 = scalar_select %p93, %s94, %s95
      %p99 = pneg %p93
      %p100 = scmp.eq.s32.totalorder %s9, 28
      %p101 = por %p99, %p100
      %p102 = scmp.ne.s32.totalorder %s94, %s97
      %p103 = scmp.eq.s32.totalorder %s9, 0
      %p104 = por %p102, %p103
      %p105 = scmp.ne.s32.totalorder %s94, %s97
      %p106 = scmp.eq.s32.totalorder %s14, 28
      %p107 = por %p105, %p106
      %p108 = scmp.ne.s32.totalorder %s97, %s98
      %p109 = scmp.eq.s32.totalorder %s14, 0
      %p110 = por %p108, %p109
      %p111 = scmp.ne.s32.totalorder %s97, %s98
      %p112 = scmp.eq.s32.totalorder %s15, 28
      %p113 = por %p111, %p112
      %p115 = scmp.ne.s32.totalorder %s98, %s114
      %p116 = scmp.eq.s32.totalorder %s15, 0
      %p117 = por %p115, %p116
      %s118 = ssub.s32 %s16, %s35
      %s119 = ssub.s32 %s17, %s31
      %s120 = sor.u32 %s118, %s119
      %p121 = scmp.eq.s32.totalorder %s120, 0
      %s123 = sadd.s32 %s122, 1
      %s124 = scalar_select %p121, %s122, %s123
      %p127 = pneg %p121
      %p128 = scmp.eq.s32.totalorder %s9, 28
      %p129 = por %p127, %p128
      %p130 = scmp.ne.s32.totalorder %s122, %s125
      %p131 = scmp.eq.s32.totalorder %s9, 0
      %p132 = por %p130, %p131
      %p133 = scmp.ne.s32.totalorder %s122, %s125
      %p134 = scmp.eq.s32.totalorder %s14, 28
      %p135 = por %p133, %p134
      %p136 = scmp.ne.s32.totalorder %s125, %s126
      %p137 = scmp.eq.s32.totalorder %s14, 0
      %p138 = por %p136, %p137
      %p139 = scmp.ne.s32.totalorder %s125, %s126
      %p140 = scmp.eq.s32.totalorder %s15, 28
      %p141 = por %p139, %p140
      %p143 = scmp.ne.s32.totalorder %s126, %s142
      %p144 = scmp.eq.s32.totalorder %s15, 0
      %p145 = por %p143, %p144
      %p146 = scmp.le.s32.totalorder 1, %s9
      %p147 = scmp.lt.s32.totalorder %s9, 30
      %p148 = pnand %p146, %p147
      %p149 = pneg %p148
      // Predicated region
      $region9: #{elevation_convnet_forward.11} parent=5 // pred_check
        _
      $region10: #{elevation_convnet_forward.11} parent=5 // pred_check_branch
        %151 = sbr.rel (%p148) target = $region12
      $region11: #{elevation_convnet_forward.11} parent=5 // pred_region
        %s152 = ssub.s32 %s9, 1
        // Predicated region
        $region13: #{elevation_convnet_forward.11} parent=11 // pred_check
          %p153 = pneg %p56
        $region14: #{elevation_convnet_forward.11} parent=11 // pred_check_branch
          %155 = sbr.rel (%p153) target = $region16
        $region15: #{elevation_convnet_forward.11} parent=11 // pred_region
          %s156 = smul.u32 2, %s19
          %s157 = smul.u32 2, %s21
          %p158 = scmp.lt.s32.totalorder %s156, 1
          %s159 = scalar_select %p158, %s156, 1
          %p160 = scmp.lt.s32.totalorder %s157, 1
          %s161 = scalar_select %p160, %s157, 1
          %s162 = smul.addr %s159, 2
          %s163 = sadd.s32 %s161, %s162
          %s164 = smul.addr %s163, 4
          %s165 = scalar_lea.vmem %s0, %s164
          %s166 = smul.u32 2, %s19
          %s167 = smul.u32 2, %s21
        $region16: #{elevation_convnet_forward.11} parent=11 // pred_fallthru
          _
      $region12: #{elevation_convnet_forward.11} parent=5 // pred_fallthru
        _
      %p168 = scmp.lt.s32.totalorder %s9, 29
      // Predicated region
      $region17: #{elevation_convnet_forward.11} parent=5 // pred_check
        %p169 = pneg %p168
      $region18: #{elevation_convnet_forward.11} parent=5 // pred_check_branch
        %171 = sbr.rel (%p169) target = $region20
      $region19: #{elevation_convnet_forward.11} parent=5 // pred_region
        // Predicated region
        $region21: #{elevation_convnet_forward.11} parent=19 // pred_check
          %p172 = pneg %p78
        $region22: #{elevation_convnet_forward.11} parent=19 // pred_check_branch
          %174 = sbr.rel (%p172) target = $region24
        $region23: #{elevation_convnet_forward.11} parent=19 // pred_region
          %s175 = sand.u32 %s68, 1
          %s176 = sand.u32 %s68, 1
          %s177 = smul.addr %s176, 512
          %s178 = scalar_lea.vmem [#allocation3], %s177
          %s179 = smul.u32 32, %s18
          %s180 = smul.u32 4, %s17
          %s181 = smul.addr %s179, 116
          %s182 = sadd.s32 %s180, %s181
          %s183 = smul.addr %s182, 4
          %s184 = scalar_lea.vmem %s1, %s183
          // Predicated region
          $region25: #{elevation_convnet_forward.11} parent=23 // pred_check
            _
          $region26: #{elevation_convnet_forward.11} parent=23 // pred_check_branch
            %186 = sbr.rel (0) target = $region28
          $region27: #{elevation_convnet_forward.11} parent=23 // pred_region
            // Predicated region
            $region29: #{elevation_convnet_forward.11} parent=27 // pred_check
              _
            $region30: #{elevation_convnet_forward.11} parent=27 // pred_check_branch
              %188 = sbr.rel (0) target = $region32
            $region31: #{elevation_convnet_forward.11} parent=27 // pred_region
              loop: start=0, step=1, limit=1
              $region33: #{elevation_convnet_forward.11} parent=31 // loop_pre_header
                _
              $region34: #{elevation_convnet_forward.11} parent=31 // loop_header
                %s190 = sphi 0, %s194
                %p191 = scmp.ge.s32.totalorder %s190, 1
                %s195 = sphi %s184, %s184
                %s196 = sphi %s178, %s178
              $region35: #{elevation_convnet_forward.11} parent=31 // loop_header_branch
                %193 = sbr.rel (%p191) target = $region39
              $region36: #{elevation_convnet_forward.11} parent=31 // loop_body
                %v197 = vld [vmem:[%s195] sm:$0xff]
                %198 = vst [vmem:[%s196] sm:$0xff] %v197
                %v199 = vld [vmem:[%s195 + $0x8] sm:$0xff]
                %200 = vst [vmem:[%s196 + $0x8] sm:$0xff] %v199
                %v201 = vld [vmem:[%s195 + $0x1d0] sm:$0xff]
                %202 = vst [vmem:[%s196 + $0x10] sm:$0xff] %v201
                %v203 = vld [vmem:[%s195 + $0x1d8] sm:$0xff]
                %204 = vst [vmem:[%s196 + $0x18] sm:$0xff] %v203
                %v205 = vld [vmem:[%s195 + $0x3a0] sm:$0xff]
                %206 = vst [vmem:[%s196 + $0x20] sm:$0xff] %v205
                %v207 = vld [vmem:[%s195 + $0x3a8] sm:$0xff]
                %208 = vst [vmem:[%s196 + $0x28] sm:$0xff] %v207
                %v209 = vld [vmem:[%s195 + $0x570] sm:$0xff]
                %210 = vst [vmem:[%s196 + $0x30] sm:$0xff] %v209
                %v211 = vld [vmem:[%s195 + $0x578] sm:$0xff]
                %212 = vst [vmem:[%s196 + $0x38] sm:$0xff] %v211
                %v213 = vld [vmem:[%s195 + $0x740] sm:$0xff]
                %214 = vst [vmem:[%s196 + $0x40] sm:$0xff] %v213
                %v215 = vld [vmem:[%s195 + $0x748] sm:$0xff]
                %216 = vst [vmem:[%s196 + $0x48] sm:$0xff] %v215
                %v217 = vld [vmem:[%s195 + $0x910] sm:$0xff]
                %218 = vst [vmem:[%s196 + $0x50] sm:$0xff] %v217
                %v219 = vld [vmem:[%s195 + $0x918] sm:$0xff]
                %220 = vst [vmem:[%s196 + $0x58] sm:$0xff] %v219
                %v221 = vld [vmem:[%s195 + $0xae0] sm:$0xff]
                %222 = vst [vmem:[%s196 + $0x60] sm:$0xff] %v221
                %v223 = vld [vmem:[%s195 + $0xae8] sm:$0xff]
                %224 = vst [vmem:[%s196 + $0x68] sm:$0xff] %v223
                %v225 = vld [vmem:[%s195 + $0xcb0] sm:$0xff]
                %226 = vst [vmem:[%s196 + $0x70] sm:$0xff] %v225
                %v227 = vld [vmem:[%s195 + $0xcb8] sm:$0xff]
                %228 = vst [vmem:[%s196 + $0x78] sm:$0xff] %v227
                %v229 = vld [vmem:[%s195 + $0xe80] sm:$0xff]
                %230 = vst [vmem:[%s196 + $0x80] sm:$0xff] %v229
                %v231 = vld [vmem:[%s195 + $0xe88] sm:$0xff]
                %232 = vst [vmem:[%s196 + $0x88] sm:$0xff] %v231
                %v233 = vld [vmem:[%s195 + $0x1050] sm:$0xff]
                %234 = vst [vmem:[%s196 + $0x90] sm:$0xff] %v233
                %v235 = vld [vmem:[%s195 + $0x1058] sm:$0xff]
                %236 = vst [vmem:[%s196 + $0x98] sm:$0xff] %v235
                %v237 = vld [vmem:[%s195 + $0x1220] sm:$0xff]
                %238 = vst [vmem:[%s196 + $0xa0] sm:$0xff] %v237
                %v239 = vld [vmem:[%s195 + $0x1228] sm:$0xff]
                %240 = vst [vmem:[%s196 + $0xa8] sm:$0xff] %v239
                %v241 = vld [vmem:[%s195 + $0x13f0] sm:$0xff]
                %242 = vst [vmem:[%s196 + $0xb0] sm:$0xff] %v241
                %v243 = vld [vmem:[%s195 + $0x13f8] sm:$0xff]
                %244 = vst [vmem:[%s196 + $0xb8] sm:$0xff] %v243
                %v245 = vld [vmem:[%s195 + $0x15c0] sm:$0xff]
                %246 = vst [vmem:[%s196 + $0xc0] sm:$0xff] %v245
                %v247 = vld [vmem:[%s195 + $0x15c8] sm:$0xff]
                %248 = vst [vmem:[%s196 + $0xc8] sm:$0xff] %v247
                %v249 = vld [vmem:[%s195 + $0x1790] sm:$0xff]
                %250 = vst [vmem:[%s196 + $0xd0] sm:$0xff] %v249
                %v251 = vld [vmem:[%s195 + $0x1798] sm:$0xff]
                %252 = vst [vmem:[%s196 + $0xd8] sm:$0xff] %v251
                %v253 = vld [vmem:[%s195 + $0x1960] sm:$0xff]
                %254 = vst [vmem:[%s196 + $0xe0] sm:$0xff] %v253
                %v255 = vld [vmem:[%s195 + $0x1968] sm:$0xff]
                %256 = vst [vmem:[%s196 + $0xe8] sm:$0xff] %v255
                %v257 = vld [vmem:[%s195 + $0x1b30] sm:$0xff]
                %258 = vst [vmem:[%s196 + $0xf0] sm:$0xff] %v257
                %v259 = vld [vmem:[%s195 + $0x1b38] sm:$0xff]
                %260 = vst [vmem:[%s196 + $0xf8] sm:$0xff] %v259
                %v261 = vld [vmem:[%s195 + $0x1d00] sm:$0xff]
                %262 = vst [vmem:[%s196 + $0x100] sm:$0xff] %v261
                %v263 = vld [vmem:[%s195 + $0x1d08] sm:$0xff]
                %264 = vst [vmem:[%s196 + $0x108] sm:$0xff] %v263
                %v265 = vld [vmem:[%s195 + $0x1ed0] sm:$0xff]
                %266 = vst [vmem:[%s196 + $0x110] sm:$0xff] %v265
                %v267 = vld [vmem:[%s195 + $0x1ed8] sm:$0xff]
                %268 = vst [vmem:[%s196 + $0x118] sm:$0xff] %v267
                %v269 = vld [vmem:[%s195 + $0x20a0] sm:$0xff]
                %270 = vst [vmem:[%s196 + $0x120] sm:$0xff] %v269
                %v271 = vld [vmem:[%s195 + $0x20a8] sm:$0xff]
                %272 = vst [vmem:[%s196 + $0x128] sm:$0xff] %v271
                %v273 = vld [vmem:[%s195 + $0x2270] sm:$0xff]
                %274 = vst [vmem:[%s196 + $0x130] sm:$0xff] %v273
                %v275 = vld [vmem:[%s195 + $0x2278] sm:$0xff]
                %276 = vst [vmem:[%s196 + $0x138] sm:$0xff] %v275
                %v277 = vld [vmem:[%s195 + $0x2440] sm:$0xff]
                %278 = vst [vmem:[%s196 + $0x140] sm:$0xff] %v277
                %v279 = vld [vmem:[%s195 + $0x2448] sm:$0xff]
                %280 = vst [vmem:[%s196 + $0x148] sm:$0xff] %v279
                %v281 = vld [vmem:[%s195 + $0x2610] sm:$0xff]
                %282 = vst [vmem:[%s196 + $0x150] sm:$0xff] %v281
                %v283 = vld [vmem:[%s195 + $0x2618] sm:$0xff]
                %284 = vst [vmem:[%s196 + $0x158] sm:$0xff] %v283
                %v285 = vld [vmem:[%s195 + $0x27e0] sm:$0xff]
                %286 = vst [vmem:[%s196 + $0x160] sm:$0xff] %v285
                %v287 = vld [vmem:[%s195 + $0x27e8] sm:$0xff]
                %288 = vst [vmem:[%s196 + $0x168] sm:$0xff] %v287
                %v289 = vld [vmem:[%s195 + $0x29b0] sm:$0xff]
                %290 = vst [vmem:[%s196 + $0x170] sm:$0xff] %v289
                %v291 = vld [vmem:[%s195 + $0x29b8] sm:$0xff]
                %292 = vst [vmem:[%s196 + $0x178] sm:$0xff] %v291
                %v293 = vld [vmem:[%s195 + $0x2b80] sm:$0xff]
                %294 = vst [vmem:[%s196 + $0x180] sm:$0xff] %v293
                %v295 = vld [vmem:[%s195 + $0x2b88] sm:$0xff]
                %296 = vst [vmem:[%s196 + $0x188] sm:$0xff] %v295
                %v297 = vld [vmem:[%s195 + $0x2d50] sm:$0xff]
                %298 = vst [vmem:[%s196 + $0x190] sm:$0xff] %v297
                %v299 = vld [vmem:[%s195 + $0x2d58] sm:$0xff]
                %300 = vst [vmem:[%s196 + $0x198] sm:$0xff] %v299
                %v301 = vld [vmem:[%s195 + $0x2f20] sm:$0xff]
                %302 = vst [vmem:[%s196 + $0x1a0] sm:$0xff] %v301
                %v303 = vld [vmem:[%s195 + $0x2f28] sm:$0xff]
                %304 = vst [vmem:[%s196 + $0x1a8] sm:$0xff] %v303
                %v305 = vld [vmem:[%s195 + $0x30f0] sm:$0xff]
                %306 = vst [vmem:[%s196 + $0x1b0] sm:$0xff] %v305
                %v307 = vld [vmem:[%s195 + $0x30f8] sm:$0xff]
                %308 = vst [vmem:[%s196 + $0x1b8] sm:$0xff] %v307
                %v309 = vld [vmem:[%s195 + $0x32c0] sm:$0xff]
                %310 = vst [vmem:[%s196 + $0x1c0] sm:$0xff] %v309
                %v311 = vld [vmem:[%s195 + $0x32c8] sm:$0xff]
                %312 = vst [vmem:[%s196 + $0x1c8] sm:$0xff] %v311
                %v313 = vld [vmem:[%s195 + $0x3490] sm:$0xff]
                %314 = vst [vmem:[%s196 + $0x1d0] sm:$0xff] %v313
                %v315 = vld [vmem:[%s195 + $0x3498] sm:$0xff]
                %316 = vst [vmem:[%s196 + $0x1d8] sm:$0xff] %v315
                %v317 = vld [vmem:[%s195 + $0x3660] sm:$0xff]
                %318 = vst [vmem:[%s196 + $0x1e0] sm:$0xff] %v317
                %v319 = vld [vmem:[%s195 + $0x3668] sm:$0xff]
                %320 = vst [vmem:[%s196 + $0x1e8] sm:$0xff] %v319
                %v321 = vld [vmem:[%s195 + $0x3830] sm:$0xff]
                %322 = vst [vmem:[%s196 + $0x1f0] sm:$0xff] %v321
                %v323 = vld [vmem:[%s195 + $0x3838] sm:$0xff]
                %324 = vst [vmem:[%s196 + $0x1f8] sm:$0xff] %v323
              $region37: #{elevation_convnet_forward.11} parent=31 // loop_footer
                %s194 = sadd.s32 1, %s190
              $region38: #{elevation_convnet_forward.11} parent=31 // loop_footer_branch
                %189 = sbr.rel target = $region34
              $region39: #{elevation_convnet_forward.11} parent=31 // loop_exit
                _
            $region32: #{elevation_convnet_forward.11} parent=27 // pred_fallthru
              _
            // Predicated region
            $region40: #{elevation_convnet_forward.11} parent=27 // pred_check
              _
            $region41: #{elevation_convnet_forward.11} parent=27 // pred_check_branch
              %326 = sbr.rel target = $region43
            $region42: #{elevation_convnet_forward.11} parent=27 // pred_region
              _
            $region43: #{elevation_convnet_forward.11} parent=27 // pred_fallthru
              _
          $region28: #{elevation_convnet_forward.11} parent=23 // pred_fallthru
            _
          %327 = vnop
        $region24: #{elevation_convnet_forward.11} parent=19 // pred_fallthru
          _
        // Predicated region
        $region44: #{elevation_convnet_forward.11} parent=19 // pred_check
          %p328 = pneg %p104
        $region45: #{elevation_convnet_forward.11} parent=19 // pred_check_branch
          %330 = sbr.rel (%p328) target = $region47
        $region46: #{elevation_convnet_forward.11} parent=19 // pred_region
          %s331 = smul.u32 4, %s17
          %p332 = scmp.lt.s32.totalorder %s331, 115
          %s333 = scalar_select %p332, %s331, 115
          %s334 = scalar_lea.vmem %s2, %s333
          %s335 = smul.u32 4, %s17
        $region47: #{elevation_convnet_forward.11} parent=19 // pred_fallthru
          _
      $region20: #{elevation_convnet_forward.11} parent=5 // pred_fallthru
        _
      %p336 = scmp.le.s32.totalorder 1, %s9
      %p337 = scmp.lt.s32.totalorder %s9, 30
      %p338 = pnand %p336, %p337
      %p339 = pneg %p338
      // Predicated region
      $region48: #{elevation_convnet_forward.11} parent=5 // pred_check
        _
      $region49: #{elevation_convnet_forward.11} parent=5 // pred_check_branch
        %341 = sbr.rel (%p338) target = $region51
      $region50: #{elevation_convnet_forward.11} parent=5 // pred_region
        %s342 = ssub.s32 %s9, 1
        %s343 = sand.u32 %s71, 1
        %s344 = sand.u32 %s71, 1
        %s345 = smul.addr %s344, 512
        %s346 = scalar_lea.vmem [#allocation3], %s345
        // Predicated region
        $region52: #{elevation_convnet_forward.11} parent=50 // pred_check
          %p347 = pneg %p84
        $region53: #{elevation_convnet_forward.11} parent=50 // pred_check_branch
          %349 = sbr.rel (%p347) target = $region55
        $region54: #{elevation_convnet_forward.11} parent=50 // pred_region
          _
        $region55: #{elevation_convnet_forward.11} parent=50 // pred_fallthru
          _
        %s350 = smul.u32 2, %s19
        %s351 = smul.u32 2, %s21
        %p352 = scmp.lt.s32.totalorder %s350, 1
        %s353 = scalar_select %p352, %s350, 1
        %p354 = scmp.lt.s32.totalorder %s351, 1
        %s355 = scalar_select %p354, %s351, 1
        %s356 = smul.addr %s353, 2
        %s357 = sadd.s32 %s355, %s356
        %s358 = smul.addr %s357, 4
        %s359 = scalar_lea.vmem %s0, %s358
        %p360 = pneg %p56
        %p361 = pneg %p53
        %s362 = sand.u32 %s71, 1
        %s363 = sand.u32 %s71, 1
        %s364 = smul.addr %s363, 512
        %s365 = scalar_lea.vmem [#allocation3], %s364
        %p366 = pneg %p84
        %p367 = pneg %p81
        %s368 = smul.u32 4, %s20
        %p369 = scmp.lt.s32.totalorder %s368, 115
        %s370 = scalar_select %p369, %s368, 115
        %s371 = scalar_lea.vmem %s2, %s370
        %p372 = pneg %p110
        %p373 = pneg %p107
        %p374 = pneg %p138
        %p375 = pneg %p135
        %s376 = sand.u32 %s125, 1
        %s377 = sand.u32 %s125, 1
        %s378 = smul.addr %s377, 64
        %s379 = scalar_lea.vmem [#allocation4], %s378
        %s380 = smul.u32 2, %s19
        %s381 = smul.u32 2, %s21
        %p382 = scmp.lt.s32.totalorder %s380, 1
        %s383 = scalar_select %p382, %s380, 1
        %p384 = scmp.lt.s32.totalorder %s381, 1
        %s385 = scalar_select %p384, %s381, 1
        %s386 = smul.addr %s383, 2
        %s387 = sadd.s32 %s385, %s386
        %s388 = smul.addr %s387, 4
        %s389 = scalar_lea.vmem %s0, %s388
        %s390 = smul.u32 2, %s19
        %s391 = smul.u32 2, %s21
        %s392 = smul.u32 32, %s21
        %s393 = smul.u32 4, %s20
        %s394 = smul.u32 4, %s20
        %p395 = scmp.lt.s32.totalorder %s394, 115
        %s396 = scalar_select %p395, %s394, 115
        %s397 = scalar_lea.vmem %s2, %s396
        %s398 = smul.u32 4, %s20
        %s399 = smul.u32 2, %s19
        %s400 = smul.u32 4, %s20
        %p401 = scmp.eq.s32.totalorder %s21, 0
        // Predicated region
        $region56: #{elevation_convnet_forward.11} parent=50 // pred_check
          %p402 = pneg %p401
        $region57: #{elevation_convnet_forward.11} parent=50 // pred_check_branch
          %404 = sbr.rel (%p402) target = $region59
        $region58: #{elevation_convnet_forward.11} parent=50 // pred_region
          %405 = vst [vmem:[#allocation2] sm:$0xff] 0.0
          %406 = vst [vmem:[#allocation2 + $0x8] sm:$0xff] 0.0
          %407 = vst [vmem:[#allocation2 + $0x10] sm:$0xff] 0.0
          %408 = vst [vmem:[#allocation2 + $0x18] sm:$0xff] 0.0
          %409 = vst [vmem:[#allocation2 + $0x20] sm:$0xff] 0.0
          %410 = vst [vmem:[#allocation2 + $0x28] sm:$0xff] 0.0
          %411 = vst [vmem:[#allocation2 + $0x30] sm:$0xff] 0.0
          %412 = vst [vmem:[#allocation2 + $0x38] sm:$0xff] 0.0
        $region59: #{elevation_convnet_forward.11} parent=50 // pred_fallthru
          _
        %v413 = vld [vmem:[#allocation2] sm:$0xff]
        %v414 = vld [vmem:[#allocation2 + $0x8] sm:$0xff]
        %v415 = vld [vmem:[#allocation2 + $0x10] sm:$0xff]
        %v416 = vld [vmem:[#allocation2 + $0x18] sm:$0xff]
        %v417 = vld [vmem:[#allocation2 + $0x20] sm:$0xff]
        %v418 = vld [vmem:[#allocation2 + $0x28] sm:$0xff]
        %v419 = vld [vmem:[#allocation2 + $0x30] sm:$0xff]
        %v420 = vld [vmem:[#allocation2 + $0x38] sm:$0xff]
        %v421 = vld [vmem:[%s389] sm:$0xff]
        %v422 = vld [vmem:[%s389 + $0x8] sm:$0xff]
        %v423 = vld [vmem:[%s346] sm:$0xff]
        %v424 = vld [vmem:[%s346 + $0x8] sm:$0xff]
        %v425 = vld [vmem:[%s346 + $0x10] sm:$0xff]
        %v426 = vld [vmem:[%s346 + $0x18] sm:$0xff]
        %v427 = vld [vmem:[%s346 + $0x20] sm:$0xff]
        %v428 = vld [vmem:[%s346 + $0x28] sm:$0xff]
        %v429 = vld [vmem:[%s346 + $0x30] sm:$0xff]
        %v430 = vld [vmem:[%s346 + $0x38] sm:$0xff]
        %v431 = vld [vmem:[%s346 + $0x40] sm:$0xff]
        %v432 = vld [vmem:[%s346 + $0x48] sm:$0xff]
        %v433 = vld [vmem:[%s346 + $0x50] sm:$0xff]
        %v434 = vld [vmem:[%s346 + $0x58] sm:$0xff]
        %v435 = vld [vmem:[%s346 + $0x60] sm:$0xff]
        %v436 = vld [vmem:[%s346 + $0x68] sm:$0xff]
        %v437 = vld [vmem:[%s346 + $0x70] sm:$0xff]
        %v438 = vld [vmem:[%s346 + $0x78] sm:$0xff]
        %v439 = vld [vmem:[%s346 + $0x80] sm:$0xff]
        %v440 = vld [vmem:[%s346 + $0x88] sm:$0xff]
        %v441 = vld [vmem:[%s346 + $0x90] sm:$0xff]
        %v442 = vld [vmem:[%s346 + $0x98] sm:$0xff]
        %v443 = vld [vmem:[%s346 + $0xa0] sm:$0xff]
        %v444 = vld [vmem:[%s346 + $0xa8] sm:$0xff]
        %v445 = vld [vmem:[%s346 + $0xb0] sm:$0xff]
        %v446 = vld [vmem:[%s346 + $0xb8] sm:$0xff]
        %v447 = vld [vmem:[%s346 + $0xc0] sm:$0xff]
        %v448 = vld [vmem:[%s346 + $0xc8] sm:$0xff]
        %v449 = vld [vmem:[%s346 + $0xd0] sm:$0xff]
        %v450 = vld [vmem:[%s346 + $0xd8] sm:$0xff]
        %v451 = vld [vmem:[%s346 + $0xe0] sm:$0xff]
        %v452 = vld [vmem:[%s346 + $0xe8] sm:$0xff]
        %v453 = vld [vmem:[%s346 + $0xf0] sm:$0xff]
        %v454 = vld [vmem:[%s346 + $0xf8] sm:$0xff]
        %v455 = vld [vmem:[%s346 + $0x100] sm:$0xff]
        %v456 = vld [vmem:[%s346 + $0x108] sm:$0xff]
        %v457 = vld [vmem:[%s346 + $0x110] sm:$0xff]
        %v458 = vld [vmem:[%s346 + $0x118] sm:$0xff]
        %v459 = vld [vmem:[%s346 + $0x120] sm:$0xff]
        %v460 = vld [vmem:[%s346 + $0x128] sm:$0xff]
        %v461 = vld [vmem:[%s346 + $0x130] sm:$0xff]
        %v462 = vld [vmem:[%s346 + $0x138] sm:$0xff]
        %v463 = vld [vmem:[%s346 + $0x140] sm:$0xff]
        %v464 = vld [vmem:[%s346 + $0x148] sm:$0xff]
        %v465 = vld [vmem:[%s346 + $0x150] sm:$0xff]
        %v466 = vld [vmem:[%s346 + $0x158] sm:$0xff]
        %v467 = vld [vmem:[%s346 + $0x160] sm:$0xff]
        %v468 = vld [vmem:[%s346 + $0x168] sm:$0xff]
        %v469 = vld [vmem:[%s346 + $0x170] sm:$0xff]
        %v470 = vld [vmem:[%s346 + $0x178] sm:$0xff]
        %v471 = vld [vmem:[%s346 + $0x180] sm:$0xff]
        %v472 = vld [vmem:[%s346 + $0x188] sm:$0xff]
        %v473 = vld [vmem:[%s346 + $0x190] sm:$0xff]
        %v474 = vld [vmem:[%s346 + $0x198] sm:$0xff]
        %v475 = vld [vmem:[%s346 + $0x1a0] sm:$0xff]
        %v476 = vld [vmem:[%s346 + $0x1a8] sm:$0xff]
        %v477 = vld [vmem:[%s346 + $0x1b0] sm:$0xff]
        %v478 = vld [vmem:[%s346 + $0x1b8] sm:$0xff]
        %v479 = vld [vmem:[%s346 + $0x1c0] sm:$0xff]
        %v480 = vld [vmem:[%s346 + $0x1c8] sm:$0xff]
        %v481 = vld [vmem:[%s346 + $0x1d0] sm:$0xff]
        %v482 = vld [vmem:[%s346 + $0x1d8] sm:$0xff]
        %v483 = vld [vmem:[%s346 + $0x1e0] sm:$0xff]
        %v484 = vld [vmem:[%s346 + $0x1e8] sm:$0xff]
        %v485 = vld [vmem:[%s346 + $0x1f0] sm:$0xff]
        %v486 = vld [vmem:[%s346 + $0x1f8] sm:$0xff]
        %v489 = vunpack.c.l.b16 %v421
        %v490 = vunpack.c.h.b16 %v421
        %v491 = vunpack.c.l.b16 %v422
        %v492 = vunpack.c.h.b16 %v422
        %v493 = vpack.c.b16 %v491, %v489
        %v494 = vpack.c.b16 %v492, %v490
        %v561 = vunpack.c.l.b16 %v423
        %v562 = vunpack.c.h.b16 %v423
        %v563 = vunpack.c.l.b16 %v424
        %v564 = vunpack.c.h.b16 %v424
        %v565 = vunpack.c.l.b16 %v425
        %v566 = vunpack.c.h.b16 %v425
        %v567 = vunpack.c.l.b16 %v426
        %v568 = vunpack.c.h.b16 %v426
        %v569 = vunpack.c.l.b16 %v427
        %v570 = vunpack.c.h.b16 %v427
        %v571 = vunpack.c.l.b16 %v428
        %v572 = vunpack.c.h.b16 %v428
        %v573 = vunpack.c.l.b16 %v429
        %v574 = vunpack.c.h.b16 %v429
        %v575 = vunpack.c.l.b16 %v430
        %v576 = vunpack.c.h.b16 %v430
        %v577 = vunpack.c.l.b16 %v431
        %v578 = vunpack.c.h.b16 %v431
        %v579 = vunpack.c.l.b16 %v432
        %v580 = vunpack.c.h.b16 %v432
        %v581 = vunpack.c.l.b16 %v433
        %v582 = vunpack.c.h.b16 %v433
        %v583 = vunpack.c.l.b16 %v434
        %v584 = vunpack.c.h.b16 %v434
        %v585 = vunpack.c.l.b16 %v435
        %v586 = vunpack.c.h.b16 %v435
        %v587 = vunpack.c.l.b16 %v436
        %v588 = vunpack.c.h.b16 %v436
        %v589 = vunpack.c.l.b16 %v437
        %v590 = vunpack.c.h.b16 %v437
        %v591 = vunpack.c.l.b16 %v438
        %v592 = vunpack.c.h.b16 %v438
        %v593 = vunpack.c.l.b16 %v439
        %v594 = vunpack.c.h.b16 %v439
        %v595 = vunpack.c.l.b16 %v440
        %v596 = vunpack.c.h.b16 %v440
        %v597 = vunpack.c.l.b16 %v441
        %v598 = vunpack.c.h.b16 %v441
        %v599 = vunpack.c.l.b16 %v442
        %v600 = vunpack.c.h.b16 %v442
        %v601 = vunpack.c.l.b16 %v443
        %v602 = vunpack.c.h.b16 %v443
        %v603 = vunpack.c.l.b16 %v444
        %v604 = vunpack.c.h.b16 %v444
        %v605 = vunpack.c.l.b16 %v445
        %v606 = vunpack.c.h.b16 %v445
        %v607 = vunpack.c.l.b16 %v446
        %v608 = vunpack.c.h.b16 %v446
        %v609 = vunpack.c.l.b16 %v447
        %v610 = vunpack.c.h.b16 %v447
        %v611 = vunpack.c.l.b16 %v448
        %v612 = vunpack.c.h.b16 %v448
        %v613 = vunpack.c.l.b16 %v449
        %v614 = vunpack.c.h.b16 %v449
        %v615 = vunpack.c.l.b16 %v450
        %v616 = vunpack.c.h.b16 %v450
        %v617 = vunpack.c.l.b16 %v451
        %v618 = vunpack.c.h.b16 %v451
        %v619 = vunpack.c.l.b16 %v452
        %v620 = vunpack.c.h.b16 %v452
        %v621 = vunpack.c.l.b16 %v453
        %v622 = vunpack.c.h.b16 %v453
        %v623 = vunpack.c.l.b16 %v454
        %v624 = vunpack.c.h.b16 %v454
        %v625 = vunpack.c.l.b16 %v455
        %v626 = vunpack.c.h.b16 %v455
        %v627 = vunpack.c.l.b16 %v456
        %v628 = vunpack.c.h.b16 %v456
        %v629 = vunpack.c.l.b16 %v457
        %v630 = vunpack.c.h.b16 %v457
        %v631 = vunpack.c.l.b16 %v458
        %v632 = vunpack.c.h.b16 %v458
        %v633 = vunpack.c.l.b16 %v459
        %v634 = vunpack.c.h.b16 %v459
        %v635 = vunpack.c.l.b16 %v460
        %v636 = vunpack.c.h.b16 %v460
        %v637 = vunpack.c.l.b16 %v461
        %v638 = vunpack.c.h.b16 %v461
        %v639 = vunpack.c.l.b16 %v462
        %v640 = vunpack.c.h.b16 %v462
        %v641 = vunpack.c.l.b16 %v463
        %v642 = vunpack.c.h.b16 %v463
        %v643 = vunpack.c.l.b16 %v464
        %v644 = vunpack.c.h.b16 %v464
        %v645 = vunpack.c.l.b16 %v465
        %v646 = vunpack.c.h.b16 %v465
        %v647 = vunpack.c.l.b16 %v466
        %v648 = vunpack.c.h.b16 %v466
        %v649 = vunpack.c.l.b16 %v467
        %v650 = vunpack.c.h.b16 %v467
        %v651 = vunpack.c.l.b16 %v468
        %v652 = vunpack.c.h.b16 %v468
        %v653 = vunpack.c.l.b16 %v469
        %v654 = vunpack.c.h.b16 %v469
        %v655 = vunpack.c.l.b16 %v470
        %v656 = vunpack.c.h.b16 %v470
        %v657 = vunpack.c.l.b16 %v471
        %v658 = vunpack.c.h.b16 %v471
        %v659 = vunpack.c.l.b16 %v472
        %v660 = vunpack.c.h.b16 %v472
        %v661 = vunpack.c.l.b16 %v473
        %v662 = vunpack.c.h.b16 %v473
        %v663 = vunpack.c.l.b16 %v474
        %v664 = vunpack.c.h.b16 %v474
        %v665 = vunpack.c.l.b16 %v475
        %v666 = vunpack.c.h.b16 %v475
        %v667 = vunpack.c.l.b16 %v476
        %v668 = vunpack.c.h.b16 %v476
        %v669 = vunpack.c.l.b16 %v477
        %v670 = vunpack.c.h.b16 %v477
        %v671 = vunpack.c.l.b16 %v478
        %v672 = vunpack.c.h.b16 %v478
        %v673 = vunpack.c.l.b16 %v479
        %v674 = vunpack.c.h.b16 %v479
        %v675 = vunpack.c.l.b16 %v480
        %v676 = vunpack.c.h.b16 %v480
        %v677 = vunpack.c.l.b16 %v481
        %v678 = vunpack.c.h.b16 %v481
        %v679 = vunpack.c.l.b16 %v482
        %v680 = vunpack.c.h.b16 %v482
        %v681 = vunpack.c.l.b16 %v483
        %v682 = vunpack.c.h.b16 %v483
        %v683 = vunpack.c.l.b16 %v484
        %v684 = vunpack.c.h.b16 %v484
        %v685 = vunpack.c.l.b16 %v485
        %v686 = vunpack.c.h.b16 %v485
        %v687 = vunpack.c.l.b16 %v486
        %v688 = vunpack.c.h.b16 %v486
        %v689 = vpack.c.b16 %v565, %v561
        %v690 = vpack.c.b16 %v566, %v562
        %v691 = vpack.c.b16 %v567, %v563
        %v692 = vpack.c.b16 %v568, %v564
        %v693 = vpack.c.b16 %v573, %v569
        %v694 = vpack.c.b16 %v574, %v570
        %v695 = vpack.c.b16 %v575, %v571
        %v696 = vpack.c.b16 %v576, %v572
        %v697 = vpack.c.b16 %v581, %v577
        %v698 = vpack.c.b16 %v582, %v578
        %v699 = vpack.c.b16 %v583, %v579
        %v700 = vpack.c.b16 %v584, %v580
        %v701 = vpack.c.b16 %v589, %v585
        %v702 = vpack.c.b16 %v590, %v586
        %v703 = vpack.c.b16 %v591, %v587
        %v704 = vpack.c.b16 %v592, %v588
        %v705 = vpack.c.b16 %v597, %v593
        %v706 = vpack.c.b16 %v598, %v594
        %v707 = vpack.c.b16 %v599, %v595
        %v708 = vpack.c.b16 %v600, %v596
        %v709 = vpack.c.b16 %v605, %v601
        %v710 = vpack.c.b16 %v606, %v602
        %v711 = vpack.c.b16 %v607, %v603
        %v712 = vpack.c.b16 %v608, %v604
        %v713 = vpack.c.b16 %v613, %v609
        %v714 = vpack.c.b16 %v614, %v610
        %v715 = vpack.c.b16 %v615, %v611
        %v716 = vpack.c.b16 %v616, %v612
        %v717 = vpack.c.b16 %v621, %v617
        %v718 = vpack.c.b16 %v622, %v618
        %v719 = vpack.c.b16 %v623, %v619
        %v720 = vpack.c.b16 %v624, %v620
        %v721 = vpack.c.b16 %v629, %v625
        %v722 = vpack.c.b16 %v630, %v626
        %v723 = vpack.c.b16 %v631, %v627
        %v724 = vpack.c.b16 %v632, %v628
        %v725 = vpack.c.b16 %v637, %v633
        %v726 = vpack.c.b16 %v638, %v634
        %v727 = vpack.c.b16 %v639, %v635
        %v728 = vpack.c.b16 %v640, %v636
        %v729 = vpack.c.b16 %v645, %v641
        %v730 = vpack.c.b16 %v646, %v642
        %v731 = vpack.c.b16 %v647, %v643
        %v732 = vpack.c.b16 %v648, %v644
        %v733 = vpack.c.b16 %v653, %v649
        %v734 = vpack.c.b16 %v654, %v650
        %v735 = vpack.c.b16 %v655, %v651
        %v736 = vpack.c.b16 %v656, %v652
        %v737 = vpack.c.b16 %v661, %v657
        %v738 = vpack.c.b16 %v662, %v658
        %v739 = vpack.c.b16 %v663, %v659
        %v740 = vpack.c.b16 %v664, %v660
        %v741 = vpack.c.b16 %v669, %v665
        %v742 = vpack.c.b16 %v670, %v666
        %v743 = vpack.c.b16 %v671, %v667
        %v744 = vpack.c.b16 %v672, %v668
        %v745 = vpack.c.b16 %v677, %v673
        %v746 = vpack.c.b16 %v678, %v674
        %v747 = vpack.c.b16 %v679, %v675
        %v748 = vpack.c.b16 %v680, %v676
        %v749 = vpack.c.b16 %v685, %v681
        %v750 = vpack.c.b16 %v686, %v682
        %v751 = vpack.c.b16 %v687, %v683
        %v752 = vpack.c.b16 %v688, %v684
        %817 = vmatprep.subr.bf16.mxu0 %v690
        %818 = vmatpush1.bf16.msra.mxu0 %v689
        %819 = vmatprep.subr.bf16.mxu0 %v694
        %820 = vmatpush1.bf16.msra.mxu0 %v693
        %821 = vmatprep.subr.bf16.mxu0 %v698
        %822 = vmatpush1.bf16.msra.mxu0 %v697
        %823 = vmatprep.subr.bf16.mxu0 %v702
        %824 = vmatpush1.bf16.msra.mxu0 %v701
        %825 = vmatprep.subr.bf16.mxu0 %v706
        %826 = vmatpush1.bf16.msra.mxu0 %v705
        %827 = vmatprep.subr.bf16.mxu0 %v710
        %828 = vmatpush1.bf16.msra.mxu0 %v709
        %829 = vmatprep.subr.bf16.mxu0 %v714
        %830 = vmatpush1.bf16.msra.mxu0 %v713
        %831 = vmatprep.subr.bf16.mxu0 %v718
        %832 = vmatpush1.bf16.msra.mxu0 %v717
        %833 = vmatprep.subr.bf16.mxu0 %v722
        %834 = vmatpush1.bf16.msra.mxu0 %v721
        %835 = vmatprep.subr.bf16.mxu0 %v726
        %836 = vmatpush1.bf16.msra.mxu0 %v725
        %837 = vmatprep.subr.bf16.mxu0 %v730
        %838 = vmatpush1.bf16.msra.mxu0 %v729
        %839 = vmatprep.subr.bf16.mxu0 %v734
        %840 = vmatpush1.bf16.msra.mxu0 %v733
        %841 = vmatprep.subr.bf16.mxu0 %v738
        %842 = vmatpush1.bf16.msra.mxu0 %v737
        %843 = vmatprep.subr.bf16.mxu0 %v742
        %844 = vmatpush1.bf16.msra.mxu0 %v741
        %845 = vmatprep.subr.bf16.mxu0 %v746
        %846 = vmatpush1.bf16.msra.mxu0 %v745
        %847 = vmatprep.subr.bf16.mxu0 %v750
        %848 = vmatpush1.bf16.msra.mxu0 %v749
        %849 = vmatprep.mubr.bf16.mxu0 %v494
        %850 = vmatmul.mubr.bf16.gmra.mrb[0].mxu0 %v493
        %v851 = vpop.f32.mrb[0].mxu0
        %v852 = vadd.f32 0.0, %v851
        %v853 = vpop.f32.mrb[0].mxu0
        %v854 = vadd.f32 0.0, %v853
        %v855 = vpop.f32.mrb[0].mxu0
        %v856 = vadd.f32 0.0, %v855
        %v857 = vpop.f32.mrb[0].mxu0
        %v858 = vadd.f32 0.0, %v857
        %859 = vdwg.mxu0
        %860 = vmatprep.subr.bf16.mxu0 %v692
        %861 = vmatpush1.bf16.msra.mxu0 %v691
        %862 = vmatprep.subr.bf16.mxu0 %v696
        %863 = vmatpush1.bf16.msra.mxu0 %v695
        %864 = vmatprep.subr.bf16.mxu0 %v700
        %865 = vmatpush1.bf16.msra.mxu0 %v699
        %866 = vmatprep.subr.bf16.mxu0 %v704
        %867 = vmatpush1.bf16.msra.mxu0 %v703
        %868 = vmatprep.subr.bf16.mxu0 %v708
        %869 = vmatpush1.bf16.msra.mxu0 %v707
        %870 = vmatprep.subr.bf16.mxu0 %v712
        %871 = vmatpush1.bf16.msra.mxu0 %v711
        %872 = vmatprep.subr.bf16.mxu0 %v716
        %873 = vmatpush1.bf16.msra.mxu0 %v715
        %874 = vmatprep.subr.bf16.mxu0 %v720
        %875 = vmatpush1.bf16.msra.mxu0 %v719
        %876 = vmatprep.subr.bf16.mxu0 %v724
        %877 = vmatpush1.bf16.msra.mxu0 %v723
        %878 = vmatprep.subr.bf16.mxu0 %v728
        %879 = vmatpush1.bf16.msra.mxu0 %v727
        %880 = vmatprep.subr.bf16.mxu0 %v732
        %881 = vmatpush1.bf16.msra.mxu0 %v731
        %882 = vmatprep.subr.bf16.mxu0 %v736
        %883 = vmatpush1.bf16.msra.mxu0 %v735
        %884 = vmatprep.subr.bf16.mxu0 %v740
        %885 = vmatpush1.bf16.msra.mxu0 %v739
        %886 = vmatprep.subr.bf16.mxu0 %v744
        %887 = vmatpush1.bf16.msra.mxu0 %v743
        %888 = vmatprep.subr.bf16.mxu0 %v748
        %889 = vmatpush1.bf16.msra.mxu0 %v747
        %890 = vmatprep.subr.bf16.mxu0 %v752
        %891 = vmatpush1.bf16.msra.mxu0 %v751
        %892 = vmatprep.mubr.bf16.mxu0 %v494
        %893 = vmatmul.mubr.bf16.gmra.mrb[0].mxu0 %v493
        %v894 = vpop.f32.mrb[0].mxu0
        %v895 = vadd.f32 0.0, %v894
        %v896 = vpop.f32.mrb[0].mxu0
        %v897 = vadd.f32 0.0, %v896
        %v898 = vpop.f32.mrb[0].mxu0
        %v899 = vadd.f32 0.0, %v898
        %v900 = vpop.f32.mrb[0].mxu0
        %v901 = vadd.f32 0.0, %v900
        %902 = vdwg.mxu0
        %v903 = vadd.f32 %v413, %v852
        %v904 = vadd.f32 %v414, %v854
        %v905 = vadd.f32 %v415, %v895
        %v906 = vadd.f32 %v416, %v897
        %v907 = vadd.f32 %v417, %v856
        %v908 = vadd.f32 %v418, %v858
        %v909 = vadd.f32 %v419, %v899
        %v910 = vadd.f32 %v420, %v901
        %911 = vst [vmem:[#allocation2] sm:$0xff] %v903
        %912 = vst [vmem:[#allocation2 + $0x8] sm:$0xff] %v904
        %913 = vst [vmem:[#allocation2 + $0x10] sm:$0xff] %v905
        %914 = vst [vmem:[#allocation2 + $0x18] sm:$0xff] %v906
        %915 = vst [vmem:[#allocation2 + $0x20] sm:$0xff] %v907
        %916 = vst [vmem:[#allocation2 + $0x28] sm:$0xff] %v908
        %917 = vst [vmem:[#allocation2 + $0x30] sm:$0xff] %v909
        %918 = vst [vmem:[#allocation2 + $0x38] sm:$0xff] %v910
        // Predicated region
        $region60: #{elevation_convnet_forward.11} parent=50 // pred_check
          %p919 = pneg %p401
        $region61: #{elevation_convnet_forward.11} parent=50 // pred_check_branch
          %921 = sbr.rel (%p919) target = $region63
        $region62: #{elevation_convnet_forward.11} parent=50 // pred_region
          %v922 = vld [vmem:[#allocation2] sm:$0xff]
          %v923 = vld [vmem:[#allocation2 + $0x8] sm:$0xff]
          %v924 = vld [vmem:[#allocation2 + $0x10] sm:$0xff]
          %v925 = vld [vmem:[#allocation2 + $0x18] sm:$0xff]
          %v926 = vld [vmem:[#allocation2 + $0x20] sm:$0xff]
          %v927 = vld [vmem:[#allocation2 + $0x28] sm:$0xff]
          %v928 = vld [vmem:[#allocation2 + $0x30] sm:$0xff]
          %v929 = vld [vmem:[#allocation2 + $0x38] sm:$0xff]
          %v930 = vld [vmem:[%s397] sm:$0xf]
          %v932 = vlaneseq
          %v933 = vshrl.u32 %v932, 7
          %v934 = vsub.s32 0, %v933
          %v935 = vrot.slane %v930, %v934
          %v936 = vlaneseq
          %v937 = vshrl.u32 %v936, 7
          %v938 = vsub.s32 1, %v937
          %v939 = vrot.slane %v930, %v938
          %v940 = vlaneseq
          %v941 = vshrl.u32 %v940, 7
          %v942 = vsub.s32 2, %v941
          %v943 = vrot.slane %v930, %v942
          %v944 = vlaneseq
          %v945 = vshrl.u32 %v944, 7
          %v946 = vsub.s32 3, %v945
          %v947 = vrot.slane %v930, %v946
          %v952 = vadd.f32 %v922, %v935
          %v953 = vadd.f32 %v923, %v939
          %v954 = vadd.f32 %v924, %v943
          %v955 = vadd.f32 %v925, %v947
          %v956 = vadd.f32 %v926, %v935
          %v957 = vadd.f32 %v927, %v939
          %v958 = vadd.f32 %v928, %v943
          %v959 = vadd.f32 %v929, %v947
          %960 = vst [vmem:[%s379] sm:$0xff] %v952
          %961 = vst [vmem:[%s379 + $0x8] sm:$0xff] %v953
          %962 = vst [vmem:[%s379 + $0x10] sm:$0xff] %v954
          %963 = vst [vmem:[%s379 + $0x18] sm:$0xff] %v955
          %964 = vst [vmem:[%s379 + $0x20] sm:$0xff] %v956
          %965 = vst [vmem:[%s379 + $0x28] sm:$0xff] %v957
          %966 = vst [vmem:[%s379 + $0x30] sm:$0xff] %v958
          %967 = vst [vmem:[%s379 + $0x38] sm:$0xff] %v959
        $region63: #{elevation_convnet_forward.11} parent=50 // pred_fallthru
          _
        %s968 = sand.u32 %s125, 1
        %s969 = sand.u32 %s125, 1
        %s970 = smul.addr %s969, 64
        %s971 = scalar_lea.vmem [#allocation4], %s970
        // Predicated region
        $region64: #{elevation_convnet_forward.11} parent=50 // pred_check
          %p972 = pneg %p135
        $region65: #{elevation_convnet_forward.11} parent=50 // pred_check_branch
          %974 = sbr.rel (%p972) target = $region67
        $region66: #{elevation_convnet_forward.11} parent=50 // pred_region
          %s975 = smul.u32 2, %s19
          %s976 = smul.u32 4, %s20
          %s977 = smul.addr %s975, 116
          %s978 = sadd.s32 %s976, %s977
          %s979 = smul.addr %s978, 8
          %s980 = scalar_lea.vmem %s3, %s979
          // Predicated region
          $region68: #{elevation_convnet_forward.11} parent=66 // pred_check
            _
          $region69: #{elevation_convnet_forward.11} parent=66 // pred_check_branch
            %982 = sbr.rel (0) target = $region71
          $region70: #{elevation_convnet_forward.11} parent=66 // pred_region
            // Predicated region
            $region72: #{elevation_convnet_forward.11} parent=70 // pred_check
              _
            $region73: #{elevation_convnet_forward.11} parent=70 // pred_check_branch
              %984 = sbr.rel (0) target = $region75
            $region74: #{elevation_convnet_forward.11} parent=70 // pred_region
              loop: start=0, step=1, limit=1
              $region76: #{elevation_convnet_forward.11} parent=74 // loop_pre_header
                _
              $region77: #{elevation_convnet_forward.11} parent=74 // loop_header
                %s986 = sphi 0, %s990
                %p987 = scmp.ge.s32.totalorder %s986, 1
                %s991 = sphi %s971, %s971
                %s992 = sphi %s980, %s980
              $region78: #{elevation_convnet_forward.11} parent=74 // loop_header_branch
                %989 = sbr.rel (%p987) target = $region82
              $region79: #{elevation_convnet_forward.11} parent=74 // loop_body
                %v993 = vld [vmem:[%s991] sm:$0xff]
                %994 = vst [vmem:[%s992] sm:$0xff] %v993
                %v995 = vld [vmem:[%s991 + $0x8] sm:$0xff]
                %996 = vst [vmem:[%s992 + $0x8] sm:$0xff] %v995
                %v997 = vld [vmem:[%s991 + $0x10] sm:$0xff]
                %998 = vst [vmem:[%s992 + $0x10] sm:$0xff] %v997
                %v999 = vld [vmem:[%s991 + $0x18] sm:$0xff]
                %1000 = vst [vmem:[%s992 + $0x18] sm:$0xff] %v999
                %v1001 = vld [vmem:[%s991 + $0x20] sm:$0xff]
                %1002 = vst [vmem:[%s992 + $0x3a0] sm:$0xff] %v1001
                %v1003 = vld [vmem:[%s991 + $0x28] sm:$0xff]
                %1004 = vst [vmem:[%s992 + $0x3a8] sm:$0xff] %v1003
                %v1005 = vld [vmem:[%s991 + $0x30] sm:$0xff]
                %1006 = vst [vmem:[%s992 + $0x3b0] sm:$0xff] %v1005
                %v1007 = vld [vmem:[%s991 + $0x38] sm:$0xff]
                %1008 = vst [vmem:[%s992 + $0x3b8] sm:$0xff] %v1007
              $region80: #{elevation_convnet_forward.11} parent=74 // loop_footer
                %s990 = sadd.s32 1, %s986
              $region81: #{elevation_convnet_forward.11} parent=74 // loop_footer_branch
                %985 = sbr.rel target = $region77
              $region82: #{elevation_convnet_forward.11} parent=74 // loop_exit
                _
            $region75: #{elevation_convnet_forward.11} parent=70 // pred_fallthru
              _
            // Predicated region
            $region83: #{elevation_convnet_forward.11} parent=70 // pred_check
              _
            $region84: #{elevation_convnet_forward.11} parent=70 // pred_check_branch
              %1010 = sbr.rel target = $region86
            $region85: #{elevation_convnet_forward.11} parent=70 // pred_region
              _
            $region86: #{elevation_convnet_forward.11} parent=70 // pred_fallthru
              _
          $region71: #{elevation_convnet_forward.11} parent=66 // pred_fallthru
            _
          %1011 = vnop
        $region67: #{elevation_convnet_forward.11} parent=50 // pred_fallthru
          _
      $region51: #{elevation_convnet_forward.11} parent=5 // pred_fallthru
        _
      %p1012 = scmp.le.s32.totalorder 2, %s9
      // Predicated region
      $region87: #{elevation_convnet_forward.11} parent=5 // pred_check
        %p1013 = pneg %p1012
      $region88: #{elevation_convnet_forward.11} parent=5 // pred_check_branch
        %1015 = sbr.rel (%p1013) target = $region90
      $region89: #{elevation_convnet_forward.11} parent=5 // pred_region
        %s1016 = ssub.s32 %s9, 2
        // Predicated region
        $region91: #{elevation_convnet_forward.11} parent=89 // pred_check
          %p1017 = pneg %p141
        $region92: #{elevation_convnet_forward.11} parent=89 // pred_check_branch
          %1019 = sbr.rel (%p1017) target = $region94
        $region93: #{elevation_convnet_forward.11} parent=89 // pred_region
          %s1020 = sand.u32 %s126, 1
          %s1021 = sand.u32 %s126, 1
          %s1022 = smul.addr %s1021, 64
          %s1023 = scalar_lea.vmem [#allocation4], %s1022
        $region94: #{elevation_convnet_forward.11} parent=89 // pred_fallthru
          _
      $region90: #{elevation_convnet_forward.11} parent=5 // pred_fallthru
        _
    $region6: #{elevation_convnet_forward.11} parent=1 // loop_footer
      %s13 = sadd.s32 1, %s9
    $region7: #{elevation_convnet_forward.11} parent=1 // loop_footer_branch
      %8 = sbr.rel target = $region3
    $region8: #{elevation_convnet_forward.11} parent=1 // loop_exit
      _

</llo_original>
